<compile_context>
chip_gen: v7x
topology: tpu7x:2x2x1
jax: 0.10.0
libtpu: 0.0.40
codegen_flags: <defaults>
</compile_context>

<pallas_src>
import functools

import jax
import jax.numpy as jnp
from jax.experimental import pallas as pl
from jax.experimental.pallas import tpu as pltpu


def _round_up(x, m):
    return ((x + m - 1) // m) * m


def _default_vmem_limit():
    # v5e/v6e: 128 MiB VMEM per TensorCore, v7x: 64 MiB.  Our per-step usage
    # after tiling is ~10 MiB, so any of these caps is comfortable.
    try:
        cap = pltpu.get_tpu_info().vmem_capacity_bytes
    except Exception:
        cap = 64 * 1024 * 1024
    return max(32 * 1024 * 1024, min(int(cap) * 3 // 4, 100 * 1024 * 1024))


VMEM_LIMIT = _default_vmem_limit()


# ----------------------------------------------------------------------------
# Pallas kernel 1: fused sum_k (M, K_k) @ (K_k, N) + bias [+ residual] [+ relu]
#
# Invariant: every output row depends ONLY on its own input row(s).  Partial
# last M-tiles compute on out-of-bounds rows and rely on Pallas masked stores;
# do not add any cross-row op (reduction/normalization) to this kernel.
# ----------------------------------------------------------------------------
def _make_mm_kernel(n_in, relu, has_res):
    def kernel(*refs):
        x_refs = refs[:n_in]
        w_refs = refs[n_in:2 * n_in]
        b_ref = refs[2 * n_in]
        nxt = 2 * n_in + 1
        r_ref = refs[nxt] if has_res else None
        o_ref = refs[nxt + 1] if has_res else refs[nxt]

        acc = jnp.dot(x_refs[0][...], w_refs[0][...],
                      preferred_element_type=jnp.float32)
        for t in range(1, n_in):
            acc = acc + jnp.dot(x_refs[t][...], w_refs[t][...],
                                preferred_element_type=jnp.float32)
        acc = acc + b_ref[...]
        if has_res:
            acc = acc + r_ref[...].astype(jnp.float32)
        if relu:
            acc = jnp.maximum(acc, 0.0)
        o_ref[...] = acc.astype(o_ref.dtype)

    return kernel


def matmul_bias(xs, ws, b, *, relu=False, residual=None,
                out_dtype=jnp.bfloat16, tm=512):
    """K-split 1x1-conv matmul.

    xs: array (M, K) or list of arrays (M, K_k); ws: matching (K_k, N) bf16;
    b: (N,) f32; optional residual (M, N).  bf16 operands, f32 accumulation.
    tm=512 (review: the 1x1 convs are HBM-bound; 512 rows ~85% of roofline).
    """
    if not isinstance(xs, (list, tuple)):
        xs = [xs]
    if not isinstance(ws, (list, tuple)):
        ws = [ws]
    assert len(xs) == len(ws)
    M = xs[0].shape[0]
    N = ws[0].shape[1]
    tm = min(tm, _round_up(M, 8))
    grid = (pl.cdiv(M, tm),)

    xs = [x.astype(jnp.bfloat16) for x in xs]
    ws = [w.astype(jnp.bfloat16) for w in ws]
    b2 = b.reshape(1, N).astype(jnp.float32)

    args = list(xs) + list(ws) + [b2]
    in_specs = []
    for x in xs:
        in_specs.append(pl.BlockSpec((tm, x.shape[1]), lambda i: (i, 0)))
    for w in ws:
        in_specs.append(pl.BlockSpec((w.shape[0], N), lambda i: (0, 0)))
    in_specs.append(pl.BlockSpec((1, N), lambda i: (0, 0)))
    if residual is not None:
        args.append(residual.astype(jnp.bfloat16))
        in_specs.append(pl.BlockSpec((tm, N), lambda i: (i, 0)))

    return pl.pallas_call(
        _make_mm_kernel(len(xs), relu, residual is not None),
        out_shape=jax.ShapeDtypeStruct((M, N), out_dtype),
        grid=grid,
        in_specs=in_specs,
        out_specs=pl.BlockSpec((tm, N), lambda i: (i, 0)),
        compiler_params=pltpu.CompilerParams(
            dimension_semantics=("parallel",),
            vmem_limit_bytes=VMEM_LIMIT),
    )(*args)


# ----------------------------------------------------------------------------
# Pallas kernel 2: 3x3 conv (stride 1, pad 1), row-block tiled, 9 MXU taps.
# ----------------------------------------------------------------------------
def _pick_row_tile(H, W, target_rows):
    """Largest divisor TH of H with TH*W flattened rows <= target_rows."""
    best = 1
    for th in range(1, H + 1):
        if H % th == 0 and th * W <= target_rows:
            best = th
    return best


def _make_conv3x3_kernel(W, C, COUT, TH, nrb, dtype):
    TW = TH * W                    # output rows per tile (flattened pixels)
    PADROWS = (TH + 2) * W + 2     # tile + 1-row halo top/bottom + 2 corners

    def kernel(mid_ref, top_ref, bot_ref, w_ref, b_ref, o_ref, buf, acc):
        j = pl.program_id(1)

        # ---- stage tile + halo rows into the flat halo buffer --------------
        buf[W + 1:W + 1 + TW, :] = mid_ref[...]

        @pl.when(j > 0)
        def _():
            buf[1:1 + W, :] = top_ref[TW - W:TW, :]        # image row r0-1

        @pl.when(j == 0)
        def _():
            buf[1:1 + W, :] = jnp.zeros((W, C), dtype)

        @pl.when(j < nrb - 1)
        def _():
            buf[W + 1 + TW:W + 1 + TW + W, :] = bot_ref[0:W, :]  # row r0+TH

        @pl.when(j == nrb - 1)
        def _():
            buf[W + 1 + TW:W + 1 + TW + W, :] = jnp.zeros((W, C), dtype)

        # Corner pad elements: only ever read through masked lanes, but keep
        # them deterministically zero so stale VMEM can never leak through.
        buf[0:1, :] = jnp.zeros((1, C), dtype)
        buf[PADROWS - 1:PADROWS, :] = jnp.zeros((1, C), dtype)

        # ---- masks killing the horizontally wrapped rows --------------------
        col = jax.lax.broadcasted_iota(jnp.int32, (TW, 1), 0) % W
        mask_l = col != 0
        mask_r = col != (W - 1)

        # ---- 9-tap accumulation in the per-tile f32 scratch ------------------
        for dy in range(3):
            for dx in range(3):
                off = dy * W + dx
                win = buf[off:off + TW, :]
                if dx == 0:
                    win = jnp.where(mask_l, win, 0.0)
                elif dx == 2:
                    win = jnp.where(mask_r, win, 0.0)
                part = jnp.dot(win, w_ref[dy * 3 + dx],
                               preferred_element_type=jnp.float32)
                if dy == 0 and dx == 0:
                    acc[...] = part
                else:
                    acc[...] = acc[...] + part

        o_ref[...] = (acc[...] + b_ref[...]).astype(o_ref.dtype)

    return kernel


def conv3x3_flat(x_flat, H, W, w9, b, *, target_rows=2048):
    """x_flat: (N, H*W, C) bf16; w9: (9, C, COUT) bf16; b: (COUT,) f32."""
    Nb, HW, C = x_flat.shape
    assert HW == H * W
    COUT = w9.shape[2]
    TH = _pick_row_tile(H, W, target_rows)
    nrb = H // TH
    TW = TH * W
    PADROWS = (TH + 2) * W + 2
    kernel = _make_conv3x3_kernel(W, C, COUT, TH, nrb, x_flat.dtype)
    return pl.pallas_call(
        kernel,
        out_shape=jax.ShapeDtypeStruct((Nb, HW, COUT), jnp.bfloat16),
        grid=(Nb, nrb),
        in_specs=[
            # current tile
            pl.BlockSpec((None, TW, C), lambda n, j: (n, j, 0)),
            # previous / next row-block (clamped) -> supplies the 1-row halos
            pl.BlockSpec((None, TW, C),
                         lambda n, j: (n, jnp.maximum(j - 1, 0), 0)),
            pl.BlockSpec((None, TW, C),
                         lambda n, j: (n, jnp.minimum(j + 1, nrb - 1), 0)),
            pl.BlockSpec((9, C, COUT), lambda n, j: (0, 0, 0)),
            pl.BlockSpec((1, COUT), lambda n, j: (0, 0)),
        ],
        out_specs=pl.BlockSpec((None, TW, COUT), lambda n, j: (n, j, 0)),
        scratch_shapes=[
            pltpu.VMEM((PADROWS, C), x_flat.dtype),     # halo buffer
            pltpu.VMEM((TW, COUT), jnp.float32),        # f32 accumulator
        ],
        compiler_params=pltpu.CompilerParams(
            dimension_semantics=("parallel", "parallel"),
            vmem_limit_bytes=VMEM_LIMIT),
    )(x_flat, x_flat, x_flat, w9, b.reshape(1, COUT).astype(jnp.float32))


# ----------------------------------------------------------------------------
# Small glue ops (plain JAX: tiny tensors / pure data movement)
# ----------------------------------------------------------------------------
def adaptive_avg_pool_nhwc(x, size):
    """torch.nn.AdaptiveAvgPool2d on an (N, H, W, C) f32 input."""
    N, H, W, C = x.shape
    rows = []
    for i in range(size):
        h0 = (i * H) // size
        h1 = -((-(i + 1) * H) // size)
        cols = []
        for j in range(size):
            w0 = (j * W) // size
            w1 = -((-(j + 1) * W) // size)
            cols.append(jnp.mean(x[:, h0:h1, w0:w1, :], axis=(1, 2)))
        rows.append(jnp.stack(cols, axis=1))
    return jnp.stack(rows, axis=1)  # (N, size, size, C)


def bilinear_resize_nhwc(x, OH, OW, dtype=jnp.float32):
    """F.interpolate(mode='bilinear', align_corners=False) on NHWC."""
    N, H, W, C = x.shape
    x = x.astype(dtype)
    if (H, W) == (OH, OW):
        return x

    def src(o, i):
        s = (jnp.arange(o, dtype=jnp.float32) + 0.5) * (i / o) - 0.5
        s = jnp.maximum(s, 0.0)
        i0 = jnp.minimum(jnp.floor(s).astype(jnp.int32), i - 1)
        i1 = jnp.minimum(i0 + 1, i - 1)
        w1 = s - i0.astype(jnp.float32)
        return i0, i1, (1.0 - w1).astype(dtype), w1.astype(dtype)

    y0, y1, wy0, wy1 = src(OH, H)
    x0, x1, wx0, wx1 = src(OW, W)
    top = x[:, y0, :, :]
    bot = x[:, y1, :, :]
    rows = top * wy0[None, :, None, None] + bot * wy1[None, :, None, None]
    out = (rows[:, :, x0, :] * wx0[None, None, :, None]
           + rows[:, :, x1, :] * wx1[None, None, :, None])
    return out


def nearest_up2x_flat(x_flat, H, W):
    N, HW, C = x_flat.shape
    x = x_flat.reshape(N, H, W, C)
    x = jnp.repeat(jnp.repeat(x, 2, axis=1), 2, axis=2)
    return x.reshape(N, 4 * HW, C)


# ----------------------------------------------------------------------------
# Parameters: synthetic init in PyTorch layout, converted once to the padded
# matmul-friendly layouts used by the kernels (bf16 weights, f32 biases).
# ----------------------------------------------------------------------------
def _conv_params(key, cout, cin, k):
    kw, kb = jax.random.split(key)
    fan_in = cin * k * k
    w = jax.random.normal(kw, (cout, cin, k, k), jnp.float32) / jnp.sqrt(float(fan_in))
    b = jax.random.normal(kb, (cout,), jnp.float32) * 0.01
    return w, b


def init_encoder_params(key, in_channels, num_channels):
    ppm_ch = num_channels // 4
    sizes = (1, 2, 3, 6)
    CP = _round_up(num_channels, 128)  # lane-dense padded channel width
    keys = iter(jax.random.split(key, 64))

    def pad_cout_w(w2d):
        return jnp.pad(w2d, ((0, 0), (0, CP - w2d.shape[1]))).astype(jnp.bfloat16)

    def pad_cout_b(b):
        return jnp.pad(b, (0, CP - b.shape[0]))

    p = {"sizes": sizes, "num_channels": num_channels, "ppm_ch": ppm_ch,
         "cp": CP, "fpn_lateral": [], "fpn_output": []}

    for cin in reversed(in_channels):
        # lateral 1x1: (nc, cin, 1, 1) -> (cin, CP)
        w, b = _conv_params(next(keys), num_channels, cin, 1)
        p["fpn_lateral"].append((pad_cout_w(jnp.transpose(w[:, :, 0, 0])),
                                 pad_cout_b(b)))
        # output 3x3: (nc, nc, 3, 3) -> (9, CP, CP), tap order (ky, kx)
        w, b = _conv_params(next(keys), num_channels, num_channels, 3)
        w9 = jnp.transpose(w, (2, 3, 1, 0)).reshape(9, num_channels, num_channels)
        w9 = jnp.pad(w9, ((0, 0), (0, CP - num_channels), (0, CP - num_channels)))
        p["fpn_output"].append((w9.astype(jnp.bfloat16), pad_cout_b(b)))

    # PPM stage 1x1 convs stay tiny + in plain jnp: (nc, ppm_ch) f32
    p["ppm_stages"] = []
    for _ in sizes:
        w, b = _conv_params(next(keys), ppm_ch, num_channels, 1)
        p["ppm_stages"].append((jnp.transpose(w[:, :, 0, 0]), b))

    # PPM bottleneck, kept as K-blocks: [4*ppm_ch stage rows] and [nc feat rows].
    w, b = _conv_params(next(keys), num_channels,
                        num_channels + len(sizes) * ppm_ch, 1)
    w2 = jnp.transpose(w[:, :, 0, 0])                         # (4*pc + nc, nc)
    w_stage = pad_cout_w(w2[: len(sizes) * ppm_ch])           # (4*pc, CP)
    w_feat = pad_cout_w(jnp.pad(w2[len(sizes) * ppm_ch:],
                                ((0, CP - num_channels), (0, 0))))  # (CP, CP)
    p["ppm_bottleneck"] = (w_stage, w_feat, pad_cout_b(b))

    # Fusion 1x1, kept as three (CP, CP) K-blocks (cat never materialized).
    w, b = _conv_params(next(keys), num_channels, num_channels * 3, 1)
    w2 = jnp.transpose(w[:, :, 0, 0])                         # (3*nc, nc)
    blocks = [pad_cout_w(jnp.pad(w2[i * num_channels:(i + 1) * num_channels],
                                 ((0, CP - num_channels), (0, 0))))
              for i in range(3)]
    p["fusion"] = (blocks, pad_cout_b(b))
    return p


# ----------------------------------------------------------------------------
# Forward pass (mirrors InstanceContextEncoder.forward)
# ----------------------------------------------------------------------------
def ppm_forward(params, x_flat, H, W):
    """x_flat: (N, H*W, CP) bf16 -> (N, H*W, CP) bf16."""
    N, HW, CP = x_flat.shape
    nc = params["num_channels"]
    # one f32 cast / read of the coarsest map shared by all four pool sizes
    x4 = x_flat.reshape(N, H, W, CP).astype(jnp.float32)[..., :nc]
    priors = []
    for (w_s, b_s), size in zip(params["ppm_stages"], params["sizes"]):
        pooled = adaptive_avg_pool_nhwc(x4, size)                    # (N,s,s,nc)
        stage = jnp.maximum(jnp.einsum("nhwc,cd->nhwd", pooled, w_s) + b_s, 0.0)
        prior = bilinear_resize_nhwc(stage, H, W, dtype=jnp.bfloat16)
        priors.append(prior.reshape(N, HW, -1))
    prior_cat = jnp.concatenate(priors, axis=-1)                     # (N,HW,4*pc)
    w_stage, w_feat, bb = params["ppm_bottleneck"]
    out = matmul_bias([prior_cat.reshape(N * HW, -1),
                       x_flat.reshape(N * HW, CP)],
                      [w_stage, w_feat], bb, relu=True)
    return out.reshape(N, HW, CP)


def instance_context_encoder(params, features, row_block_target=2048):
    """features: list ordered like cfg IN_FEATURES (fine -> coarse), NCHW f32."""
    nc = params["num_channels"]
    CP = params["cp"]

    # --- entry: NCHW -> flattened NHWC bf16, once per backbone feature -------
    feats = []
    for f in features[::-1]:                                   # coarse -> fine
        n, c, h, w = f.shape
        feats.append((jnp.transpose(f, (0, 2, 3, 1))
                      .reshape(n, h * w, c).astype(jnp.bfloat16), h, w))

    # --- coarsest level: lateral 1x1 -> PPM -> output 3x3 --------------------
    x0, h0, w0 = feats[0]
    N = x0.shape[0]
    wl, bl = params["fpn_lateral"][0]
    lat0 = matmul_bias(x0.reshape(-1, x0.shape[-1]), wl, bl).reshape(N, h0 * w0, CP)
    prev = ppm_forward(params, lat0, h0, w0)
    wo, bo = params["fpn_output"][0]
    outputs = [(conv3x3_flat(prev, h0, w0, wo, bo,
                             target_rows=row_block_target), h0, w0)]
    prev_h, prev_w = h0, w0

    # --- remaining FPN levels (fine direction) --------------------------------
    for lvl in range(1, len(feats)):
        xi, hi, wi = feats[lvl]
        assert hi == 2 * prev_h and wi == 2 * prev_w
        # TODO(synk): fuse this nearest-2x expand into the lateral matmul's
        # residual read to remove one full-resolution HBM round trip per level.
        top_down = nearest_up2x_flat(prev, prev_h, prev_w)     # (N, hi*wi, CP)
        wl, bl = params["fpn_lateral"][lvl]
        lat = matmul_bias(xi.reshape(-1, xi.shape[-1]), wl, bl,
                          residual=top_down.reshape(-1, CP))
        prev = lat.reshape(N, hi * wi, CP)
        prev_h, prev_w = hi, wi
        wo, bo = params["fpn_output"][lvl]
        outputs.insert(0, (conv3x3_flat(prev, hi, wi, wo, bo,
                                        target_rows=row_block_target), hi, wi))

    # --- multi-scale fusion (K-split, no channel concat in HBM) ---------------
    o0, H0, W0 = outputs[0]
    xs = [o0.reshape(N * H0 * W0, CP)]
    for o, h, w in outputs[1:]:
        r = bilinear_resize_nhwc(o.reshape(N, h, w, CP), H0, W0,
                                 dtype=jnp.bfloat16)
        xs.append(r.reshape(N * H0 * W0, CP))
    wfs, bf = params["fusion"]
    fused = matmul_bias(xs, wfs, bf, out_dtype=jnp.float32)

    # --- exit: slice real channels, back to NCHW once -------------------------
    fused = fused.reshape(N, H0, W0, CP)[..., :nc]
    return jnp.transpose(fused, (0, 3, 1, 2))


# ----------------------------------------------------------------------------
if __name__ == "__main__":
    key = jax.random.PRNGKey(0)
    k_feat, k_par, k_chk = jax.random.split(key, 3)

    # small synthetic backbone features: p3/p4/p5 (channels grow, spatial halves)
    in_channels = [8, 16, 32]
    spatial = [(16, 16), (8, 8), (4, 4)]
    num_channels = 32
    batch = 2

    fkeys = jax.random.split(k_feat, len(in_channels))
    features = [
        jax.random.normal(fk, (batch, c, h, w), jnp.float32)
        for fk, c, (h, w) in zip(fkeys, in_channels, spatial)
    ]

    params = init_encoder_params(k_par, in_channels, num_channels)

    # --- quick self-check of the row-tiled 3x3 conv (exercises the halo path) -
    Hc, Wc, Cc = 16, 16, 128
    xk, wk = jax.random.split(k_chk)
    x_chk = jax.random.normal(xk, (1, Hc * Wc, Cc), jnp.float32).astype(jnp.bfloat16)
    w_chk = (jax.random.normal(wk, (9, Cc, Cc), jnp.float32) * 0.05).astype(jnp.bfloat16)
    b_chk = jnp.zeros((Cc,), jnp.float32)
    got = conv3x3_flat(x_chk, Hc, Wc, w_chk, b_chk, target_rows=64)   # 4 row tiles
    xr = x_chk.astype(jnp.float32).reshape(1, Hc, Wc, Cc)
    wr = w_chk.astype(jnp.float32).reshape(3, 3, Cc, Cc)
    ref = jax.lax.conv_general_dilated(
        xr, wr, (1, 1), "SAME", dimension_numbers=("NHWC", "HWIO", "NHWC"))
    err = float(jnp.max(jnp.abs(got.astype(jnp.float32).reshape(1, Hc, Wc, Cc) - ref)))
    assert err < 0.2, f"conv3x3 row-tiled mismatch: {err}"

    # --- full encoder forward (row_block_target=64 forces multi-tile conv3x3) -
    fwd = jax.jit(functools.partial(instance_context_encoder, params,
                                    row_block_target=64))
    out = jax.block_until_ready(fwd(features))
    assert out.shape == (batch, num_channels, spatial[0][0], spatial[0][1])
    assert out.dtype == jnp.float32
    print("KERNEL_OK")
</pallas_src>

<mosaic_0001>
module attributes {stable_mosaic.version = 11 : i64} {
  func.func @kernel(%arg0: i32, %arg1: i32, %arg2: memref<1x64x128xbf16, #tpu.memory_space<vmem>>, %arg3: memref<1x64x128xbf16, #tpu.memory_space<vmem>>, %arg4: memref<1x64x128xbf16, #tpu.memory_space<vmem>>, %arg5: memref<9x128x128xbf16, #tpu.memory_space<vmem>>, %arg6: memref<1x128xf32, #tpu.memory_space<vmem>>, %arg7: memref<1x64x128xbf16, #tpu.memory_space<vmem>>, %arg8: memref<98x128xbf16, #tpu.memory_space<vmem>>, %arg9: memref<64x128xf32, #tpu.memory_space<vmem>>) attributes {dimension_semantics = [#tpu.dimension_semantics<parallel>, #tpu.dimension_semantics<parallel>], iteration_bounds = array<i64: 1, 4>, scalar_prefetch = 0 : i64, scratch_operands = 2 : i64, tpu.core_type = #tpu.core_type<tc>, window_params = [{transform_indices = @transform_0, window_bounds = array<i64: 1, 64, 128>}, {transform_indices = @transform_1, window_bounds = array<i64: 1, 64, 128>}, {transform_indices = @transform_2, window_bounds = array<i64: 1, 64, 128>}, {pipeline_mode = #tpu.pipeline_mode<synchronous>, transform_indices = @transform_3, window_bounds = array<i64: 9, 128, 128>}, {pipeline_mode = #tpu.pipeline_mode<synchronous>, transform_indices = @transform_4, window_bounds = array<i64: 1, 128>}, {transform_indices = @transform_5, window_bounds = array<i64: 1, 64, 128>}]} {
    %c0 = arith.constant 0 : index
    %c0_0 = arith.constant 0 : index
    %c0_1 = arith.constant 0 : index
    %0 = vector.load %arg2[%c0, %c0_0, %c0_1] : memref<1x64x128xbf16, #tpu.memory_space<vmem>>, vector<1x64x128xbf16>
    %1 = vector.shape_cast %0 : vector<1x64x128xbf16> to vector<64x128xbf16>
    %c17 = arith.constant 17 : index
    %c0_2 = arith.constant 0 : index
    %2 = vector.load %arg8[%c17, %c0_2] : memref<98x128xbf16, #tpu.memory_space<vmem>>, vector<64x128xbf16>
    tpu.vector_store %arg8[%c17, %c0_2], %1 {strides = array<i32>} : memref<98x128xbf16, #tpu.memory_space<vmem>>, vector<64x128xbf16>,
    %c0_i32 = arith.constant 0 : i32
    %3 = arith.cmpi sgt, %arg1, %c0_i32 : i32
    %4 = arith.extui %3 : i1 to i32
    %c0_i32_3 = arith.constant 0 : i32
    %5 = arith.cmpi ne, %4, %c0_i32_3 : i32
    scf.if %5 {
      %c0_106 = arith.constant 0 : index
      %c48 = arith.constant 48 : index
      %c0_107 = arith.constant 0 : index
      %139 = vector.load %arg3[%c0_106, %c48, %c0_107] : memref<1x64x128xbf16, #tpu.memory_space<vmem>>, vector<1x16x128xbf16>
      %140 = vector.shape_cast %139 : vector<1x16x128xbf16> to vector<16x128xbf16>
      %c1_108 = arith.constant 1 : index
      %c0_109 = arith.constant 0 : index
      %141 = vector.load %arg8[%c1_108, %c0_109] : memref<98x128xbf16, #tpu.memory_space<vmem>>, vector<16x128xbf16>
      tpu.vector_store %arg8[%c1_108, %c0_109], %140 {strides = array<i32>} : memref<98x128xbf16, #tpu.memory_space<vmem>>, vector<16x128xbf16>,
    } else {
    }
    %c0_i32_4 = arith.constant 0 : i32
    %6 = arith.cmpi eq, %arg1, %c0_i32_4 : i32
    %7 = arith.extui %6 : i1 to i32
    %c0_i32_5 = arith.constant 0 : i32
    %8 = arith.cmpi ne, %7, %c0_i32_5 : i32
    scf.if %8 {
      %cst_106 = arith.constant 0.000000e+00 : bf16
      %139 = vector.broadcast %cst_106 : bf16 to vector<16x128xbf16>
      %c1_107 = arith.constant 1 : index
      %c0_108 = arith.constant 0 : index
      %140 = vector.load %arg8[%c1_107, %c0_108] : memref<98x128xbf16, #tpu.memory_space<vmem>>, vector<16x128xbf16>
      tpu.vector_store %arg8[%c1_107, %c0_108], %139 {strides = array<i32>} : memref<98x128xbf16, #tpu.memory_space<vmem>>, vector<16x128xbf16>,
    } else {
    }
    %c3_i32 = arith.constant 3 : i32
    %9 = arith.cmpi slt, %arg1, %c3_i32 : i32
    %10 = arith.extui %9 : i1 to i32
    %c0_i32_6 = arith.constant 0 : i32
    %11 = arith.cmpi ne, %10, %c0_i32_6 : i32
    scf.if %11 {
      %c0_106 = arith.constant 0 : index
      %c0_107 = arith.constant 0 : index
      %c0_108 = arith.constant 0 : index
      %139 = vector.load %arg4[%c0_106, %c0_107, %c0_108] : memref<1x64x128xbf16, #tpu.memory_space<vmem>>, vector<1x16x128xbf16>
      %140 = vector.shape_cast %139 : vector<1x16x128xbf16> to vector<16x128xbf16>
      %c81 = arith.constant 81 : index
      %c0_109 = arith.constant 0 : index
      %141 = vector.load %arg8[%c81, %c0_109] : memref<98x128xbf16, #tpu.memory_space<vmem>>, vector<16x128xbf16>
      tpu.vector_store %arg8[%c81, %c0_109], %140 {strides = array<i32>} : memref<98x128xbf16, #tpu.memory_space<vmem>>, vector<16x128xbf16>,
    } else {
    }
    %c3_i32_7 = arith.constant 3 : i32
    %12 = arith.cmpi eq, %arg1, %c3_i32_7 : i32
    %13 = arith.extui %12 : i1 to i32
    %c0_i32_8 = arith.constant 0 : i32
    %14 = arith.cmpi ne, %13, %c0_i32_8 : i32
    scf.if %14 {
      %cst_106 = arith.constant 0.000000e+00 : bf16
      %139 = vector.broadcast %cst_106 : bf16 to vector<16x128xbf16>
      %c81 = arith.constant 81 : index
      %c0_107 = arith.constant 0 : index
      %140 = vector.load %arg8[%c81, %c0_107] : memref<98x128xbf16, #tpu.memory_space<vmem>>, vector<16x128xbf16>
      tpu.vector_store %arg8[%c81, %c0_107], %139 {strides = array<i32>} : memref<98x128xbf16, #tpu.memory_space<vmem>>, vector<16x128xbf16>,
    } else {
    }
    %cst = arith.constant 0.000000e+00 : bf16
    %15 = vector.broadcast %cst : bf16 to vector<1x128xbf16>
    %c0_9 = arith.constant 0 : index
    %c0_10 = arith.constant 0 : index
    %16 = vector.load %arg8[%c0_9, %c0_10] : memref<98x128xbf16, #tpu.memory_space<vmem>>, vector<1x128xbf16>
    tpu.vector_store %arg8[%c0_9, %c0_10], %15 {strides = array<i32>} : memref<98x128xbf16, #tpu.memory_space<vmem>>, vector<1x128xbf16>,
    %cst_11 = arith.constant 0.000000e+00 : bf16
    %17 = vector.broadcast %cst_11 : bf16 to vector<1x128xbf16>
    %c97 = arith.constant 97 : index
    %c0_12 = arith.constant 0 : index
    %18 = vector.load %arg8[%c97, %c0_12] : memref<98x128xbf16, #tpu.memory_space<vmem>>, vector<1x128xbf16>
    tpu.vector_store %arg8[%c97, %c0_12], %17 {strides = array<i32>} : memref<98x128xbf16, #tpu.memory_space<vmem>>, vector<1x128xbf16>,
    %19 = tpu.iota {dimensions = array<i32: 0>} : vector<64x1xi32>
    %c16_i32 = arith.constant 16 : i32
    %c0_i32_13 = arith.constant 0 : i32
    %20 = arith.cmpi eq, %c16_i32, %c0_i32_13 : i32
    %c1_i32 = arith.constant 1 : i32
    %21 = arith.select %20, %c1_i32, %c16_i32 : i32
    %22 = vector.broadcast %21 : i32 to vector<64x1xi32>
    %23 = arith.remsi %19, %22 : vector<64x1xi32>
    %c0_i32_14 = arith.constant 0 : i32
    %24 = vector.broadcast %c0_i32_14 : i32 to vector<64x1xi32>
    %25 = arith.cmpi ne, %23, %24 : vector<64x1xi32>
    %c0_i32_15 = arith.constant 0 : i32
    %26 = vector.broadcast %c0_i32_15 : i32 to vector<64x1xi32>
    %27 = arith.cmpi slt, %23, %26 : vector<64x1xi32>
    %c0_i32_16 = arith.constant 0 : i32
    %28 = arith.cmpi slt, %21, %c0_i32_16 : i32
    %29 = vector.broadcast %28 : i1 to vector<64x1xi1>
    %30 = vector.broadcast %29 : vector<64x1xi1> to vector<64x1xi1>
    %31 = arith.xori %27, %30 : vector<64x1xi1>
    %32 = arith.andi %31, %25 : vector<64x1xi1>
    %33 = vector.broadcast %21 : i32 to vector<64x1xi32>
    %34 = arith.addi %23, %33 : vector<64x1xi32>
    %35 = arith.select %32, %34, %23 : vector<64x1xi1>, vector<64x1xi32>
    %c0_i32_17 = arith.constant 0 : i32
    %36 = vector.broadcast %c0_i32_17 : i32 to vector<64x1xi32>
    %37 = arith.cmpi ne, %35, %36 : vector<64x1xi32>
    %c15_i32 = arith.constant 15 : i32
    %38 = vector.broadcast %c15_i32 : i32 to vector<64x1xi32>
    %39 = arith.cmpi ne, %35, %38 : vector<64x1xi32>
    %c0_18 = arith.constant 0 : index
    %c0_19 = arith.constant 0 : index
    %40 = vector.load %arg8[%c0_18, %c0_19] : memref<98x128xbf16, #tpu.memory_space<vmem>>, vector<64x128xbf16>
    %cst_20 = arith.constant 0.000000e+00 : f32
    %41 = arith.truncf %cst_20 : f32 to bf16
    %42 = vector.shape_cast %37 : vector<64x1xi1> to vector<64x1xi1>
    %43 = vector.broadcast %42 : vector<64x1xi1> to vector<64x128xi1>
    %44 = vector.broadcast %41 : bf16 to vector<64x128xbf16>
    %45 = arith.select %43, %40, %44 : vector<64x128xi1>, vector<64x128xbf16>
    %c0_21 = arith.constant 0 : index
    %c0_22 = arith.constant 0 : index
    %c0_23 = arith.constant 0 : index
    %46 = vector.load %arg5[%c0_21, %c0_22, %c0_23] : memref<9x128x128xbf16, #tpu.memory_space<vmem>>, vector<1x128x128xbf16>
    %47 = vector.shape_cast %46 : vector<1x128x128xbf16> to vector<128x128xbf16>
    %cst_24 = arith.constant dense<0.000000e+00> : vector<64x128xf32>
    %48 = tpu.matmul %45, %47, %cst_24 {dimension_numbers = #tpu.dot_dimension_numbers<[1], [0], [0], [1], [0, 0, 1, 1], [], []>} : vector<64x128xbf16>, vector<128x128xbf16>, vector<64x128xf32> -> vector<64x128xf32>
    %c0_25 = arith.constant 0 : index
    %c0_26 = arith.constant 0 : index
    %49 = vector.load %arg9[%c0_25, %c0_26] : memref<64x128xf32, #tpu.memory_space<vmem>>, vector<64x128xf32>
    tpu.vector_store %arg9[%c0_25, %c0_26], %48 {strides = array<i32>} : memref<64x128xf32, #tpu.memory_space<vmem>>, vector<64x128xf32>,
    %c1 = arith.constant 1 : index
    %c0_27 = arith.constant 0 : index
    %50 = vector.load %arg8[%c1, %c0_27] : memref<98x128xbf16, #tpu.memory_space<vmem>>, vector<64x128xbf16>
    %c1_28 = arith.constant 1 : index
    %c0_29 = arith.constant 0 : index
    %c0_30 = arith.constant 0 : index
    %51 = vector.load %arg5[%c1_28, %c0_29, %c0_30] : memref<9x128x128xbf16, #tpu.memory_space<vmem>>, vector<1x128x128xbf16>
    %52 = vector.shape_cast %51 : vector<1x128x128xbf16> to vector<128x128xbf16>
    %cst_31 = arith.constant dense<0.000000e+00> : vector<64x128xf32>
    %53 = tpu.matmul %50, %52, %cst_31 {dimension_numbers = #tpu.dot_dimension_numbers<[1], [0], [0], [1], [0, 0, 1, 1], [], []>} : vector<64x128xbf16>, vector<128x128xbf16>, vector<64x128xf32> -> vector<64x128xf32>
    %c0_32 = arith.constant 0 : index
    %c0_33 = arith.constant 0 : index
    %54 = vector.load %arg9[%c0_32, %c0_33] : memref<64x128xf32, #tpu.memory_space<vmem>>, vector<64x128xf32>
    %55 = arith.addf %54, %53 : vector<64x128xf32>
    %c0_34 = arith.constant 0 : index
    %c0_35 = arith.constant 0 : index
    %56 = vector.load %arg9[%c0_34, %c0_35] : memref<64x128xf32, #tpu.memory_space<vmem>>, vector<64x128xf32>
    tpu.vector_store %arg9[%c0_34, %c0_35], %55 {strides = array<i32>} : memref<64x128xf32, #tpu.memory_space<vmem>>, vector<64x128xf32>,
    %c2 = arith.constant 2 : index
    %c0_36 = arith.constant 0 : index
    %57 = vector.load %arg8[%c2, %c0_36] : memref<98x128xbf16, #tpu.memory_space<vmem>>, vector<64x128xbf16>
    %cst_37 = arith.constant 0.000000e+00 : f32
    %58 = arith.truncf %cst_37 : f32 to bf16
    %59 = vector.shape_cast %39 : vector<64x1xi1> to vector<64x1xi1>
    %60 = vector.broadcast %59 : vector<64x1xi1> to vector<64x128xi1>
    %61 = vector.broadcast %58 : bf16 to vector<64x128xbf16>
    %62 = arith.select %60, %57, %61 : vector<64x128xi1>, vector<64x128xbf16>
    %c2_38 = arith.constant 2 : index
    %c0_39 = arith.constant 0 : index
    %c0_40 = arith.constant 0 : index
    %63 = vector.load %arg5[%c2_38, %c0_39, %c0_40] : memref<9x128x128xbf16, #tpu.memory_space<vmem>>, vector<1x128x128xbf16>
    %64 = vector.shape_cast %63 : vector<1x128x128xbf16> to vector<128x128xbf16>
    %cst_41 = arith.constant dense<0.000000e+00> : vector<64x128xf32>
    %65 = tpu.matmul %62, %64, %cst_41 {dimension_numbers = #tpu.dot_dimension_numbers<[1], [0], [0], [1], [0, 0, 1, 1], [], []>} : vector<64x128xbf16>, vector<128x128xbf16>, vector<64x128xf32> -> vector<64x128xf32>
    %c0_42 = arith.constant 0 : index
    %c0_43 = arith.constant 0 : index
    %66 = vector.load %arg9[%c0_42, %c0_43] : memref<64x128xf32, #tpu.memory_space<vmem>>, vector<64x128xf32>
    %67 = arith.addf %66, %65 : vector<64x128xf32>
    %c0_44 = arith.constant 0 : index
    %c0_45 = arith.constant 0 : index
    %68 = vector.load %arg9[%c0_44, %c0_45] : memref<64x128xf32, #tpu.memory_space<vmem>>, vector<64x128xf32>
    tpu.vector_store %arg9[%c0_44, %c0_45], %67 {strides = array<i32>} : memref<64x128xf32, #tpu.memory_space<vmem>>, vector<64x128xf32>,
    %c16 = arith.constant 16 : index
    %c0_46 = arith.constant 0 : index
    %69 = vector.load %arg8[%c16, %c0_46] : memref<98x128xbf16, #tpu.memory_space<vmem>>, vector<64x128xbf16>
    %cst_47 = arith.constant 0.000000e+00 : f32
    %70 = arith.truncf %cst_47 : f32 to bf16
    %71 = vector.shape_cast %37 : vector<64x1xi1> to vector<64x1xi1>
    %72 = vector.broadcast %71 : vector<64x1xi1> to vector<64x128xi1>
    %73 = vector.broadcast %70 : bf16 to vector<64x128xbf16>
    %74 = arith.select %72, %69, %73 : vector<64x128xi1>, vector<64x128xbf16>
    %c3 = arith.constant 3 : index
    %c0_48 = arith.constant 0 : index
    %c0_49 = arith.constant 0 : index
    %75 = vector.load %arg5[%c3, %c0_48, %c0_49] : memref<9x128x128xbf16, #tpu.memory_space<vmem>>, vector<1x128x128xbf16>
    %76 = vector.shape_cast %75 : vector<1x128x128xbf16> to vector<128x128xbf16>
    %cst_50 = arith.constant dense<0.000000e+00> : vector<64x128xf32>
    %77 = tpu.matmul %74, %76, %cst_50 {dimension_numbers = #tpu.dot_dimension_numbers<[1], [0], [0], [1], [0, 0, 1, 1], [], []>} : vector<64x128xbf16>, vector<128x128xbf16>, vector<64x128xf32> -> vector<64x128xf32>
    %c0_51 = arith.constant 0 : index
    %c0_52 = arith.constant 0 : index
    %78 = vector.load %arg9[%c0_51, %c0_52] : memref<64x128xf32, #tpu.memory_space<vmem>>, vector<64x128xf32>
    %79 = arith.addf %78, %77 : vector<64x128xf32>
    %c0_53 = arith.constant 0 : index
    %c0_54 = arith.constant 0 : index
    %80 = vector.load %arg9[%c0_53, %c0_54] : memref<64x128xf32, #tpu.memory_space<vmem>>, vector<64x128xf32>
    tpu.vector_store %arg9[%c0_53, %c0_54], %79 {strides = array<i32>} : memref<64x128xf32, #tpu.memory_space<vmem>>, vector<64x128xf32>,
    %c17_55 = arith.constant 17 : index
    %c0_56 = arith.constant 0 : index
    %81 = vector.load %arg8[%c17_55, %c0_56] : memref<98x128xbf16, #tpu.memory_space<vmem>>, vector<64x128xbf16>
    %c4 = arith.constant 4 : index
    %c0_57 = arith.constant 0 : index
    %c0_58 = arith.constant 0 : index
    %82 = vector.load %arg5[%c4, %c0_57, %c0_58] : memref<9x128x128xbf16, #tpu.memory_space<vmem>>, vector<1x128x128xbf16>
    %83 = vector.shape_cast %82 : vector<1x128x128xbf16> to vector<128x128xbf16>
    %cst_59 = arith.constant dense<0.000000e+00> : vector<64x128xf32>
    %84 = tpu.matmul %81, %83, %cst_59 {dimension_numbers = #tpu.dot_dimension_numbers<[1], [0], [0], [1], [0, 0, 1, 1], [], []>} : vector<64x128xbf16>, vector<128x128xbf16>, vector<64x128xf32> -> vector<64x128xf32>
    %c0_60 = arith.constant 0 : index
    %c0_61 = arith.constant 0 : index
    %85 = vector.load %arg9[%c0_60, %c0_61] : memref<64x128xf32, #tpu.memory_space<vmem>>, vector<64x128xf32>
    %86 = arith.addf %85, %84 : vector<64x128xf32>
    %c0_62 = arith.constant 0 : index
    %c0_63 = arith.constant 0 : index
    %87 = vector.load %arg9[%c0_62, %c0_63] : memref<64x128xf32, #tpu.memory_space<vmem>>, vector<64x128xf32>
    tpu.vector_store %arg9[%c0_62, %c0_63], %86 {strides = array<i32>} : memref<64x128xf32, #tpu.memory_space<vmem>>, vector<64x128xf32>,
    %c18 = arith.constant 18 : index
    %c0_64 = arith.constant 0 : index
    %88 = vector.load %arg8[%c18, %c0_64] : memref<98x128xbf16, #tpu.memory_space<vmem>>, vector<64x128xbf16>
    %cst_65 = arith.constant 0.000000e+00 : f32
    %89 = arith.truncf %cst_65 : f32 to bf16
    %90 = vector.shape_cast %39 : vector<64x1xi1> to vector<64x1xi1>
    %91 = vector.broadcast %90 : vector<64x1xi1> to vector<64x128xi1>
    %92 = vector.broadcast %89 : bf16 to vector<64x128xbf16>
    %93 = arith.select %91, %88, %92 : vector<64x128xi1>, vector<64x128xbf16>
    %c5 = arith.constant 5 : index
    %c0_66 = arith.constant 0 : index
    %c0_67 = arith.constant 0 : index
    %94 = vector.load %arg5[%c5, %c0_66, %c0_67] : memref<9x128x128xbf16, #tpu.memory_space<vmem>>, vector<1x128x128xbf16>
    %95 = vector.shape_cast %94 : vector<1x128x128xbf16> to vector<128x128xbf16>
    %cst_68 = arith.constant dense<0.000000e+00> : vector<64x128xf32>
    %96 = tpu.matmul %93, %95, %cst_68 {dimension_numbers = #tpu.dot_dimension_numbers<[1], [0], [0], [1], [0, 0, 1, 1], [], []>} : vector<64x128xbf16>, vector<128x128xbf16>, vector<64x128xf32> -> vector<64x128xf32>
    %c0_69 = arith.constant 0 : index
    %c0_70 = arith.constant 0 : index
    %97 = vector.load %arg9[%c0_69, %c0_70] : memref<64x128xf32, #tpu.memory_space<vmem>>, vector<64x128xf32>
    %98 = arith.addf %97, %96 : vector<64x128xf32>
    %c0_71 = arith.constant 0 : index
    %c0_72 = arith.constant 0 : index
    %99 = vector.load %arg9[%c0_71, %c0_72] : memref<64x128xf32, #tpu.memory_space<vmem>>, vector<64x128xf32>
    tpu.vector_store %arg9[%c0_71, %c0_72], %98 {strides = array<i32>} : memref<64x128xf32, #tpu.memory_space<vmem>>, vector<64x128xf32>,
    %c32 = arith.constant 32 : index
    %c0_73 = arith.constant 0 : index
    %100 = vector.load %arg8[%c32, %c0_73] : memref<98x128xbf16, #tpu.memory_space<vmem>>, vector<64x128xbf16>
    %cst_74 = arith.constant 0.000000e+00 : f32
    %101 = arith.truncf %cst_74 : f32 to bf16
    %102 = vector.shape_cast %37 : vector<64x1xi1> to vector<64x1xi1>
    %103 = vector.broadcast %102 : vector<64x1xi1> to vector<64x128xi1>
    %104 = vector.broadcast %101 : bf16 to vector<64x128xbf16>
    %105 = arith.select %103, %100, %104 : vector<64x128xi1>, vector<64x128xbf16>
    %c6 = arith.constant 6 : index
    %c0_75 = arith.constant 0 : index
    %c0_76 = arith.constant 0 : index
    %106 = vector.load %arg5[%c6, %c0_75, %c0_76] : memref<9x128x128xbf16, #tpu.memory_space<vmem>>, vector<1x128x128xbf16>
    %107 = vector.shape_cast %106 : vector<1x128x128xbf16> to vector<128x128xbf16>
    %cst_77 = arith.constant dense<0.000000e+00> : vector<64x128xf32>
    %108 = tpu.matmul %105, %107, %cst_77 {dimension_numbers = #tpu.dot_dimension_numbers<[1], [0], [0], [1], [0, 0, 1, 1], [], []>} : vector<64x128xbf16>, vector<128x128xbf16>, vector<64x128xf32> -> vector<64x128xf32>
    %c0_78 = arith.constant 0 : index
    %c0_79 = arith.constant 0 : index
    %109 = vector.load %arg9[%c0_78, %c0_79] : memref<64x128xf32, #tpu.memory_space<vmem>>, vector<64x128xf32>
    %110 = arith.addf %109, %108 : vector<64x128xf32>
    %c0_80 = arith.constant 0 : index
    %c0_81 = arith.constant 0 : index
    %111 = vector.load %arg9[%c0_80, %c0_81] : memref<64x128xf32, #tpu.memory_space<vmem>>, vector<64x128xf32>
    tpu.vector_store %arg9[%c0_80, %c0_81], %110 {strides = array<i32>} : memref<64x128xf32, #tpu.memory_space<vmem>>, vector<64x128xf32>,
    %c33 = arith.constant 33 : index
    %c0_82 = arith.constant 0 : index
    %112 = vector.load %arg8[%c33, %c0_82] : memref<98x128xbf16, #tpu.memory_space<vmem>>, vector<64x128xbf16>
    %c7 = arith.constant 7 : index
    %c0_83 = arith.constant 0 : index
    %c0_84 = arith.constant 0 : index
    %113 = vector.load %arg5[%c7, %c0_83, %c0_84] : memref<9x128x128xbf16, #tpu.memory_space<vmem>>, vector<1x128x128xbf16>
    %114 = vector.shape_cast %113 : vector<1x128x128xbf16> to vector<128x128xbf16>
    %cst_85 = arith.constant dense<0.000000e+00> : vector<64x128xf32>
    %115 = tpu.matmul %112, %114, %cst_85 {dimension_numbers = #tpu.dot_dimension_numbers<[1], [0], [0], [1], [0, 0, 1, 1], [], []>} : vector<64x128xbf16>, vector<128x128xbf16>, vector<64x128xf32> -> vector<64x128xf32>
    %c0_86 = arith.constant 0 : index
    %c0_87 = arith.constant 0 : index
    %116 = vector.load %arg9[%c0_86, %c0_87] : memref<64x128xf32, #tpu.memory_space<vmem>>, vector<64x128xf32>
    %117 = arith.addf %116, %115 : vector<64x128xf32>
    %c0_88 = arith.constant 0 : index
    %c0_89 = arith.constant 0 : index
    %118 = vector.load %arg9[%c0_88, %c0_89] : memref<64x128xf32, #tpu.memory_space<vmem>>, vector<64x128xf32>
    tpu.vector_store %arg9[%c0_88, %c0_89], %117 {strides = array<i32>} : memref<64x128xf32, #tpu.memory_space<vmem>>, vector<64x128xf32>,
    %c34 = arith.constant 34 : index
    %c0_90 = arith.constant 0 : index
    %119 = vector.load %arg8[%c34, %c0_90] : memref<98x128xbf16, #tpu.memory_space<vmem>>, vector<64x128xbf16>
    %cst_91 = arith.constant 0.000000e+00 : f32
    %120 = arith.truncf %cst_91 : f32 to bf16
    %121 = vector.shape_cast %39 : vector<64x1xi1> to vector<64x1xi1>
    %122 = vector.broadcast %121 : vector<64x1xi1> to vector<64x128xi1>
    %123 = vector.broadcast %120 : bf16 to vector<64x128xbf16>
    %124 = arith.select %122, %119, %123 : vector<64x128xi1>, vector<64x128xbf16>
    %c8 = arith.constant 8 : index
    %c0_92 = arith.constant 0 : index
    %c0_93 = arith.constant 0 : index
    %125 = vector.load %arg5[%c8, %c0_92, %c0_93] : memref<9x128x128xbf16, #tpu.memory_space<vmem>>, vector<1x128x128xbf16>
    %126 = vector.shape_cast %125 : vector<1x128x128xbf16> to vector<128x128xbf16>
    %cst_94 = arith.constant dense<0.000000e+00> : vector<64x128xf32>
    %127 = tpu.matmul %124, %126, %cst_94 {dimension_numbers = #tpu.dot_dimension_numbers<[1], [0], [0], [1], [0, 0, 1, 1], [], []>} : vector<64x128xbf16>, vector<128x128xbf16>, vector<64x128xf32> -> vector<64x128xf32>
    %c0_95 = arith.constant 0 : index
    %c0_96 = arith.constant 0 : index
    %128 = vector.load %arg9[%c0_95, %c0_96] : memref<64x128xf32, #tpu.memory_space<vmem>>, vector<64x128xf32>
    %129 = arith.addf %128, %127 : vector<64x128xf32>
    %c0_97 = arith.constant 0 : index
    %c0_98 = arith.constant 0 : index
    %130 = vector.load %arg9[%c0_97, %c0_98] : memref<64x128xf32, #tpu.memory_space<vmem>>, vector<64x128xf32>
    tpu.vector_store %arg9[%c0_97, %c0_98], %129 {strides = array<i32>} : memref<64x128xf32, #tpu.memory_space<vmem>>, vector<64x128xf32>,
    %c0_99 = arith.constant 0 : index
    %c0_100 = arith.constant 0 : index
    %131 = vector.load %arg9[%c0_99, %c0_100] : memref<64x128xf32, #tpu.memory_space<vmem>>, vector<64x128xf32>
    %c0_101 = arith.constant 0 : index
    %c0_102 = arith.constant 0 : index
    %132 = vector.load %arg6[%c0_101, %c0_102] : memref<1x128xf32, #tpu.memory_space<vmem>>, vector<1x128xf32>
    %133 = vector.broadcast %132 : vector<1x128xf32> to vector<64x128xf32>
    %134 = arith.addf %131, %133 : vector<64x128xf32>
    %135 = arith.truncf %134 : vector<64x128xf32> to vector<64x128xbf16>
    %c0_103 = arith.constant 0 : index
    %c0_104 = arith.constant 0 : index
    %c0_105 = arith.constant 0 : index
    %136 = vector.load %arg7[%c0_103, %c0_104, %c0_105] : memref<1x64x128xbf16, #tpu.memory_space<vmem>>, vector<1x64x128xbf16>
    %137 = vector.shape_cast %136 : vector<1x64x128xbf16> to vector<64x128xbf16>
    %138 = vector.shape_cast %135 : vector<64x128xbf16> to vector<1x64x128xbf16>
    tpu.vector_store %arg7[%c0_103, %c0_104, %c0_105], %138 {strides = array<i32>} : memref<1x64x128xbf16, #tpu.memory_space<vmem>>, vector<1x64x128xbf16>,
    return
  }
  func.func @transform_0(%arg0: i32, %arg1: i32) -> (i32, i32, i32) {
    %c0_i32 = arith.constant 0 : i32
    %c0_i32_0 = arith.constant 0 : i32
    return %arg0, %arg1, %c0_i32 : i32, i32, i32
  }
  func.func @transform_1(%arg0: i32, %arg1: i32) -> (i32, i32, i32) {
    %c1_i32 = arith.constant 1 : i32
    %0 = arith.subi %arg1, %c1_i32 : i32
    %c0_i32 = arith.constant 0 : i32
    %1 = arith.maxsi %0, %c0_i32 : i32
    %c0_i32_0 = arith.constant 0 : i32
    %c0_i32_1 = arith.constant 0 : i32
    return %arg0, %1, %c0_i32_0 : i32, i32, i32
  }
  func.func @transform_2(%arg0: i32, %arg1: i32) -> (i32, i32, i32) {
    %c1_i32 = arith.constant 1 : i32
    %0 = arith.addi %arg1, %c1_i32 : i32
    %c3_i32 = arith.constant 3 : i32
    %1 = arith.minsi %0, %c3_i32 : i32
    %c0_i32 = arith.constant 0 : i32
    %c0_i32_0 = arith.constant 0 : i32
    return %arg0, %1, %c0_i32 : i32, i32, i32
  }
  func.func @transform_3(%arg0: i32, %arg1: i32) -> (i32, i32, i32) {
    %c0_i32 = arith.constant 0 : i32
    %c0_i32_0 = arith.constant 0 : i32
    %c0_i32_1 = arith.constant 0 : i32
    %c0_i32_2 = arith.constant 0 : i32
    return %c0_i32, %c0_i32_0, %c0_i32_1 : i32, i32, i32
  }
  func.func @transform_4(%arg0: i32, %arg1: i32) -> (i32, i32) {
    %c0_i32 = arith.constant 0 : i32
    %c0_i32_0 = arith.constant 0 : i32
    %c0_i32_1 = arith.constant 0 : i32
    return %c0_i32, %c0_i32_0 : i32, i32
  }
  func.func @transform_5(%arg0: i32, %arg1: i32) -> (i32, i32, i32) {
    %c0_i32 = arith.constant 0 : i32
    %c0_i32_0 = arith.constant 0 : i32
    return %arg0, %arg1, %c0_i32 : i32, i32, i32
  }
}

</mosaic_0001>

<llo_original>
// kernel: tpu_custom_call.1
$region0: #{tpu_custom_call.1}
  #allocation0 [shape = 'u32[]', space=smem, size = 0x4, offset = 0x4, fixed_abs, tag = 'smem constant byte address 0x4 - core index']
  #allocation1 [shape = 'u32[144,128]{1,0:T(1,128)}', space=vmem, size = 0x12000, scoped, tag = 'internal scratch']
  #allocation2 [shape = 'bf16[98,128]{1,0:T(8,128)(2,1)}', space=vmem, size = 0x6800, scoped, tag = 'scratch operand']
  #allocation3 [shape = 'f32[64,128]{1,0:T(8,128)}', space=vmem, size = 0x8000, scoped, tag = 'scratch operand']
  %s0 = inlined_call_operand.hbm [shape: bf16[1,256,128], index: 0, kind: input, shape index: {}]
  %s1 = inlined_call_operand.hbm [shape: bf16[1,256,128], index: 1, kind: input, shape index: {}]
  %s2 = inlined_call_operand.hbm [shape: bf16[1,256,128], index: 2, kind: input, shape index: {}]
  %s3 = inlined_call_operand.hbm [shape: bf16[9,128,128], index: 3, kind: input, shape index: {}]
  %s4 = inlined_call_operand.vmem [shape: f32[1,128], index: 4, kind: input, shape index: {}]
  %s5 = inlined_call_operand.hbm [shape: bf16[1,256,128], index: 5, kind: output, shape index: {}]
  %s6 = sld [smem:[#allocation0]]
  $region85: #{tpu_custom_call.1} parent=0
    _
  %s8 = ssub.s32 1, %s6
  %s9 = scalar_select 0, %s8, %s6
  $region1: #{tpu_custom_call.1} parent=0
    #allocation4 [shape = 'u8[32768]{0}', space=vmem, size = 0x8000, scoped, tag = 'input window, operand 0']
    #allocation5 [shape = 's32[2]{0}', space=sflag, size = 0x8, scoped, tag = 'scoped memory for tpu_custom_call.1']
    #allocation6 [shape = 's32[2]{0}', space=sflag, size = 0x8, scoped, tag = 'scoped memory for tpu_custom_call.1']
    #allocation7 [shape = 'u8[32768]{0}', space=vmem, size = 0x8000, scoped, tag = 'input window, operand 1']
    #allocation8 [shape = 's32[2]{0}', space=sflag, size = 0x8, scoped, tag = 'scoped memory for tpu_custom_call.1']
    #allocation9 [shape = 'u8[32768]{0}', space=vmem, size = 0x8000, scoped, tag = 'input window, operand 2']
    #allocation10 [shape = 'u8[294912]{0}', space=vmem, size = 0x48000, scoped, tag = 'input window, operand 3, single buffered']
    #allocation11 [shape = 's32[1]{0}', space=sflag, size = 0x4, scoped, tag = 'scoped memory for tpu_custom_call.1']
    #allocation12 [shape = 'u8[32768]{0}', space=vmem, size = 0x8000, scoped, tag = 'output window, operand 0']
    %10 = vsyncpa [#allocation5], 0
    %s11 = scalar_lea.sflag [#allocation5], 1
    %12 = vsyncpa %s11, 0
    %13 = vsyncpa [#allocation8], 0
    %s14 = scalar_lea.sflag [#allocation8], 1
    %15 = vsyncpa %s14, 0
    %16 = vsyncpa [#allocation11], 0
    %17 = vsyncpa [#allocation6], 0
    %s18 = scalar_lea.sflag [#allocation6], 1
    %19 = vsyncpa %s18, 0
    loop: start=0, step=1, limit=6
    $region2: #{tpu_custom_call.1} parent=1 // loop_pre_header
      _
    $region3: #{tpu_custom_call.1} parent=1 // loop_header
      %s21 = sphi 0, %s25
      %p22 = scmp.ge.s32.totalorder %s21, 6
      %s28 = sphi 0, %s40
      %s29 = sphi 0, %s36
      %s30 = sphi 0, %s28
      %s31 = sphi 0, %s29
      %s32 = sphi 0, %s30
      %s33 = sphi 0, %s31
      %s45 = sphi 0, %s47
      %s48 = sphi 0, %s45
      %s49 = sphi 0, %s48
      %s65 = sphi 0, %s49
      %s79 = sphi 0, %s81
      %s82 = sphi 0, %s79
      %s83 = sphi 0, %s82
      %s99 = sphi 0, %s83
      %s113 = sphi 0, %s115
      %s116 = sphi 0, %s113
      %s117 = sphi 0, %s116
      %s133 = sphi 0, %s117
      %s137 = sphi 0, %s137
      %s139 = sphi 0, %s137
      %s140 = sphi 0, %s139
      %s154 = sphi 0, %s140
      %s158 = sphi 0, %s158
      %s160 = sphi 0, %s158
      %s161 = sphi 0, %s160
      %s175 = sphi 0, %s161
      %s183 = sphi 0, %s185
      %s186 = sphi 0, %s183
      %s187 = sphi 0, %s186
      %s203 = sphi 0, %s187
    $region4: #{tpu_custom_call.1} parent=1 // loop_header_branch
      %24 = sbr.rel (%p22) target = $region8
    $region5: #{tpu_custom_call.1} parent=1 // loop_body
      %s26 = ssub.s32 %s21, 1
      %s27 = ssub.s32 %s21, 2
      %s34 = sadd.s32 1, %s29
      %p35 = scmp.ge.s32.totalorder %s34, 4
      %s36 = scalar_select %p35, 0, %s34
      %s37 = sadd.s32 1, %s28
      %s38 = scalar_select %p35, %s37, %s28
      %p39 = scmp.ge.s32.totalorder %s38, 1
      %s40 = scalar_select %p39, 0, %s38
      %s41 = ssub.s32 %s28, %s40
      %s42 = ssub.s32 %s29, %s36
      %s43 = sor.u32 %s41, %s42
      %p44 = scmp.eq.s32.totalorder %s43, 0
      %s46 = sadd.s32 %s45, 1
      %s47 = scalar_select %p44, %s45, %s46
      %p50 = pneg %p44
      %p51 = scmp.eq.s32.totalorder %s21, 3
      %p52 = por %p50, %p51
      %p53 = scmp.ne.s32.totalorder %s45, %s48
      %p54 = scmp.eq.s32.totalorder %s21, 0
      %p55 = por %p53, %p54
      %p56 = scmp.ne.s32.totalorder %s45, %s48
      %p57 = scmp.eq.s32.totalorder %s26, 3
      %p58 = por %p56, %p57
      %p59 = scmp.ne.s32.totalorder %s48, %s49
      %p60 = scmp.eq.s32.totalorder %s26, 0
      %p61 = por %p59, %p60
      %p62 = scmp.ne.s32.totalorder %s48, %s49
      %p63 = scmp.eq.s32.totalorder %s27, 3
      %p64 = por %p62, %p63
      %p66 = scmp.ne.s32.totalorder %s49, %s65
      %p67 = scmp.eq.s32.totalorder %s27, 0
      %p68 = por %p66, %p67
      %s69 = ssub.s32 %s29, 1
      %p70 = scmp.gt.s32.totalorder %s69, 0
      %s71 = scalar_select %p70, %s69, 0
      %s72 = ssub.s32 %s36, 1
      %p73 = scmp.gt.s32.totalorder %s72, 0
      %s74 = scalar_select %p73, %s72, 0
      %s75 = ssub.s32 %s28, %s40
      %s76 = ssub.s32 %s71, %s74
      %s77 = sor.u32 %s75, %s76
      %p78 = scmp.eq.s32.totalorder %s77, 0
      %s80 = sadd.s32 %s79, 1
      %s81 = scalar_select %p78, %s79, %s80
      %p84 = pneg %p78
      %p85 = scmp.eq.s32.totalorder %s21, 3
      %p86 = por %p84, %p85
      %p87 = scmp.ne.s32.totalorder %s79, %s82
      %p88 = scmp.eq.s32.totalorder %s21, 0
      %p89 = por %p87, %p88
      %p90 = scmp.ne.s32.totalorder %s79, %s82
      %p91 = scmp.eq.s32.totalorder %s26, 3
      %p92 = por %p90, %p91
      %p93 = scmp.ne.s32.totalorder %s82, %s83
      %p94 = scmp.eq.s32.totalorder %s26, 0
      %p95 = por %p93, %p94
      %p96 = scmp.ne.s32.totalorder %s82, %s83
      %p97 = scmp.eq.s32.totalorder %s27, 3
      %p98 = por %p96, %p97
      %p100 = scmp.ne.s32.totalorder %s83, %s99
      %p101 = scmp.eq.s32.totalorder %s27, 0
      %p102 = por %p100, %p101
      %s103 = sadd.s32 %s29, 1
      %p104 = scmp.lt.s32.totalorder %s103, 3
      %s105 = scalar_select %p104, %s103, 3
      %s106 = sadd.s32 %s36, 1
      %p107 = scmp.lt.s32.totalorder %s106, 3
      %s108 = scalar_select %p107, %s106, 3
      %s109 = ssub.s32 %s28, %s40
      %s110 = ssub.s32 %s105, %s108
      %s111 = sor.u32 %s109, %s110
      %p112 = scmp.eq.s32.totalorder %s111, 0
      %s114 = sadd.s32 %s113, 1
      %s115 = scalar_select %p112, %s113, %s114
      %p118 = pneg %p112
      %p119 = scmp.eq.s32.totalorder %s21, 3
      %p120 = por %p118, %p119
      %p121 = scmp.ne.s32.totalorder %s113, %s116
      %p122 = scmp.eq.s32.totalorder %s21, 0
      %p123 = por %p121, %p122
      %p124 = scmp.ne.s32.totalorder %s113, %s116
      %p125 = scmp.eq.s32.totalorder %s26, 3
      %p126 = por %p124, %p125
      %p127 = scmp.ne.s32.totalorder %s116, %s117
      %p128 = scmp.eq.s32.totalorder %s26, 0
      %p129 = por %p127, %p128
      %p130 = scmp.ne.s32.totalorder %s116, %s117
      %p131 = scmp.eq.s32.totalorder %s27, 3
      %p132 = por %p130, %p131
      %p134 = scmp.ne.s32.totalorder %s117, %s133
      %p135 = scmp.eq.s32.totalorder %s27, 0
      %p136 = por %p134, %p135
      %s138 = sadd.s32 %s137, 1
      %p141 = scmp.eq.s32.totalorder %s21, 3
      %p142 = scmp.ne.s32.totalorder %s137, %s139
      %p143 = scmp.eq.s32.totalorder %s21, 0
      %p144 = por %p142, %p143
      %p145 = scmp.ne.s32.totalorder %s137, %s139
      %p146 = scmp.eq.s32.totalorder %s26, 3
      %p147 = por %p145, %p146
      %p148 = scmp.ne.s32.totalorder %s139, %s140
      %p149 = scmp.eq.s32.totalorder %s26, 0
      %p150 = por %p148, %p149
      %p151 = scmp.ne.s32.totalorder %s139, %s140
      %p152 = scmp.eq.s32.totalorder %s27, 3
      %p153 = por %p151, %p152
      %p155 = scmp.ne.s32.totalorder %s140, %s154
      %p156 = scmp.eq.s32.totalorder %s27, 0
      %p157 = por %p155, %p156
      %s159 = sadd.s32 %s158, 1
      %p162 = scmp.eq.s32.totalorder %s21, 3
      %p163 = scmp.ne.s32.totalorder %s158, %s160
      %p164 = scmp.eq.s32.totalorder %s21, 0
      %p165 = por %p163, %p164
      %p166 = scmp.ne.s32.totalorder %s158, %s160
      %p167 = scmp.eq.s32.totalorder %s26, 3
      %p168 = por %p166, %p167
      %p169 = scmp.ne.s32.totalorder %s160, %s161
      %p170 = scmp.eq.s32.totalorder %s26, 0
      %p171 = por %p169, %p170
      %p172 = scmp.ne.s32.totalorder %s160, %s161
      %p173 = scmp.eq.s32.totalorder %s27, 3
      %p174 = por %p172, %p173
      %p176 = scmp.ne.s32.totalorder %s161, %s175
      %p177 = scmp.eq.s32.totalorder %s27, 0
      %p178 = por %p176, %p177
      %s179 = ssub.s32 %s28, %s40
      %s180 = ssub.s32 %s29, %s36
      %s181 = sor.u32 %s179, %s180
      %p182 = scmp.eq.s32.totalorder %s181, 0
      %s184 = sadd.s32 %s183, 1
      %s185 = scalar_select %p182, %s183, %s184
      %p188 = pneg %p182
      %p189 = scmp.eq.s32.totalorder %s21, 3
      %p190 = por %p188, %p189
      %p191 = scmp.ne.s32.totalorder %s183, %s186
      %p192 = scmp.eq.s32.totalorder %s21, 0
      %p193 = por %p191, %p192
      %p194 = scmp.ne.s32.totalorder %s183, %s186
      %p195 = scmp.eq.s32.totalorder %s26, 3
      %p196 = por %p194, %p195
      %p197 = scmp.ne.s32.totalorder %s186, %s187
      %p198 = scmp.eq.s32.totalorder %s26, 0
      %p199 = por %p197, %p198
      %p200 = scmp.ne.s32.totalorder %s186, %s187
      %p201 = scmp.eq.s32.totalorder %s27, 3
      %p202 = por %p200, %p201
      %p204 = scmp.ne.s32.totalorder %s187, %s203
      %p205 = scmp.eq.s32.totalorder %s27, 0
      %p206 = por %p204, %p205
      %p207 = scmp.le.s32.totalorder 1, %s21
      %p208 = scmp.lt.s32.totalorder %s21, 5
      %p209 = pnand %p207, %p208
      %p210 = pneg %p209
      // Predicated region
      $region9: #{tpu_custom_call.1} parent=5 // pred_check
        _
      $region10: #{tpu_custom_call.1} parent=5 // pred_check_branch
        %212 = sbr.rel (%p209) target = $region12
      $region11: #{tpu_custom_call.1} parent=5 // pred_region
        %s213 = ssub.s32 %s21, 1
        // Predicated region
        $region13: #{tpu_custom_call.1} parent=11 // pred_check
          %p214 = pneg %p150
        $region14: #{tpu_custom_call.1} parent=11 // pred_check_branch
          %216 = sbr.rel (%p214) target = $region16
        $region15: #{tpu_custom_call.1} parent=11 // pred_region
          %s218 = ssub.s32 9216, 9216
          %219 = vsyncadd [#allocation11], %s218
          %s220 = sshll.u32 [#allocation10], 4
          %s221 = int_to_ptr.vmem [resolvable:$true] %s220
          %226 = dma.hbm_to_vmem [thread:$0]  %s3, 9216, %s221, [#allocation11], 64, 64, 4
        $region16: #{tpu_custom_call.1} parent=11 // pred_fallthru
          _
        // Predicated region
        $region17: #{tpu_custom_call.1} parent=11 // pred_check
          %p227 = pneg %p171
        $region18: #{tpu_custom_call.1} parent=11 // pred_check_branch
          %229 = sbr.rel (%p227) target = $region20
        $region19: #{tpu_custom_call.1} parent=11 // pred_region
          _
        $region20: #{tpu_custom_call.1} parent=11 // pred_fallthru
          _
      $region12: #{tpu_custom_call.1} parent=5 // pred_fallthru
        _
      %p230 = scmp.lt.s32.totalorder %s21, 4
      // Predicated region
      $region21: #{tpu_custom_call.1} parent=5 // pred_check
        %p231 = pneg %p230
      $region22: #{tpu_custom_call.1} parent=5 // pred_check_branch
        %233 = sbr.rel (%p231) target = $region24
      $region23: #{tpu_custom_call.1} parent=5 // pred_region
        // Predicated region
        $region25: #{tpu_custom_call.1} parent=23 // pred_check
          %p234 = pneg %p55
        $region26: #{tpu_custom_call.1} parent=23 // pred_check_branch
          %236 = sbr.rel (%p234) target = $region28
        $region27: #{tpu_custom_call.1} parent=23 // pred_region
          %s237 = sand.u32 %s45, 1
          %s238 = scalar_lea.sflag [#allocation5], %s237
          %s239 = sand.u32 %s45, 1
          %s240 = smul.addr %s239, 32
          %s241 = scalar_lea.vmem [#allocation4], %s240
          %s242 = smul.u32 8, %s29
          %s244 = ssub.s32 512, 512
          %245 = vsyncadd %s238, %s244
          %s246 = smul.addr %s28, 32
          %s247 = sadd.s32 %s242, %s246
          %s248 = smul.addr %s247, 64
          %s249 = scalar_lea.hbm %s0, %s248
          %s250 = sshll.u32 %s241, 4
          %s251 = int_to_ptr.vmem [resolvable:$true] %s250
          %256 = dma.hbm_to_vmem [thread:$0]  %s249, 512, %s251, %s238, 64, 64, 4
        $region28: #{tpu_custom_call.1} parent=23 // pred_fallthru
          _
        // Predicated region
        $region29: #{tpu_custom_call.1} parent=23 // pred_check
          %p257 = pneg %p89
        $region30: #{tpu_custom_call.1} parent=23 // pred_check_branch
          %259 = sbr.rel (%p257) target = $region32
        $region31: #{tpu_custom_call.1} parent=23 // pred_region
          %s260 = sand.u32 %s21, 1
          %s261 = scalar_lea.sflag [#allocation8], %s260
          %s262 = sand.u32 %s79, 1
          %s263 = smul.addr %s262, 32
          %s264 = scalar_lea.vmem [#allocation7], %s263
          %s265 = ssub.s32 %s29, 1
          %p266 = scmp.gt.s32.totalorder %s265, 0
          %s267 = scalar_select %p266, %s265, 0
          %s268 = smul.u32 8, %s267
          %s270 = ssub.s32 512, 512
          %271 = vsyncadd %s261, %s270
          %s272 = smul.addr %s28, 32
          %s273 = sadd.s32 %s268, %s272
          %s274 = smul.addr %s273, 64
          %s275 = scalar_lea.hbm %s1, %s274
          %s276 = sshll.u32 %s264, 4
          %s277 = int_to_ptr.vmem [resolvable:$true] %s276
          %282 = dma.hbm_to_vmem [thread:$0]  %s275, 512, %s277, %s261, 64, 64, 4
        $region32: #{tpu_custom_call.1} parent=23 // pred_fallthru
          _
        // Predicated region
        $region33: #{tpu_custom_call.1} parent=23 // pred_check
          %p283 = pneg %p123
        $region34: #{tpu_custom_call.1} parent=23 // pred_check_branch
          %285 = sbr.rel (%p283) target = $region36
        $region35: #{tpu_custom_call.1} parent=23 // pred_region
          %s286 = sand.u32 %s21, 1
          %s287 = scalar_lea.sflag [#allocation8], %s286
          %s288 = sand.u32 %s113, 1
          %s289 = smul.addr %s288, 32
          %s290 = scalar_lea.vmem [#allocation9], %s289
          %s291 = sadd.s32 %s29, 1
          %p292 = scmp.lt.s32.totalorder %s291, 3
          %s293 = scalar_select %p292, %s291, 3
          %s294 = smul.u32 8, %s293
          %s296 = ssub.s32 512, 512
          %297 = vsyncadd %s287, %s296
          %s298 = smul.addr %s28, 32
          %s299 = sadd.s32 %s294, %s298
          %s300 = smul.addr %s299, 64
          %s301 = scalar_lea.hbm %s2, %s300
          %s302 = sshll.u32 %s290, 4
          %s303 = int_to_ptr.vmem [resolvable:$true] %s302
          %308 = dma.hbm_to_vmem [thread:$0]  %s301, 512, %s303, %s287, 64, 64, 4
        $region36: #{tpu_custom_call.1} parent=23 // pred_fallthru
          _
      $region24: #{tpu_custom_call.1} parent=5 // pred_fallthru
        _
      %p309 = scmp.le.s32.totalorder 1, %s21
      %p310 = scmp.lt.s32.totalorder %s21, 5
      %p311 = pnand %p309, %p310
      %p312 = pneg %p311
      // Predicated region
      $region37: #{tpu_custom_call.1} parent=5 // pred_check
        _
      $region38: #{tpu_custom_call.1} parent=5 // pred_check_branch
        %314 = sbr.rel (%p311) target = $region40
      $region39: #{tpu_custom_call.1} parent=5 // pred_region
        %s315 = ssub.s32 %s21, 1
        %s316 = sand.u32 %s48, 1
        %s317 = scalar_lea.sflag [#allocation5], %s316
        %s318 = sand.u32 %s48, 1
        %s319 = smul.addr %s318, 32
        %s320 = scalar_lea.vmem [#allocation4], %s319
        // Predicated region
        $region41: #{tpu_custom_call.1} parent=39 // pred_check
          %p321 = pneg %p61
        $region42: #{tpu_custom_call.1} parent=39 // pred_check_branch
          %323 = sbr.rel (%p321) target = $region44
        $region43: #{tpu_custom_call.1} parent=39 // pred_region
          %324 = dma.done %s317, 512
        $region44: #{tpu_custom_call.1} parent=39 // pred_fallthru
          _
        %s325 = sand.u32 %s26, 1
        %s326 = scalar_lea.sflag [#allocation8], %s325
        %s327 = sand.u32 %s82, 1
        %s328 = smul.addr %s327, 32
        %s329 = scalar_lea.vmem [#allocation7], %s328
        // Predicated region
        $region45: #{tpu_custom_call.1} parent=39 // pred_check
          %p330 = pneg %p95
        $region46: #{tpu_custom_call.1} parent=39 // pred_check_branch
          %332 = sbr.rel (%p330) target = $region48
        $region47: #{tpu_custom_call.1} parent=39 // pred_region
          %333 = dma.done %s326, 512
        $region48: #{tpu_custom_call.1} parent=39 // pred_fallthru
          _
        %s334 = sand.u32 %s26, 1
        %s335 = scalar_lea.sflag [#allocation8], %s334
        %s336 = sand.u32 %s116, 1
        %s337 = smul.addr %s336, 32
        %s338 = scalar_lea.vmem [#allocation9], %s337
        // Predicated region
        $region49: #{tpu_custom_call.1} parent=39 // pred_check
          %p339 = pneg %p129
        $region50: #{tpu_custom_call.1} parent=39 // pred_check_branch
          %341 = sbr.rel (%p339) target = $region52
        $region51: #{tpu_custom_call.1} parent=39 // pred_region
          %342 = dma.done %s335, 512
        $region52: #{tpu_custom_call.1} parent=39 // pred_fallthru
          _
        // Predicated region
        $region53: #{tpu_custom_call.1} parent=39 // pred_check
          %p343 = pneg %p150
        $region54: #{tpu_custom_call.1} parent=39 // pred_check_branch
          %345 = sbr.rel (%p343) target = $region56
        $region55: #{tpu_custom_call.1} parent=39 // pred_region
          %346 = dma.done [#allocation11], 9216
        $region56: #{tpu_custom_call.1} parent=39 // pred_fallthru
          _
        %s347 = sand.u32 %s48, 1
        %s348 = scalar_lea.sflag [#allocation5], %s347
        %s349 = sand.u32 %s48, 1
        %s350 = smul.addr %s349, 32
        %s351 = scalar_lea.vmem [#allocation4], %s350
        %p352 = pneg %p61
        %p353 = pneg %p58
        %s354 = sand.u32 %s26, 1
        %s355 = scalar_lea.sflag [#allocation8], %s354
        %s356 = sand.u32 %s82, 1
        %s357 = smul.addr %s356, 32
        %s358 = scalar_lea.vmem [#allocation7], %s357
        %p359 = pneg %p95
        %p360 = pneg %p92
        %s361 = sand.u32 %s26, 1
        %s362 = scalar_lea.sflag [#allocation8], %s361
        %s363 = sand.u32 %s116, 1
        %s364 = smul.addr %s363, 32
        %s365 = scalar_lea.vmem [#allocation9], %s364
        %p366 = pneg %p129
        %p367 = pneg %p126
        %p368 = pneg %p150
        %p369 = pneg %p147
        %p370 = pneg %p171
        %p371 = pneg %p168
        %p372 = pneg %p199
        %p373 = pneg %p196
        %s374 = sand.u32 %s186, 1
        %s375 = scalar_lea.sflag [#allocation6], %s374
        %s376 = sand.u32 %s186, 1
        %s377 = smul.addr %s376, 32
        %s378 = scalar_lea.vmem [#allocation12], %s377
        %s379 = smul.u32 8, %s31
        %s380 = ssub.s32 %s31, 1
        %p381 = scmp.gt.s32.totalorder %s380, 0
        %s382 = scalar_select %p381, %s380, 0
        %s383 = smul.u32 8, %s382
        %s384 = sadd.s32 %s31, 1
        %p385 = scmp.lt.s32.totalorder %s384, 3
        %s386 = scalar_select %p385, %s384, 3
        %s387 = smul.u32 8, %s386
        %s388 = smul.u32 8, %s31
        %v392 = vld [vmem:[%s320] sm:$0xf]
        %v393 = vld [vmem:[%s320 + $0x4] sm:$0xf]
        %v394 = vld [vmem:[%s320 + $0x8] sm:$0xf]
        %v395 = vld [vmem:[%s320 + $0xc] sm:$0xf]
        %v396 = vld [vmem:[%s320 + $0x10] sm:$0xf]
        %v397 = vld [vmem:[%s320 + $0x14] sm:$0xf]
        %v398 = vld [vmem:[%s320 + $0x18] sm:$0xf]
        %v399 = vld [vmem:[%s320 + $0x1c] sm:$0xf]
        %vm400 = vsmask.f32 256
        %vm401 = vsmask.f32 4368
        %vm402 = vmor %vm400, %vm401
        %v404 = vshrl.u32 %v392, 16
        %v406 = vrot.slane %v404, 7
        %v407 = vshll.u32 %v392, 16
        %v409 = vor.u32 %v406, %v407
        %v410 = vrot.slane %v406, 4
        %v412 = vshrl.u32 %v393, 16
        %v414 = vrot.slane %v412, 7
        %v415 = vshll.u32 %v393, 16
        %v417 = vor.u32 %v414, %v415
        %v418 = vsel %vm402, %v410, %v417
        %v419 = vrot.slane %v414, 4
        %v421 = vshrl.u32 %v394, 16
        %v423 = vrot.slane %v421, 7
        %v424 = vshll.u32 %v394, 16
        %v426 = vor.u32 %v423, %v424
        %v427 = vsel %vm402, %v419, %v426
        %v428 = vrot.slane %v423, 4
        %v430 = vshrl.u32 %v395, 16
        %v432 = vrot.slane %v430, 7
        %v433 = vshll.u32 %v395, 16
        %v435 = vor.u32 %v432, %v433
        %v436 = vsel %vm402, %v428, %v435
        %v437 = vrot.slane %v432, 4
        %v439 = vshrl.u32 %v396, 16
        %v441 = vrot.slane %v439, 7
        %v442 = vshll.u32 %v396, 16
        %v444 = vor.u32 %v441, %v442
        %v445 = vsel %vm402, %v437, %v444
        %v446 = vrot.slane %v441, 4
        %v448 = vshrl.u32 %v397, 16
        %v450 = vrot.slane %v448, 7
        %v451 = vshll.u32 %v397, 16
        %v453 = vor.u32 %v450, %v451
        %v454 = vsel %vm402, %v446, %v453
        %v455 = vrot.slane %v450, 4
        %v457 = vshrl.u32 %v398, 16
        %v459 = vrot.slane %v457, 7
        %v460 = vshll.u32 %v398, 16
        %v462 = vor.u32 %v459, %v460
        %v463 = vsel %vm402, %v455, %v462
        %v464 = vrot.slane %v459, 4
        %v466 = vshrl.u32 %v399, 16
        %v468 = vrot.slane %v466, 7
        %v469 = vshll.u32 %v399, 16
        %v471 = vor.u32 %v468, %v469
        %v472 = vsel %vm402, %v464, %v471
        %v473 = vrot.slane %v468, 4
        %vm483 = vcmask 1043456
        %vm484 = vsmask.f32 7938
        %vm485 = vmand %vm483, %vm484
        %v486 = vld [vmem:[#allocation2 + $0x8] sm:$0xf]
        %v487 = vsel %vm485, %v409, %v486
        %488 = vst [vmem:[#allocation2 + $0x8] sm:$0xf] %v487
        %489 = vst [vmem:[#allocation2 + $0xc] sm:$0xf] %v418
        %490 = vst [vmem:[#allocation2 + $0x10] sm:$0xf] %v427
        %491 = vst [vmem:[#allocation2 + $0x14] sm:$0xf] %v436
        %492 = vst [vmem:[#allocation2 + $0x18] sm:$0xf] %v445
        %493 = vst [vmem:[#allocation2 + $0x1c] sm:$0xf] %v454
        %494 = vst [vmem:[#allocation2 + $0x20] sm:$0xf] %v463
        %495 = vst [vmem:[#allocation2 + $0x24] sm:$0xf] %v472
        %vm496 = vcmask 1040384
        %vm497 = vmand %vm496, %vm400
        %v498 = vld [vmem:[#allocation2 + $0x28] sm:$0x1]
        %v499 = vsel %vm497, %v473, %v498
        %500 = vst [vmem:[#allocation2 + $0x28] sm:$0x1] %v499
        %p501 = scmp.gt.s32.totalorder %s31, 0
        // Predicated region
        $region57: #{tpu_custom_call.1} parent=39 // pred_check
          %p502 = pneg %p501
        $region58: #{tpu_custom_call.1} parent=39 // pred_check_branch
          %504 = sbr.rel (%p502) target = $region60
        $region59: #{tpu_custom_call.1} parent=39 // pred_region
          %v505 = vld [vmem:[%s329 + $0x18] sm:$0xf]
          %v506 = vld [vmem:[%s329 + $0x1c] sm:$0xf]
          %v508 = vshrl.u32 %v505, 16
          %v510 = vrot.slane %v508, 7
          %v511 = vshll.u32 %v505, 16
          %v513 = vor.u32 %v510, %v511
          %v514 = vrot.slane %v510, 4
          %v516 = vshrl.u32 %v506, 16
          %v518 = vrot.slane %v516, 7
          %v519 = vshll.u32 %v506, 16
          %v521 = vor.u32 %v518, %v519
          %v522 = vsel %vm402, %v514, %v521
          %v523 = vrot.slane %v518, 4
          %v527 = vld [vmem:[#allocation2] sm:$0xf]
          %v528 = vsel %vm485, %v513, %v527
          %529 = vst [vmem:[#allocation2] sm:$0xf] %v528
          %530 = vst [vmem:[#allocation2 + $0x4] sm:$0xf] %v522
          %v531 = vld [vmem:[#allocation2 + $0x8] sm:$0x1]
          %v532 = vsel %vm497, %v523, %v531
          %533 = vst [vmem:[#allocation2 + $0x8] sm:$0x1] %v532
        $region60: #{tpu_custom_call.1} parent=39 // pred_fallthru
          _
        %p534 = scmp.eq.s32.totalorder %s31, 0
        // Predicated region
        $region61: #{tpu_custom_call.1} parent=39 // pred_check
          %p535 = pneg %p534
        $region62: #{tpu_custom_call.1} parent=39 // pred_check_branch
          %537 = sbr.rel (%p535) target = $region64
        $region63: #{tpu_custom_call.1} parent=39 // pred_region
          %v538 = vld [vmem:[#allocation2] sm:$0xf]
          %v539 = vsel %vm485, 0, %v538
          %540 = vst [vmem:[#allocation2] sm:$0xf] %v539
          %541 = vst [vmem:[#allocation2 + $0x4] sm:$0xf] 0
          %v542 = vld [vmem:[#allocation2 + $0x8] sm:$0x1]
          %v543 = vsel %vm497, 0, %v542
          %544 = vst [vmem:[#allocation2 + $0x8] sm:$0x1] %v543
        $region64: #{tpu_custom_call.1} parent=39 // pred_fallthru
          _
        %p545 = scmp.lt.s32.totalorder %s31, 3
        // Predicated region
        $region65: #{tpu_custom_call.1} parent=39 // pred_check
          %p546 = pneg %p545
        $region66: #{tpu_custom_call.1} parent=39 // pred_check_branch
          %548 = sbr.rel (%p546) target = $region68
        $region67: #{tpu_custom_call.1} parent=39 // pred_region
          %v549 = vld [vmem:[%s338] sm:$0xf]
          %v550 = vld [vmem:[%s338 + $0x4] sm:$0xf]
          %v552 = vshrl.u32 %v549, 16
          %v554 = vrot.slane %v552, 7
          %v555 = vshll.u32 %v549, 16
          %v557 = vor.u32 %v554, %v555
          %v558 = vrot.slane %v554, 4
          %v560 = vshrl.u32 %v550, 16
          %v562 = vrot.slane %v560, 7
          %v563 = vshll.u32 %v550, 16
          %v565 = vor.u32 %v562, %v563
          %v566 = vsel %vm402, %v558, %v565
          %v567 = vrot.slane %v562, 4
          %v571 = vld [vmem:[#allocation2 + $0x28] sm:$0xf]
          %v572 = vsel %vm485, %v557, %v571
          %573 = vst [vmem:[#allocation2 + $0x28] sm:$0xf] %v572
          %574 = vst [vmem:[#allocation2 + $0x2c] sm:$0xf] %v566
          %v575 = vld [vmem:[#allocation2 + $0x30] sm:$0x1]
          %v576 = vsel %vm497, %v567, %v575
          %577 = vst [vmem:[#allocation2 + $0x30] sm:$0x1] %v576
        $region68: #{tpu_custom_call.1} parent=39 // pred_fallthru
          _
        %p578 = scmp.eq.s32.totalorder %s31, 3
        // Predicated region
        $region69: #{tpu_custom_call.1} parent=39 // pred_check
          %p579 = pneg %p578
        $region70: #{tpu_custom_call.1} parent=39 // pred_check_branch
          %581 = sbr.rel (%p579) target = $region72
        $region71: #{tpu_custom_call.1} parent=39 // pred_region
          %v582 = vld [vmem:[#allocation2 + $0x28] sm:$0xf]
          %v583 = vsel %vm485, 0, %v582
          %584 = vst [vmem:[#allocation2 + $0x28] sm:$0xf] %v583
          %585 = vst [vmem:[#allocation2 + $0x2c] sm:$0xf] 0
          %v586 = vld [vmem:[#allocation2 + $0x30] sm:$0x1]
          %v587 = vsel %vm497, 0, %v586
          %588 = vst [vmem:[#allocation2 + $0x30] sm:$0x1] %v587
        $region72: #{tpu_custom_call.1} parent=39 // pred_fallthru
          _
        %v589 = vld [vmem:[#allocation2] sm:$0x1]
        %v590 = vsel %vm497, 0, %v589
        %591 = vst [vmem:[#allocation2] sm:$0x1] %v590
        %vm592 = vmand %vm496, %vm484
        %v593 = vld [vmem:[#allocation2 + $0x30] sm:$0x1]
        %v594 = vsel %vm592, 0, %v593
        %595 = vst [vmem:[#allocation2 + $0x30] sm:$0x1] %v594
        %v596 = vlaneseq
        %v597 = vshrl.u32 %v596, 7
        %v598 = vadd.s32 %v597, 8
        %v599 = vadd.s32 %v597, 16
        %v600 = vadd.s32 %v597, 24
        %v601 = vadd.s32 %v597, 32
        %v602 = vadd.s32 %v597, 40
        %v603 = vadd.s32 %v597, 48
        %v604 = vadd.s32 %v597, 56
        %vm605 = vcmp.lt.s32.totalorder %v597, 0
        %v606 = vsub.s32 0, %v597
        %v607 = vsel %vm605, %v606, %v597
        %v608 = vshrl.u32 %v607, 4
        %v609 = vand.u32 %v607, 15
        %v610 = vsub.s32 0, %v609
        %v611 = vsel %vm605, %v610, %v609
        %vm612 = vcmp.lt.s32.totalorder %v598, 0
        %v613 = vsub.s32 0, %v598
        %v614 = vsel %vm612, %v613, %v598
        %v615 = vshrl.u32 %v614, 4
        %v616 = vand.u32 %v614, 15
        %v617 = vsub.s32 0, %v616
        %v618 = vsel %vm612, %v617, %v616
        %vm619 = vcmp.lt.s32.totalorder %v599, 0
        %v620 = vsub.s32 0, %v599
        %v621 = vsel %vm619, %v620, %v599
        %v622 = vshrl.u32 %v621, 4
        %v623 = vand.u32 %v621, 15
        %v624 = vsub.s32 0, %v623
        %v625 = vsel %vm619, %v624, %v623
        %vm626 = vcmp.lt.s32.totalorder %v600, 0
        %v627 = vsub.s32 0, %v600
        %v628 = vsel %vm626, %v627, %v600
        %v629 = vshrl.u32 %v628, 4
        %v630 = vand.u32 %v628, 15
        %v631 = vsub.s32 0, %v630
        %v632 = vsel %vm626, %v631, %v630
        %vm633 = vcmp.lt.s32.totalorder %v601, 0
        %v634 = vsub.s32 0, %v601
        %v635 = vsel %vm633, %v634, %v601
        %v636 = vshrl.u32 %v635, 4
        %v637 = vand.u32 %v635, 15
        %v638 = vsub.s32 0, %v637
        %v639 = vsel %vm633, %v638, %v637
        %vm640 = vcmp.lt.s32.totalorder %v602, 0
        %v641 = vsub.s32 0, %v602
        %v642 = vsel %vm640, %v641, %v602
        %v643 = vshrl.u32 %v642, 4
        %v644 = vand.u32 %v642, 15
        %v645 = vsub.s32 0, %v644
        %v646 = vsel %vm640, %v645, %v644
        %vm647 = vcmp.lt.s32.totalorder %v603, 0
        %v648 = vsub.s32 0, %v603
        %v649 = vsel %vm647, %v648, %v603
        %v650 = vshrl.u32 %v649, 4
        %v651 = vand.u32 %v649, 15
        %v652 = vsub.s32 0, %v651
        %v653 = vsel %vm647, %v652, %v651
        %vm654 = vcmp.lt.s32.totalorder %v604, 0
        %v655 = vsub.s32 0, %v604
        %v656 = vsel %vm654, %v655, %v604
        %v657 = vshrl.u32 %v656, 4
        %v658 = vand.u32 %v656, 15
        %v659 = vsub.s32 0, %v658
        %v660 = vsel %vm654, %v659, %v658
        %vm661 = vcmp.ne.s32.totalorder %v611, 0
        %vm662 = vcmp.ne.s32.totalorder %v618, 0
        %vm663 = vcmp.ne.s32.totalorder %v625, 0
        %vm664 = vcmp.ne.s32.totalorder %v632, 0
        %vm665 = vcmp.ne.s32.totalorder %v639, 0
        %vm666 = vcmp.ne.s32.totalorder %v646, 0
        %vm667 = vcmp.ne.s32.totalorder %v653, 0
        %vm668 = vcmp.ne.s32.totalorder %v660, 0
        %vm669 = vcmp.lt.s32.totalorder %v611, 0
        %vm670 = vcmp.lt.s32.totalorder %v618, 0
        %vm671 = vcmp.lt.s32.totalorder %v625, 0
        %vm672 = vcmp.lt.s32.totalorder %v632, 0
        %vm673 = vcmp.lt.s32.totalorder %v639, 0
        %vm674 = vcmp.lt.s32.totalorder %v646, 0
        %vm675 = vcmp.lt.s32.totalorder %v653, 0
        %vm676 = vcmp.lt.s32.totalorder %v660, 0
        %vm677 = vmand %vm669, %vm661
        %vm678 = vmand %vm670, %vm662
        %vm679 = vmand %vm671, %vm663
        %vm680 = vmand %vm672, %vm664
        %vm681 = vmand %vm673, %vm665
        %vm682 = vmand %vm674, %vm666
        %vm683 = vmand %vm675, %vm667
        %vm684 = vmand %vm676, %vm668
        %v685 = vadd.s32 %v611, 16
        %v686 = vadd.s32 %v618, 16
        %v687 = vadd.s32 %v625, 16
        %v688 = vadd.s32 %v632, 16
        %v689 = vadd.s32 %v639, 16
        %v690 = vadd.s32 %v646, 16
        %v691 = vadd.s32 %v653, 16
        %v692 = vadd.s32 %v660, 16
        %v693 = vsel %vm677, %v685, %v611
        %v694 = vsel %vm678, %v686, %v618
        %v695 = vsel %vm679, %v687, %v625
        %v696 = vsel %vm680, %v688, %v632
        %v697 = vsel %vm681, %v689, %v639
        %v698 = vsel %vm682, %v690, %v646
        %v699 = vsel %vm683, %v691, %v653
        %v700 = vsel %vm684, %v692, %v660
        %vm701 = vcmp.ne.s32.totalorder %v693, 0
        %vm702 = vcmp.ne.s32.totalorder %v694, 0
        %vm703 = vcmp.ne.s32.totalorder %v695, 0
        %vm704 = vcmp.ne.s32.totalorder %v696, 0
        %vm705 = vcmp.ne.s32.totalorder %v697, 0
        %vm706 = vcmp.ne.s32.totalorder %v698, 0
        %vm707 = vcmp.ne.s32.totalorder %v699, 0
        %vm708 = vcmp.ne.s32.totalorder %v700, 0
        %vm709 = vcmp.ne.s32.totalorder %v693, 15
        %vm710 = vcmp.ne.s32.totalorder %v694, 15
        %vm711 = vcmp.ne.s32.totalorder %v695, 15
        %vm712 = vcmp.ne.s32.totalorder %v696, 15
        %vm713 = vcmp.ne.s32.totalorder %v697, 15
        %vm714 = vcmp.ne.s32.totalorder %v698, 15
        %vm715 = vcmp.ne.s32.totalorder %v699, 15
        %vm716 = vcmp.ne.s32.totalorder %v700, 15
        %v717 = vld [vmem:[#allocation2] sm:$0xf]
        %v718 = vld [vmem:[#allocation2 + $0x4] sm:$0xf]
        %v719 = vld [vmem:[#allocation2 + $0x8] sm:$0xf]
        %v720 = vld [vmem:[#allocation2 + $0xc] sm:$0xf]
        %v721 = vld [vmem:[#allocation2 + $0x10] sm:$0xf]
        %v722 = vld [vmem:[#allocation2 + $0x14] sm:$0xf]
        %v723 = vld [vmem:[#allocation2 + $0x18] sm:$0xf]
        %v724 = vld [vmem:[#allocation2 + $0x1c] sm:$0xf]
        %v725 = vsel %vm701, 1, 0
        %v726 = vsel %vm702, 1, 0
        %v727 = vsel %vm703, 1, 0
        %v728 = vsel %vm704, 1, 0
        %v729 = vsel %vm705, 1, 0
        %v730 = vsel %vm706, 1, 0
        %v731 = vsel %vm707, 1, 0
        %v732 = vsel %vm708, 1, 0
        %vm733 = vcmp.eq.s32.totalorder %v725, 1
        %vm734 = vcmp.eq.s32.totalorder %v726, 1
        %vm735 = vcmp.eq.s32.totalorder %v727, 1
        %vm736 = vcmp.eq.s32.totalorder %v728, 1
        %vm737 = vcmp.eq.s32.totalorder %v729, 1
        %vm738 = vcmp.eq.s32.totalorder %v730, 1
        %vm739 = vcmp.eq.s32.totalorder %v731, 1
        %vm740 = vcmp.eq.s32.totalorder %v732, 1
        %vm741 = vmpackc.low %vm733, %vm733
        %vm742 = vmpackc.low %vm734, %vm734
        %vm743 = vmpackc.low %vm735, %vm735
        %vm744 = vmpackc.low %vm736, %vm736
        %vm745 = vmpackc.low %vm737, %vm737
        %vm746 = vmpackc.low %vm738, %vm738
        %vm747 = vmpackc.low %vm739, %vm739
        %vm748 = vmpackc.low %vm740, %vm740
        %v749 = vsel %vm741, %v717, 0
        %v750 = vsel %vm742, %v718, 0
        %v751 = vsel %vm743, %v719, 0
        %v752 = vsel %vm744, %v720, 0
        %v753 = vsel %vm745, %v721, 0
        %v754 = vsel %vm746, %v722, 0
        %v755 = vsel %vm747, %v723, 0
        %v756 = vsel %vm748, %v724, 0
        %v757 = vld [vmem:[#allocation10] sm:$0xf]
        %v758 = vld [vmem:[#allocation10 + $0x4] sm:$0xf]
        %v759 = vld [vmem:[#allocation10 + $0x8] sm:$0xf]
        %v760 = vld [vmem:[#allocation10 + $0xc] sm:$0xf]
        %v761 = vld [vmem:[#allocation10 + $0x10] sm:$0xf]
        %v762 = vld [vmem:[#allocation10 + $0x14] sm:$0xf]
        %v763 = vld [vmem:[#allocation10 + $0x18] sm:$0xf]
        %v764 = vld [vmem:[#allocation10 + $0x1c] sm:$0xf]
        %v765 = vld [vmem:[#allocation10 + $0x20] sm:$0xf]
        %v766 = vld [vmem:[#allocation10 + $0x24] sm:$0xf]
        %v767 = vld [vmem:[#allocation10 + $0x28] sm:$0xf]
        %v768 = vld [vmem:[#allocation10 + $0x2c] sm:$0xf]
        %v769 = vld [vmem:[#allocation10 + $0x30] sm:$0xf]
        %v770 = vld [vmem:[#allocation10 + $0x34] sm:$0xf]
        %v771 = vld [vmem:[#allocation10 + $0x38] sm:$0xf]
        %v772 = vld [vmem:[#allocation10 + $0x3c] sm:$0xf]
        %v781 = vunpack.c.l.b16 %v749
        %v782 = vunpack.c.l.b16 %v750
        %v783 = vunpack.c.l.b16 %v751
        %v784 = vunpack.c.l.b16 %v752
        %v785 = vunpack.c.l.b16 %v753
        %v786 = vunpack.c.l.b16 %v754
        %v787 = vunpack.c.l.b16 %v755
        %v788 = vunpack.c.l.b16 %v756
        %v789 = vpack.c.b16 %v782, %v781
        %v790 = vpack.c.b16 %v784, %v783
        %v791 = vpack.c.b16 %v786, %v785
        %v792 = vpack.c.b16 %v788, %v787
        %v813 = vunpack.c.l.b16 %v757
        %v814 = vunpack.c.l.b16 %v758
        %v815 = vunpack.c.l.b16 %v759
        %v816 = vunpack.c.l.b16 %v760
        %v817 = vunpack.c.l.b16 %v761
        %v818 = vunpack.c.l.b16 %v762
        %v819 = vunpack.c.l.b16 %v763
        %v820 = vunpack.c.l.b16 %v764
        %v821 = vunpack.c.l.b16 %v765
        %v822 = vunpack.c.l.b16 %v766
        %v823 = vunpack.c.l.b16 %v767
        %v824 = vunpack.c.l.b16 %v768
        %v825 = vunpack.c.l.b16 %v769
        %v826 = vunpack.c.l.b16 %v770
        %v827 = vunpack.c.l.b16 %v771
        %v828 = vunpack.c.l.b16 %v772
        %v829 = vpack.c.b16 %v814, %v813
        %v830 = vpack.c.b16 %v816, %v815
        %v831 = vpack.c.b16 %v818, %v817
        %v832 = vpack.c.b16 %v820, %v819
        %v833 = vpack.c.b16 %v822, %v821
        %v834 = vpack.c.b16 %v824, %v823
        %v835 = vpack.c.b16 %v826, %v825
        %v836 = vpack.c.b16 %v828, %v827
        %845 = vmatprep.subr.bf16.mxu0 0
        %846 = vmatpush1.bf16.msra.mxu0 %v829
        %847 = vmatprep.subr.bf16.mxu0 0
        %848 = vmatpush1.bf16.msra.mxu0 %v830
        %849 = vmatprep.subr.bf16.mxu0 0
        %850 = vmatpush1.bf16.msra.mxu0 %v831
        %851 = vmatprep.subr.bf16.mxu0 0
        %852 = vmatpush1.bf16.msra.mxu0 %v832
        %853 = vmatprep.subr.bf16.mxu0 0
        %854 = vmatpush1.bf16.msra.mxu0 %v833
        %855 = vmatprep.subr.bf16.mxu0 0
        %856 = vmatpush1.bf16.msra.mxu0 %v834
        %857 = vmatprep.subr.bf16.mxu0 0
        %858 = vmatpush1.bf16.msra.mxu0 %v835
        %859 = vmatprep.subr.bf16.mxu0 0
        %860 = vmatpush1.bf16.msra.mxu0 %v836
        %861 = vmatprep.subr.bf16.mxu0 0
        %862 = vmatpush1.bf16.msra.mxu0 0
        %863 = vmatprep.subr.bf16.mxu0 0
        %864 = vmatpush1.bf16.msra.mxu0 0
        %865 = vmatprep.subr.bf16.mxu0 0
        %866 = vmatpush1.bf16.msra.mxu0 0
        %867 = vmatprep.subr.bf16.mxu0 0
        %868 = vmatpush1.bf16.msra.mxu0 0
        %869 = vmatprep.subr.bf16.mxu0 0
        %870 = vmatpush1.bf16.msra.mxu0 0
        %871 = vmatprep.subr.bf16.mxu0 0
        %872 = vmatpush1.bf16.msra.mxu0 0
        %873 = vmatprep.subr.bf16.mxu0 0
        %874 = vmatpush1.bf16.msra.mxu0 0
        %875 = vmatprep.subr.bf16.mxu0 0
        %876 = vmatpush1.bf16.msra.mxu0 0
        %877 = vmatprep.mubr.bf16.mxu0 0
        %878 = vmatmul.mubr.bf16.gmra.mrb[0].mxu0 %v789
        %v879 = vpop.f32.mrb[0].mxu0
        %v880 = vadd.f32 0.0, %v879
        %v881 = vpop.f32.mrb[0].mxu0
        %v882 = vpop.f32.mrb[0].mxu0
        %v883 = vadd.f32 0.0, %v882
        %v884 = vpop.f32.mrb[0].mxu0
        %885 = vmatprep.mubr.bf16.mxu0 0
        %886 = vmatmul.mubr.bf16.gmra.mrb[0].mxu0 %v790
        %v887 = vpop.f32.mrb[0].mxu0
        %v888 = vadd.f32 0.0, %v887
        %v889 = vpop.f32.mrb[0].mxu0
        %v890 = vpop.f32.mrb[0].mxu0
        %v891 = vadd.f32 0.0, %v890
        %v892 = vpop.f32.mrb[0].mxu0
        %893 = vmatprep.mubr.bf16.mxu0 0
        %894 = vmatmul.mubr.bf16.gmra.mrb[0].mxu0 %v791
        %v895 = vpop.f32.mrb[0].mxu0
        %v896 = vadd.f32 0.0, %v895
        %v897 = vpop.f32.mrb[0].mxu0
        %v898 = vpop.f32.mrb[0].mxu0
        %v899 = vadd.f32 0.0, %v898
        %v900 = vpop.f32.mrb[0].mxu0
        %901 = vmatprep.mubr.bf16.mxu0 0
        %902 = vmatmul.mubr.bf16.gmra.mrb[0].mxu0 %v792
        %v903 = vpop.f32.mrb[0].mxu0
        %v904 = vadd.f32 0.0, %v903
        %v905 = vpop.f32.mrb[0].mxu0
        %v906 = vpop.f32.mrb[0].mxu0
        %v907 = vadd.f32 0.0, %v906
        %v908 = vpop.f32.mrb[0].mxu0
        %909 = vdwg.mxu0
        %910 = vst [vmem:[#allocation3] sm:$0xff] %v880
        %911 = vst [vmem:[#allocation3 + $0x8] sm:$0xff] %v883
        %912 = vst [vmem:[#allocation3 + $0x10] sm:$0xff] %v888
        %913 = vst [vmem:[#allocation3 + $0x18] sm:$0xff] %v891
        %914 = vst [vmem:[#allocation3 + $0x20] sm:$0xff] %v896
        %915 = vst [vmem:[#allocation3 + $0x28] sm:$0xff] %v899
        %916 = vst [vmem:[#allocation3 + $0x30] sm:$0xff] %v904
        %917 = vst [vmem:[#allocation3 + $0x38] sm:$0xff] %v907
        %v918 = vld [vmem:[#allocation2] sm:$0xf]
        %v919 = vld [vmem:[#allocation2 + $0x4] sm:$0xf]
        %v920 = vld [vmem:[#allocation2 + $0x8] sm:$0xf]
        %v921 = vld [vmem:[#allocation2 + $0xc] sm:$0xf]
        %v922 = vld [vmem:[#allocation2 + $0x10] sm:$0xf]
        %v923 = vld [vmem:[#allocation2 + $0x14] sm:$0xf]
        %v924 = vld [vmem:[#allocation2 + $0x18] sm:$0xf]
        %v925 = vld [vmem:[#allocation2 + $0x1c] sm:$0xf]
        %v926 = vld [vmem:[#allocation2 + $0x20] sm:$0x1]
        %s927 = scalar_lea.vmem [#allocation10], 64
        %v928 = vld [vmem:[%s927] sm:$0xf]
        %v929 = vld [vmem:[%s927 + $0x4] sm:$0xf]
        %v930 = vld [vmem:[%s927 + $0x8] sm:$0xf]
        %v931 = vld [vmem:[%s927 + $0xc] sm:$0xf]
        %v932 = vld [vmem:[%s927 + $0x10] sm:$0xf]
        %v933 = vld [vmem:[%s927 + $0x14] sm:$0xf]
        %v934 = vld [vmem:[%s927 + $0x18] sm:$0xf]
        %v935 = vld [vmem:[%s927 + $0x1c] sm:$0xf]
        %v936 = vld [vmem:[%s927 + $0x20] sm:$0xf]
        %v937 = vld [vmem:[%s927 + $0x24] sm:$0xf]
        %v938 = vld [vmem:[%s927 + $0x28] sm:$0xf]
        %v939 = vld [vmem:[%s927 + $0x2c] sm:$0xf]
        %v940 = vld [vmem:[%s927 + $0x30] sm:$0xf]
        %v941 = vld [vmem:[%s927 + $0x34] sm:$0xf]
        %v942 = vld [vmem:[%s927 + $0x38] sm:$0xf]
        %v943 = vld [vmem:[%s927 + $0x3c] sm:$0xf]
        %v953 = vunpack.c.l.b16 %v918
        %v954 = vunpack.c.l.b16 %v919
        %v955 = vunpack.c.l.b16 %v920
        %v956 = vunpack.c.l.b16 %v921
        %v957 = vunpack.c.l.b16 %v922
        %v958 = vunpack.c.l.b16 %v923
        %v959 = vunpack.c.l.b16 %v924
        %v960 = vunpack.c.l.b16 %v925
        %v961 = vunpack.c.l.b16 %v926
        %v962 = vpack.c.b16 %v954, %v953
        %v963 = vpack.c.b16 %v956, %v955
        %v964 = vpack.c.b16 %v958, %v957
        %v965 = vpack.c.b16 %v960, %v959
        %v966 = vpack.c.b16 %v961, %v961
        %vm967 = vsmask.f32 7424
        %v969 = vshrl.u32 %v962, 16
        %v971 = vshll.u32 %v962, 16
        %v973 = vrot.slane %v971, 1
        %v974 = vor.u32 %v969, %v973
        %v976 = vshll.u32 %v963, 16
        %v978 = vrot.slane %v976, 1
        %v979 = vsel %vm967, %v974, %v978
        %v980 = vshrl.u32 %v963, 16
        %v982 = vor.u32 %v980, %v978
        %v984 = vshll.u32 %v964, 16
        %v986 = vrot.slane %v984, 1
        %v987 = vsel %vm967, %v982, %v986
        %v988 = vshrl.u32 %v964, 16
        %v990 = vor.u32 %v988, %v986
        %v992 = vshll.u32 %v965, 16
        %v994 = vrot.slane %v992, 1
        %v995 = vsel %vm967, %v990, %v994
        %v996 = vshrl.u32 %v965, 16
        %v998 = vor.u32 %v996, %v994
        %v1000 = vshll.u32 %v966, 16
        %v1002 = vrot.slane %v1000, 1
        %v1003 = vsel %vm967, %v998, %v1002
        %v1024 = vunpack.c.l.b16 %v928
        %v1025 = vunpack.c.l.b16 %v929
        %v1026 = vunpack.c.l.b16 %v930
        %v1027 = vunpack.c.l.b16 %v931
        %v1028 = vunpack.c.l.b16 %v932
        %v1029 = vunpack.c.l.b16 %v933
        %v1030 = vunpack.c.l.b16 %v934
        %v1031 = vunpack.c.l.b16 %v935
        %v1032 = vunpack.c.l.b16 %v936
        %v1033 = vunpack.c.l.b16 %v937
        %v1034 = vunpack.c.l.b16 %v938
        %v1035 = vunpack.c.l.b16 %v939
        %v1036 = vunpack.c.l.b16 %v940
        %v1037 = vunpack.c.l.b16 %v941
        %v1038 = vunpack.c.l.b16 %v942
        %v1039 = vunpack.c.l.b16 %v943
        %v1040 = vpack.c.b16 %v1025, %v1024
        %v1041 = vpack.c.b16 %v1027, %v1026
        %v1042 = vpack.c.b16 %v1029, %v1028
        %v1043 = vpack.c.b16 %v1031, %v1030
        %v1044 = vpack.c.b16 %v1033, %v1032
        %v1045 = vpack.c.b16 %v1035, %v1034
        %v1046 = vpack.c.b16 %v1037, %v1036
        %v1047 = vpack.c.b16 %v1039, %v1038
        %1056 = vmatprep.subr.bf16.mxu0 0
        %1057 = vmatpush1.bf16.msra.mxu0 %v1040
        %1058 = vmatprep.subr.bf16.mxu0 0
        %1059 = vmatpush1.bf16.msra.mxu0 %v1041
        %1060 = vmatprep.subr.bf16.mxu0 0
        %1061 = vmatpush1.bf16.msra.mxu0 %v1042
        %1062 = vmatprep.subr.bf16.mxu0 0
        %1063 = vmatpush1.bf16.msra.mxu0 %v1043
        %1064 = vmatprep.subr.bf16.mxu0 0
        %1065 = vmatpush1.bf16.msra.mxu0 %v1044
        %1066 = vmatprep.subr.bf16.mxu0 0
        %1067 = vmatpush1.bf16.msra.mxu0 %v1045
        %1068 = vmatprep.subr.bf16.mxu0 0
        %1069 = vmatpush1.bf16.msra.mxu0 %v1046
        %1070 = vmatprep.subr.bf16.mxu0 0
        %1071 = vmatpush1.bf16.msra.mxu0 %v1047
        %1072 = vmatprep.subr.bf16.mxu0 0
        %1073 = vmatpush1.bf16.msra.mxu0 0
        %1074 = vmatprep.subr.bf16.mxu0 0
        %1075 = vmatpush1.bf16.msra.mxu0 0
        %1076 = vmatprep.subr.bf16.mxu0 0
        %1077 = vmatpush1.bf16.msra.mxu0 0
        %1078 = vmatprep.subr.bf16.mxu0 0
        %1079 = vmatpush1.bf16.msra.mxu0 0
        %1080 = vmatprep.subr.bf16.mxu0 0
        %1081 = vmatpush1.bf16.msra.mxu0 0
        %1082 = vmatprep.subr.bf16.mxu0 0
        %1083 = vmatpush1.bf16.msra.mxu0 0
        %1084 = vmatprep.subr.bf16.mxu0 0
        %1085 = vmatpush1.bf16.msra.mxu0 0
        %1086 = vmatprep.subr.bf16.mxu0 0
        %1087 = vmatpush1.bf16.msra.mxu0 0
        %1088 = vmatprep.mubr.bf16.mxu0 0
        %1089 = vmatmul.mubr.bf16.gmra.mrb[0].mxu0 %v979
        %v1090 = vpop.f32.mrb[0].mxu0
        %v1091 = vadd.f32 0.0, %v1090
        %v1092 = vpop.f32.mrb[0].mxu0
        %v1093 = vpop.f32.mrb[0].mxu0
        %v1094 = vadd.f32 0.0, %v1093
        %v1095 = vpop.f32.mrb[0].mxu0
        %1096 = vmatprep.mubr.bf16.mxu0 0
        %1097 = vmatmul.mubr.bf16.gmra.mrb[0].mxu0 %v987
        %v1098 = vpop.f32.mrb[0].mxu0
        %v1099 = vadd.f32 0.0, %v1098
        %v1100 = vpop.f32.mrb[0].mxu0
        %v1101 = vpop.f32.mrb[0].mxu0
        %v1102 = vadd.f32 0.0, %v1101
        %v1103 = vpop.f32.mrb[0].mxu0
        %1104 = vmatprep.mubr.bf16.mxu0 0
        %1105 = vmatmul.mubr.bf16.gmra.mrb[0].mxu0 %v995
        %v1106 = vpop.f32.mrb[0].mxu0
        %v1107 = vadd.f32 0.0, %v1106
        %v1108 = vpop.f32.mrb[0].mxu0
        %v1109 = vpop.f32.mrb[0].mxu0
        %v1110 = vadd.f32 0.0, %v1109
        %v1111 = vpop.f32.mrb[0].mxu0
        %1112 = vmatprep.mubr.bf16.mxu0 0
        %1113 = vmatmul.mubr.bf16.gmra.mrb[0].mxu0 %v1003
        %v1114 = vpop.f32.mrb[0].mxu0
        %v1115 = vadd.f32 0.0, %v1114
        %v1116 = vpop.f32.mrb[0].mxu0
        %v1117 = vpop.f32.mrb[0].mxu0
        %v1118 = vadd.f32 0.0, %v1117
        %v1119 = vpop.f32.mrb[0].mxu0
        %1120 = vdwg.mxu0
        %v1121 = vld [vmem:[#allocation3] sm:$0xff]
        %v1122 = vld [vmem:[#allocation3 + $0x8] sm:$0xff]
        %v1123 = vld [vmem:[#allocation3 + $0x10] sm:$0xff]
        %v1124 = vld [vmem:[#allocation3 + $0x18] sm:$0xff]
        %v1125 = vld [vmem:[#allocation3 + $0x20] sm:$0xff]
        %v1126 = vld [vmem:[#allocation3 + $0x28] sm:$0xff]
        %v1127 = vld [vmem:[#allocation3 + $0x30] sm:$0xff]
        %v1128 = vld [vmem:[#allocation3 + $0x38] sm:$0xff]
        %v1129 = vadd.f32 %v1121, %v1091
        %v1130 = vadd.f32 %v1122, %v1094
        %v1131 = vadd.f32 %v1123, %v1099
        %v1132 = vadd.f32 %v1124, %v1102
        %v1133 = vadd.f32 %v1125, %v1107
        %v1134 = vadd.f32 %v1126, %v1110
        %v1135 = vadd.f32 %v1127, %v1115
        %v1136 = vadd.f32 %v1128, %v1118
        %1137 = vst [vmem:[#allocation3] sm:$0xff] %v1129
        %1138 = vst [vmem:[#allocation3 + $0x8] sm:$0xff] %v1130
        %1139 = vst [vmem:[#allocation3 + $0x10] sm:$0xff] %v1131
        %1140 = vst [vmem:[#allocation3 + $0x18] sm:$0xff] %v1132
        %1141 = vst [vmem:[#allocation3 + $0x20] sm:$0xff] %v1133
        %1142 = vst [vmem:[#allocation3 + $0x28] sm:$0xff] %v1134
        %1143 = vst [vmem:[#allocation3 + $0x30] sm:$0xff] %v1135
        %1144 = vst [vmem:[#allocation3 + $0x38] sm:$0xff] %v1136
        %v1145 = vld [vmem:[#allocation2] sm:$0xe]
        %v1146 = vld [vmem:[#allocation2 + $0x4] sm:$0xf]
        %v1147 = vld [vmem:[#allocation2 + $0x8] sm:$0xf]
        %v1148 = vld [vmem:[#allocation2 + $0xc] sm:$0xf]
        %v1149 = vld [vmem:[#allocation2 + $0x10] sm:$0xf]
        %v1150 = vld [vmem:[#allocation2 + $0x14] sm:$0xf]
        %v1151 = vld [vmem:[#allocation2 + $0x18] sm:$0xf]
        %v1152 = vld [vmem:[#allocation2 + $0x1c] sm:$0xf]
        %v1153 = vld [vmem:[#allocation2 + $0x20] sm:$0x1]
        %v1154 = vsel %vm709, 1, 0
        %v1155 = vsel %vm710, 1, 0
        %v1156 = vsel %vm711, 1, 0
        %v1157 = vsel %vm712, 1, 0
        %v1158 = vsel %vm713, 1, 0
        %v1159 = vsel %vm714, 1, 0
        %v1160 = vsel %vm715, 1, 0
        %v1161 = vsel %vm716, 1, 0
        %vm1162 = vcmp.eq.s32.totalorder %v1154, 1
        %vm1163 = vcmp.eq.s32.totalorder %v1155, 1
        %vm1164 = vcmp.eq.s32.totalorder %v1156, 1
        %vm1165 = vcmp.eq.s32.totalorder %v1157, 1
        %vm1166 = vcmp.eq.s32.totalorder %v1158, 1
        %vm1167 = vcmp.eq.s32.totalorder %v1159, 1
        %vm1168 = vcmp.eq.s32.totalorder %v1160, 1
        %vm1169 = vcmp.eq.s32.totalorder %v1161, 1
        %vm1170 = vmpackc.low %vm1162, %vm1162
        %vm1171 = vmpackc.low %vm1163, %vm1163
        %vm1172 = vmpackc.low %vm1164, %vm1164
        %vm1173 = vmpackc.low %vm1165, %vm1165
        %vm1174 = vmpackc.low %vm1166, %vm1166
        %vm1175 = vmpackc.low %vm1167, %vm1167
        %vm1176 = vmpackc.low %vm1168, %vm1168
        %vm1177 = vmpackc.low %vm1169, %vm1169
        %v1178 = vsel %vm1170, 65537, 0
        %v1179 = vsel %vm1171, 65537, 0
        %v1180 = vsel %vm1172, 65537, 0
        %v1181 = vsel %vm1173, 65537, 0
        %v1182 = vsel %vm1174, 65537, 0
        %v1183 = vsel %vm1175, 65537, 0
        %v1184 = vsel %vm1176, 65537, 0
        %v1185 = vsel %vm1177, 65537, 0
        %vm1186 = vcmask 1044484
        %vm1187 = vmor %vm496, %vm1186
        %v1188 = vrot.slane %v1178, 7
        %v1189 = vrot.slane %v1188, 4
        %v1190 = vrot.slane %v1179, 7
        %v1191 = vsel %vm1187, %v1189, %v1190
        %v1192 = vrot.slane %v1190, 4
        %v1193 = vrot.slane %v1180, 7
        %v1194 = vsel %vm1187, %v1192, %v1193
        %v1195 = vrot.slane %v1193, 4
        %v1196 = vrot.slane %v1181, 7
        %v1197 = vsel %vm1187, %v1195, %v1196
        %v1198 = vrot.slane %v1196, 4
        %v1199 = vrot.slane %v1182, 7
        %v1200 = vsel %vm1187, %v1198, %v1199
        %v1201 = vrot.slane %v1199, 4
        %v1202 = vrot.slane %v1183, 7
        %v1203 = vsel %vm1187, %v1201, %v1202
        %v1204 = vrot.slane %v1202, 4
        %v1205 = vrot.slane %v1184, 7
        %v1206 = vsel %vm1187, %v1204, %v1205
        %v1207 = vrot.slane %v1205, 4
        %v1208 = vrot.slane %v1185, 7
        %v1209 = vsel %vm1187, %v1207, %v1208
        %v1210 = vrot.slane %v1208, 4
        %vm1211 = vcmp.ne.s16.totalorder %v1188, 0
        %vm1212 = vcmp.ne.s16.totalorder %v1191, 0
        %vm1213 = vcmp.ne.s16.totalorder %v1194, 0
        %vm1214 = vcmp.ne.s16.totalorder %v1197, 0
        %vm1215 = vcmp.ne.s16.totalorder %v1200, 0
        %vm1216 = vcmp.ne.s16.totalorder %v1203, 0
        %vm1217 = vcmp.ne.s16.totalorder %v1206, 0
        %vm1218 = vcmp.ne.s16.totalorder %v1209, 0
        %vm1219 = vcmp.ne.s16.totalorder %v1210, 0
        %v1220 = vsel %vm1211, %v1145, 0
        %v1221 = vsel %vm1212, %v1146, 0
        %v1222 = vsel %vm1213, %v1147, 0
        %v1223 = vsel %vm1214, %v1148, 0
        %v1224 = vsel %vm1215, %v1149, 0
        %v1225 = vsel %vm1216, %v1150, 0
        %v1226 = vsel %vm1217, %v1151, 0
        %v1227 = vsel %vm1218, %v1152, 0
        %v1228 = vsel %vm1219, %v1153, 0
        %s1229 = scalar_lea.vmem [#allocation10], 128
        %v1230 = vld [vmem:[%s1229] sm:$0xf]
        %v1231 = vld [vmem:[%s1229 + $0x4] sm:$0xf]
        %v1232 = vld [vmem:[%s1229 + $0x8] sm:$0xf]
        %v1233 = vld [vmem:[%s1229 + $0xc] sm:$0xf]
        %v1234 = vld [vmem:[%s1229 + $0x10] sm:$0xf]
        %v1235 = vld [vmem:[%s1229 + $0x14] sm:$0xf]
        %v1236 = vld [vmem:[%s1229 + $0x18] sm:$0xf]
        %v1237 = vld [vmem:[%s1229 + $0x1c] sm:$0xf]
        %v1238 = vld [vmem:[%s1229 + $0x20] sm:$0xf]
        %v1239 = vld [vmem:[%s1229 + $0x24] sm:$0xf]
        %v1240 = vld [vmem:[%s1229 + $0x28] sm:$0xf]
        %v1241 = vld [vmem:[%s1229 + $0x2c] sm:$0xf]
        %v1242 = vld [vmem:[%s1229 + $0x30] sm:$0xf]
        %v1243 = vld [vmem:[%s1229 + $0x34] sm:$0xf]
        %v1244 = vld [vmem:[%s1229 + $0x38] sm:$0xf]
        %v1245 = vld [vmem:[%s1229 + $0x3c] sm:$0xf]
        %v1255 = vunpack.c.l.b16 %v1220
        %v1256 = vunpack.c.l.b16 %v1221
        %v1257 = vunpack.c.l.b16 %v1222
        %v1258 = vunpack.c.l.b16 %v1223
        %v1259 = vunpack.c.l.b16 %v1224
        %v1260 = vunpack.c.l.b16 %v1225
        %v1261 = vunpack.c.l.b16 %v1226
        %v1262 = vunpack.c.l.b16 %v1227
        %v1263 = vunpack.c.l.b16 %v1228
        %v1264 = vpack.c.b16 %v1256, %v1255
        %v1265 = vpack.c.b16 %v1258, %v1257
        %v1266 = vpack.c.b16 %v1260, %v1259
        %v1267 = vpack.c.b16 %v1262, %v1261
        %v1268 = vpack.c.b16 %v1263, %v1263
        %vm1269 = vcmask 1046528
        %v1270 = vrot.slane %v1264, 1
        %v1271 = vrot.slane %v1265, 1
        %v1272 = vsel %vm1269, %v1270, %v1271
        %v1273 = vrot.slane %v1266, 1
        %v1274 = vsel %vm1269, %v1271, %v1273
        %v1275 = vrot.slane %v1267, 1
        %v1276 = vsel %vm1269, %v1273, %v1275
        %v1277 = vrot.slane %v1268, 1
        %v1278 = vsel %vm1269, %v1275, %v1277
        %v1299 = vunpack.c.l.b16 %v1230
        %v1300 = vunpack.c.l.b16 %v1231
        %v1301 = vunpack.c.l.b16 %v1232
        %v1302 = vunpack.c.l.b16 %v1233
        %v1303 = vunpack.c.l.b16 %v1234
        %v1304 = vunpack.c.l.b16 %v1235
        %v1305 = vunpack.c.l.b16 %v1236
        %v1306 = vunpack.c.l.b16 %v1237
        %v1307 = vunpack.c.l.b16 %v1238
        %v1308 = vunpack.c.l.b16 %v1239
        %v1309 = vunpack.c.l.b16 %v1240
        %v1310 = vunpack.c.l.b16 %v1241
        %v1311 = vunpack.c.l.b16 %v1242
        %v1312 = vunpack.c.l.b16 %v1243
        %v1313 = vunpack.c.l.b16 %v1244
        %v1314 = vunpack.c.l.b16 %v1245
        %v1315 = vpack.c.b16 %v1300, %v1299
        %v1316 = vpack.c.b16 %v1302, %v1301
        %v1317 = vpack.c.b16 %v1304, %v1303
        %v1318 = vpack.c.b16 %v1306, %v1305
        %v1319 = vpack.c.b16 %v1308, %v1307
        %v1320 = vpack.c.b16 %v1310, %v1309
        %v1321 = vpack.c.b16 %v1312, %v1311
        %v1322 = vpack.c.b16 %v1314, %v1313
        %1331 = vmatprep.subr.bf16.mxu0 0
        %1332 = vmatpush1.bf16.msra.mxu0 %v1315
        %1333 = vmatprep.subr.bf16.mxu0 0
        %1334 = vmatpush1.bf16.msra.mxu0 %v1316
        %1335 = vmatprep.subr.bf16.mxu0 0
        %1336 = vmatpush1.bf16.msra.mxu0 %v1317
        %1337 = vmatprep.subr.bf16.mxu0 0
        %1338 = vmatpush1.bf16.msra.mxu0 %v1318
        %1339 = vmatprep.subr.bf16.mxu0 0
        %1340 = vmatpush1.bf16.msra.mxu0 %v1319
        %1341 = vmatprep.subr.bf16.mxu0 0
        %1342 = vmatpush1.bf16.msra.mxu0 %v1320
        %1343 = vmatprep.subr.bf16.mxu0 0
        %1344 = vmatpush1.bf16.msra.mxu0 %v1321
        %1345 = vmatprep.subr.bf16.mxu0 0
        %1346 = vmatpush1.bf16.msra.mxu0 %v1322
        %1347 = vmatprep.subr.bf16.mxu0 0
        %1348 = vmatpush1.bf16.msra.mxu0 0
        %1349 = vmatprep.subr.bf16.mxu0 0
        %1350 = vmatpush1.bf16.msra.mxu0 0
        %1351 = vmatprep.subr.bf16.mxu0 0
        %1352 = vmatpush1.bf16.msra.mxu0 0
        %1353 = vmatprep.subr.bf16.mxu0 0
        %1354 = vmatpush1.bf16.msra.mxu0 0
        %1355 = vmatprep.subr.bf16.mxu0 0
        %1356 = vmatpush1.bf16.msra.mxu0 0
        %1357 = vmatprep.subr.bf16.mxu0 0
        %1358 = vmatpush1.bf16.msra.mxu0 0
        %1359 = vmatprep.subr.bf16.mxu0 0
        %1360 = vmatpush1.bf16.msra.mxu0 0
        %1361 = vmatprep.subr.bf16.mxu0 0
        %1362 = vmatpush1.bf16.msra.mxu0 0
        %1363 = vmatprep.mubr.bf16.mxu0 0
        %1364 = vmatmul.mubr.bf16.gmra.mrb[0].mxu0 %v1272
        %v1365 = vpop.f32.mrb[0].mxu0
        %v1366 = vadd.f32 0.0, %v1365
        %v1367 = vpop.f32.mrb[0].mxu0
        %v1368 = vpop.f32.mrb[0].mxu0
        %v1369 = vadd.f32 0.0, %v1368
        %v1370 = vpop.f32.mrb[0].mxu0
        %1371 = vmatprep.mubr.bf16.mxu0 0
        %1372 = vmatmul.mubr.bf16.gmra.mrb[0].mxu0 %v1274
        %v1373 = vpop.f32.mrb[0].mxu0
        %v1374 = vadd.f32 0.0, %v1373
        %v1375 = vpop.f32.mrb[0].mxu0
        %v1376 = vpop.f32.mrb[0].mxu0
        %v1377 = vadd.f32 0.0, %v1376
        %v1378 = vpop.f32.mrb[0].mxu0
        %1379 = vmatprep.mubr.bf16.mxu0 0
        %1380 = vmatmul.mubr.bf16.gmra.mrb[0].mxu0 %v1276
        %v1381 = vpop.f32.mrb[0].mxu0
        %v1382 = vadd.f32 0.0, %v1381
        %v1383 = vpop.f32.mrb[0].mxu0
        %v1384 = vpop.f32.mrb[0].mxu0
        %v1385 = vadd.f32 0.0, %v1384
        %v1386 = vpop.f32.mrb[0].mxu0
        %1387 = vmatprep.mubr.bf16.mxu0 0
        %1388 = vmatmul.mubr.bf16.gmra.mrb[0].mxu0 %v1278
        %v1389 = vpop.f32.mrb[0].mxu0
        %v1390 = vadd.f32 0.0, %v1389
        %v1391 = vpop.f32.mrb[0].mxu0
        %v1392 = vpop.f32.mrb[0].mxu0
        %v1393 = vadd.f32 0.0, %v1392
        %v1394 = vpop.f32.mrb[0].mxu0
        %1395 = vdwg.mxu0
        %v1396 = vld [vmem:[#allocation3] sm:$0xff]
        %v1397 = vld [vmem:[#allocation3 + $0x8] sm:$0xff]
        %v1398 = vld [vmem:[#allocation3 + $0x10] sm:$0xff]
        %v1399 = vld [vmem:[#allocation3 + $0x18] sm:$0xff]
        %v1400 = vld [vmem:[#allocation3 + $0x20] sm:$0xff]
        %v1401 = vld [vmem:[#allocation3 + $0x28] sm:$0xff]
        %v1402 = vld [vmem:[#allocation3 + $0x30] sm:$0xff]
        %v1403 = vld [vmem:[#allocation3 + $0x38] sm:$0xff]
        %v1404 = vadd.f32 %v1396, %v1366
        %v1405 = vadd.f32 %v1397, %v1369
        %v1406 = vadd.f32 %v1398, %v1374
        %v1407 = vadd.f32 %v1399, %v1377
        %v1408 = vadd.f32 %v1400, %v1382
        %v1409 = vadd.f32 %v1401, %v1385
        %v1410 = vadd.f32 %v1402, %v1390
        %v1411 = vadd.f32 %v1403, %v1393
        %1412 = vst [vmem:[#allocation3] sm:$0xff] %v1404
        %1413 = vst [vmem:[#allocation3 + $0x8] sm:$0xff] %v1405
        %1414 = vst [vmem:[#allocation3 + $0x10] sm:$0xff] %v1406
        %1415 = vst [vmem:[#allocation3 + $0x18] sm:$0xff] %v1407
        %1416 = vst [vmem:[#allocation3 + $0x20] sm:$0xff] %v1408
        %1417 = vst [vmem:[#allocation3 + $0x28] sm:$0xff] %v1409
        %1418 = vst [vmem:[#allocation3 + $0x30] sm:$0xff] %v1410
        %1419 = vst [vmem:[#allocation3 + $0x38] sm:$0xff] %v1411
        %v1420 = vld [vmem:[#allocation2 + $0x8] sm:$0xf]
        %v1421 = vld [vmem:[#allocation2 + $0xc] sm:$0xf]
        %v1422 = vld [vmem:[#allocation2 + $0x10] sm:$0xf]
        %v1423 = vld [vmem:[#allocation2 + $0x14] sm:$0xf]
        %v1424 = vld [vmem:[#allocation2 + $0x18] sm:$0xf]
        %v1425 = vld [vmem:[#allocation2 + $0x1c] sm:$0xf]
        %v1426 = vld [vmem:[#allocation2 + $0x20] sm:$0xf]
        %v1427 = vld [vmem:[#allocation2 + $0x24] sm:$0xf]
        %v1428 = vsel %vm741, %v1420, 0
        %v1429 = vsel %vm742, %v1421, 0
        %v1430 = vsel %vm743, %v1422, 0
        %v1431 = vsel %vm744, %v1423, 0
        %v1432 = vsel %vm745, %v1424, 0
        %v1433 = vsel %vm746, %v1425, 0
        %v1434 = vsel %vm747, %v1426, 0
        %v1435 = vsel %vm748, %v1427, 0
        %s1436 = scalar_lea.vmem [#allocation10], 192
        %v1437 = vld [vmem:[%s1436] sm:$0xf]
        %v1438 = vld [vmem:[%s1436 + $0x4] sm:$0xf]
        %v1439 = vld [vmem:[%s1436 + $0x8] sm:$0xf]
        %v1440 = vld [vmem:[%s1436 + $0xc] sm:$0xf]
        %v1441 = vld [vmem:[%s1436 + $0x10] sm:$0xf]
        %v1442 = vld [vmem:[%s1436 + $0x14] sm:$0xf]
        %v1443 = vld [vmem:[%s1436 + $0x18] sm:$0xf]
        %v1444 = vld [vmem:[%s1436 + $0x1c] sm:$0xf]
        %v1445 = vld [vmem:[%s1436 + $0x20] sm:$0xf]
        %v1446 = vld [vmem:[%s1436 + $0x24] sm:$0xf]
        %v1447 = vld [vmem:[%s1436 + $0x28] sm:$0xf]
        %v1448 = vld [vmem:[%s1436 + $0x2c] sm:$0xf]
        %v1449 = vld [vmem:[%s1436 + $0x30] sm:$0xf]
        %v1450 = vld [vmem:[%s1436 + $0x34] sm:$0xf]
        %v1451 = vld [vmem:[%s1436 + $0x38] sm:$0xf]
        %v1452 = vld [vmem:[%s1436 + $0x3c] sm:$0xf]
        %v1461 = vunpack.c.l.b16 %v1428
        %v1462 = vunpack.c.l.b16 %v1429
        %v1463 = vunpack.c.l.b16 %v1430
        %v1464 = vunpack.c.l.b16 %v1431
        %v1465 = vunpack.c.l.b16 %v1432
        %v1466 = vunpack.c.l.b16 %v1433
        %v1467 = vunpack.c.l.b16 %v1434
        %v1468 = vunpack.c.l.b16 %v1435
        %v1469 = vpack.c.b16 %v1462, %v1461
        %v1470 = vpack.c.b16 %v1464, %v1463
        %v1471 = vpack.c.b16 %v1466, %v1465
        %v1472 = vpack.c.b16 %v1468, %v1467
        %v1493 = vunpack.c.l.b16 %v1437
        %v1494 = vunpack.c.l.b16 %v1438
        %v1495 = vunpack.c.l.b16 %v1439
        %v1496 = vunpack.c.l.b16 %v1440
        %v1497 = vunpack.c.l.b16 %v1441
        %v1498 = vunpack.c.l.b16 %v1442
        %v1499 = vunpack.c.l.b16 %v1443
        %v1500 = vunpack.c.l.b16 %v1444
        %v1501 = vunpack.c.l.b16 %v1445
        %v1502 = vunpack.c.l.b16 %v1446
        %v1503 = vunpack.c.l.b16 %v1447
        %v1504 = vunpack.c.l.b16 %v1448
        %v1505 = vunpack.c.l.b16 %v1449
        %v1506 = vunpack.c.l.b16 %v1450
        %v1507 = vunpack.c.l.b16 %v1451
        %v1508 = vunpack.c.l.b16 %v1452
        %v1509 = vpack.c.b16 %v1494, %v1493
        %v1510 = vpack.c.b16 %v1496, %v1495
        %v1511 = vpack.c.b16 %v1498, %v1497
        %v1512 = vpack.c.b16 %v1500, %v1499
        %v1513 = vpack.c.b16 %v1502, %v1501
        %v1514 = vpack.c.b16 %v1504, %v1503
        %v1515 = vpack.c.b16 %v1506, %v1505
        %v1516 = vpack.c.b16 %v1508, %v1507
        %1525 = vmatprep.subr.bf16.mxu0 0
        %1526 = vmatpush1.bf16.msra.mxu0 %v1509
        %1527 = vmatprep.subr.bf16.mxu0 0
        %1528 = vmatpush1.bf16.msra.mxu0 %v1510
        %1529 = vmatprep.subr.bf16.mxu0 0
        %1530 = vmatpush1.bf16.msra.mxu0 %v1511
        %1531 = vmatprep.subr.bf16.mxu0 0
        %1532 = vmatpush1.bf16.msra.mxu0 %v1512
        %1533 = vmatprep.subr.bf16.mxu0 0
        %1534 = vmatpush1.bf16.msra.mxu0 %v1513
        %1535 = vmatprep.subr.bf16.mxu0 0
        %1536 = vmatpush1.bf16.msra.mxu0 %v1514
        %1537 = vmatprep.subr.bf16.mxu0 0
        %1538 = vmatpush1.bf16.msra.mxu0 %v1515
        %1539 = vmatprep.subr.bf16.mxu0 0
        %1540 = vmatpush1.bf16.msra.mxu0 %v1516
        %1541 = vmatprep.subr.bf16.mxu0 0
        %1542 = vmatpush1.bf16.msra.mxu0 0
        %1543 = vmatprep.subr.bf16.mxu0 0
        %1544 = vmatpush1.bf16.msra.mxu0 0
        %1545 = vmatprep.subr.bf16.mxu0 0
        %1546 = vmatpush1.bf16.msra.mxu0 0
        %1547 = vmatprep.subr.bf16.mxu0 0
        %1548 = vmatpush1.bf16.msra.mxu0 0
        %1549 = vmatprep.subr.bf16.mxu0 0
        %1550 = vmatpush1.bf16.msra.mxu0 0
        %1551 = vmatprep.subr.bf16.mxu0 0
        %1552 = vmatpush1.bf16.msra.mxu0 0
        %1553 = vmatprep.subr.bf16.mxu0 0
        %1554 = vmatpush1.bf16.msra.mxu0 0
        %1555 = vmatprep.subr.bf16.mxu0 0
        %1556 = vmatpush1.bf16.msra.mxu0 0
        %1557 = vmatprep.mubr.bf16.mxu0 0
        %1558 = vmatmul.mubr.bf16.gmra.mrb[0].mxu0 %v1469
        %v1559 = vpop.f32.mrb[0].mxu0
        %v1560 = vadd.f32 0.0, %v1559
        %v1561 = vpop.f32.mrb[0].mxu0
        %v1562 = vpop.f32.mrb[0].mxu0
        %v1563 = vadd.f32 0.0, %v1562
        %v1564 = vpop.f32.mrb[0].mxu0
        %1565 = vmatprep.mubr.bf16.mxu0 0
        %1566 = vmatmul.mubr.bf16.gmra.mrb[0].mxu0 %v1470
        %v1567 = vpop.f32.mrb[0].mxu0
        %v1568 = vadd.f32 0.0, %v1567
        %v1569 = vpop.f32.mrb[0].mxu0
        %v1570 = vpop.f32.mrb[0].mxu0
        %v1571 = vadd.f32 0.0, %v1570
        %v1572 = vpop.f32.mrb[0].mxu0
        %1573 = vmatprep.mubr.bf16.mxu0 0
        %1574 = vmatmul.mubr.bf16.gmra.mrb[0].mxu0 %v1471
        %v1575 = vpop.f32.mrb[0].mxu0
        %v1576 = vadd.f32 0.0, %v1575
        %v1577 = vpop.f32.mrb[0].mxu0
        %v1578 = vpop.f32.mrb[0].mxu0
        %v1579 = vadd.f32 0.0, %v1578
        %v1580 = vpop.f32.mrb[0].mxu0
        %1581 = vmatprep.mubr.bf16.mxu0 0
        %1582 = vmatmul.mubr.bf16.gmra.mrb[0].mxu0 %v1472
        %v1583 = vpop.f32.mrb[0].mxu0
        %v1584 = vadd.f32 0.0, %v1583
        %v1585 = vpop.f32.mrb[0].mxu0
        %v1586 = vpop.f32.mrb[0].mxu0
        %v1587 = vadd.f32 0.0, %v1586
        %v1588 = vpop.f32.mrb[0].mxu0
        %1589 = vdwg.mxu0
        %v1590 = vld [vmem:[#allocation3] sm:$0xff]
        %v1591 = vld [vmem:[#allocation3 + $0x8] sm:$0xff]
        %v1592 = vld [vmem:[#allocation3 + $0x10] sm:$0xff]
        %v1593 = vld [vmem:[#allocation3 + $0x18] sm:$0xff]
        %v1594 = vld [vmem:[#allocation3 + $0x20] sm:$0xff]
        %v1595 = vld [vmem:[#allocation3 + $0x28] sm:$0xff]
        %v1596 = vld [vmem:[#allocation3 + $0x30] sm:$0xff]
        %v1597 = vld [vmem:[#allocation3 + $0x38] sm:$0xff]
        %v1598 = vadd.f32 %v1590, %v1560
        %v1599 = vadd.f32 %v1591, %v1563
        %v1600 = vadd.f32 %v1592, %v1568
        %v1601 = vadd.f32 %v1593, %v1571
        %v1602 = vadd.f32 %v1594, %v1576
        %v1603 = vadd.f32 %v1595, %v1579
        %v1604 = vadd.f32 %v1596, %v1584
        %v1605 = vadd.f32 %v1597, %v1587
        %1606 = vst [vmem:[#allocation3] sm:$0xff] %v1598
        %1607 = vst [vmem:[#allocation3 + $0x8] sm:$0xff] %v1599
        %1608 = vst [vmem:[#allocation3 + $0x10] sm:$0xff] %v1600
        %1609 = vst [vmem:[#allocation3 + $0x18] sm:$0xff] %v1601
        %1610 = vst [vmem:[#allocation3 + $0x20] sm:$0xff] %v1602
        %1611 = vst [vmem:[#allocation3 + $0x28] sm:$0xff] %v1603
        %1612 = vst [vmem:[#allocation3 + $0x30] sm:$0xff] %v1604
        %1613 = vst [vmem:[#allocation3 + $0x38] sm:$0xff] %v1605
        %v1614 = vld [vmem:[#allocation2 + $0x8] sm:$0xf]
        %v1615 = vld [vmem:[#allocation2 + $0xc] sm:$0xf]
        %v1616 = vld [vmem:[#allocation2 + $0x10] sm:$0xf]
        %v1617 = vld [vmem:[#allocation2 + $0x14] sm:$0xf]
        %v1618 = vld [vmem:[#allocation2 + $0x18] sm:$0xf]
        %v1619 = vld [vmem:[#allocation2 + $0x1c] sm:$0xf]
        %v1620 = vld [vmem:[#allocation2 + $0x20] sm:$0xf]
        %v1621 = vld [vmem:[#allocation2 + $0x24] sm:$0xf]
        %v1622 = vld [vmem:[#allocation2 + $0x28] sm:$0x1]
        %s1623 = scalar_lea.vmem [#allocation10], 256
        %v1624 = vld [vmem:[%s1623] sm:$0xf]
        %v1625 = vld [vmem:[%s1623 + $0x4] sm:$0xf]
        %v1626 = vld [vmem:[%s1623 + $0x8] sm:$0xf]
        %v1627 = vld [vmem:[%s1623 + $0xc] sm:$0xf]
        %v1628 = vld [vmem:[%s1623 + $0x10] sm:$0xf]
        %v1629 = vld [vmem:[%s1623 + $0x14] sm:$0xf]
        %v1630 = vld [vmem:[%s1623 + $0x18] sm:$0xf]
        %v1631 = vld [vmem:[%s1623 + $0x1c] sm:$0xf]
        %v1632 = vld [vmem:[%s1623 + $0x20] sm:$0xf]
        %v1633 = vld [vmem:[%s1623 + $0x24] sm:$0xf]
        %v1634 = vld [vmem:[%s1623 + $0x28] sm:$0xf]
        %v1635 = vld [vmem:[%s1623 + $0x2c] sm:$0xf]
        %v1636 = vld [vmem:[%s1623 + $0x30] sm:$0xf]
        %v1637 = vld [vmem:[%s1623 + $0x34] sm:$0xf]
        %v1638 = vld [vmem:[%s1623 + $0x38] sm:$0xf]
        %v1639 = vld [vmem:[%s1623 + $0x3c] sm:$0xf]
        %v1649 = vunpack.c.l.b16 %v1614
        %v1650 = vunpack.c.l.b16 %v1615
        %v1651 = vunpack.c.l.b16 %v1616
        %v1652 = vunpack.c.l.b16 %v1617
        %v1653 = vunpack.c.l.b16 %v1618
        %v1654 = vunpack.c.l.b16 %v1619
        %v1655 = vunpack.c.l.b16 %v1620
        %v1656 = vunpack.c.l.b16 %v1621
        %v1657 = vunpack.c.l.b16 %v1622
        %v1658 = vpack.c.b16 %v1650, %v1649
        %v1659 = vpack.c.b16 %v1652, %v1651
        %v1660 = vpack.c.b16 %v1654, %v1653
        %v1661 = vpack.c.b16 %v1656, %v1655
        %v1662 = vpack.c.b16 %v1657, %v1657
        %v1664 = vshrl.u32 %v1658, 16
        %v1666 = vshll.u32 %v1658, 16
        %v1668 = vrot.slane %v1666, 1
        %v1669 = vor.u32 %v1664, %v1668
        %v1671 = vshll.u32 %v1659, 16
        %v1673 = vrot.slane %v1671, 1
        %v1674 = vsel %vm967, %v1669, %v1673
        %v1675 = vshrl.u32 %v1659, 16
        %v1677 = vor.u32 %v1675, %v1673
        %v1679 = vshll.u32 %v1660, 16
        %v1681 = vrot.slane %v1679, 1
        %v1682 = vsel %vm967, %v1677, %v1681
        %v1683 = vshrl.u32 %v1660, 16
        %v1685 = vor.u32 %v1683, %v1681
        %v1687 = vshll.u32 %v1661, 16
        %v1689 = vrot.slane %v1687, 1
        %v1690 = vsel %vm967, %v1685, %v1689
        %v1691 = vshrl.u32 %v1661, 16
        %v1693 = vor.u32 %v1691, %v1689
        %v1695 = vshll.u32 %v1662, 16
        %v1697 = vrot.slane %v1695, 1
        %v1698 = vsel %vm967, %v1693, %v1697
        %v1719 = vunpack.c.l.b16 %v1624
        %v1720 = vunpack.c.l.b16 %v1625
        %v1721 = vunpack.c.l.b16 %v1626
        %v1722 = vunpack.c.l.b16 %v1627
        %v1723 = vunpack.c.l.b16 %v1628
        %v1724 = vunpack.c.l.b16 %v1629
        %v1725 = vunpack.c.l.b16 %v1630
        %v1726 = vunpack.c.l.b16 %v1631
        %v1727 = vunpack.c.l.b16 %v1632
        %v1728 = vunpack.c.l.b16 %v1633
        %v1729 = vunpack.c.l.b16 %v1634
        %v1730 = vunpack.c.l.b16 %v1635
        %v1731 = vunpack.c.l.b16 %v1636
        %v1732 = vunpack.c.l.b16 %v1637
        %v1733 = vunpack.c.l.b16 %v1638
        %v1734 = vunpack.c.l.b16 %v1639
        %v1735 = vpack.c.b16 %v1720, %v1719
        %v1736 = vpack.c.b16 %v1722, %v1721
        %v1737 = vpack.c.b16 %v1724, %v1723
        %v1738 = vpack.c.b16 %v1726, %v1725
        %v1739 = vpack.c.b16 %v1728, %v1727
        %v1740 = vpack.c.b16 %v1730, %v1729
        %v1741 = vpack.c.b16 %v1732, %v1731
        %v1742 = vpack.c.b16 %v1734, %v1733
        %1751 = vmatprep.subr.bf16.mxu0 0
        %1752 = vmatpush1.bf16.msra.mxu0 %v1735
        %1753 = vmatprep.subr.bf16.mxu0 0
        %1754 = vmatpush1.bf16.msra.mxu0 %v1736
        %1755 = vmatprep.subr.bf16.mxu0 0
        %1756 = vmatpush1.bf16.msra.mxu0 %v1737
        %1757 = vmatprep.subr.bf16.mxu0 0
        %1758 = vmatpush1.bf16.msra.mxu0 %v1738
        %1759 = vmatprep.subr.bf16.mxu0 0
        %1760 = vmatpush1.bf16.msra.mxu0 %v1739
        %1761 = vmatprep.subr.bf16.mxu0 0
        %1762 = vmatpush1.bf16.msra.mxu0 %v1740
        %1763 = vmatprep.subr.bf16.mxu0 0
        %1764 = vmatpush1.bf16.msra.mxu0 %v1741
        %1765 = vmatprep.subr.bf16.mxu0 0
        %1766 = vmatpush1.bf16.msra.mxu0 %v1742
        %1767 = vmatprep.subr.bf16.mxu0 0
        %1768 = vmatpush1.bf16.msra.mxu0 0
        %1769 = vmatprep.subr.bf16.mxu0 0
        %1770 = vmatpush1.bf16.msra.mxu0 0
        %1771 = vmatprep.subr.bf16.mxu0 0
        %1772 = vmatpush1.bf16.msra.mxu0 0
        %1773 = vmatprep.subr.bf16.mxu0 0
        %1774 = vmatpush1.bf16.msra.mxu0 0
        %1775 = vmatprep.subr.bf16.mxu0 0
        %1776 = vmatpush1.bf16.msra.mxu0 0
        %1777 = vmatprep.subr.bf16.mxu0 0
        %1778 = vmatpush1.bf16.msra.mxu0 0
        %1779 = vmatprep.subr.bf16.mxu0 0
        %1780 = vmatpush1.bf16.msra.mxu0 0
        %1781 = vmatprep.subr.bf16.mxu0 0
        %1782 = vmatpush1.bf16.msra.mxu0 0
        %1783 = vmatprep.mubr.bf16.mxu0 0
        %1784 = vmatmul.mubr.bf16.gmra.mrb[0].mxu0 %v1674
        %v1785 = vpop.f32.mrb[0].mxu0
        %v1786 = vadd.f32 0.0, %v1785
        %v1787 = vpop.f32.mrb[0].mxu0
        %v1788 = vpop.f32.mrb[0].mxu0
        %v1789 = vadd.f32 0.0, %v1788
        %v1790 = vpop.f32.mrb[0].mxu0
        %1791 = vmatprep.mubr.bf16.mxu0 0
        %1792 = vmatmul.mubr.bf16.gmra.mrb[0].mxu0 %v1682
        %v1793 = vpop.f32.mrb[0].mxu0
        %v1794 = vadd.f32 0.0, %v1793
        %v1795 = vpop.f32.mrb[0].mxu0
        %v1796 = vpop.f32.mrb[0].mxu0
        %v1797 = vadd.f32 0.0, %v1796
        %v1798 = vpop.f32.mrb[0].mxu0
        %1799 = vmatprep.mubr.bf16.mxu0 0
        %1800 = vmatmul.mubr.bf16.gmra.mrb[0].mxu0 %v1690
        %v1801 = vpop.f32.mrb[0].mxu0
        %v1802 = vadd.f32 0.0, %v1801
        %v1803 = vpop.f32.mrb[0].mxu0
        %v1804 = vpop.f32.mrb[0].mxu0
        %v1805 = vadd.f32 0.0, %v1804
        %v1806 = vpop.f32.mrb[0].mxu0
        %1807 = vmatprep.mubr.bf16.mxu0 0
        %1808 = vmatmul.mubr.bf16.gmra.mrb[0].mxu0 %v1698
        %v1809 = vpop.f32.mrb[0].mxu0
        %v1810 = vadd.f32 0.0, %v1809
        %v1811 = vpop.f32.mrb[0].mxu0
        %v1812 = vpop.f32.mrb[0].mxu0
        %v1813 = vadd.f32 0.0, %v1812
        %v1814 = vpop.f32.mrb[0].mxu0
        %1815 = vdwg.mxu0
        %v1816 = vld [vmem:[#allocation3] sm:$0xff]
        %v1817 = vld [vmem:[#allocation3 + $0x8] sm:$0xff]
        %v1818 = vld [vmem:[#allocation3 + $0x10] sm:$0xff]
        %v1819 = vld [vmem:[#allocation3 + $0x18] sm:$0xff]
        %v1820 = vld [vmem:[#allocation3 + $0x20] sm:$0xff]
        %v1821 = vld [vmem:[#allocation3 + $0x28] sm:$0xff]
        %v1822 = vld [vmem:[#allocation3 + $0x30] sm:$0xff]
        %v1823 = vld [vmem:[#allocation3 + $0x38] sm:$0xff]
        %v1824 = vadd.f32 %v1816, %v1786
        %v1825 = vadd.f32 %v1817, %v1789
        %v1826 = vadd.f32 %v1818, %v1794
        %v1827 = vadd.f32 %v1819, %v1797
        %v1828 = vadd.f32 %v1820, %v1802
        %v1829 = vadd.f32 %v1821, %v1805
        %v1830 = vadd.f32 %v1822, %v1810
        %v1831 = vadd.f32 %v1823, %v1813
        %1832 = vst [vmem:[#allocation3] sm:$0xff] %v1824
        %1833 = vst [vmem:[#allocation3 + $0x8] sm:$0xff] %v1825
        %1834 = vst [vmem:[#allocation3 + $0x10] sm:$0xff] %v1826
        %1835 = vst [vmem:[#allocation3 + $0x18] sm:$0xff] %v1827
        %1836 = vst [vmem:[#allocation3 + $0x20] sm:$0xff] %v1828
        %1837 = vst [vmem:[#allocation3 + $0x28] sm:$0xff] %v1829
        %1838 = vst [vmem:[#allocation3 + $0x30] sm:$0xff] %v1830
        %1839 = vst [vmem:[#allocation3 + $0x38] sm:$0xff] %v1831
        %v1840 = vld [vmem:[#allocation2 + $0x8] sm:$0xe]
        %v1841 = vld [vmem:[#allocation2 + $0xc] sm:$0xf]
        %v1842 = vld [vmem:[#allocation2 + $0x10] sm:$0xf]
        %v1843 = vld [vmem:[#allocation2 + $0x14] sm:$0xf]
        %v1844 = vld [vmem:[#allocation2 + $0x18] sm:$0xf]
        %v1845 = vld [vmem:[#allocation2 + $0x1c] sm:$0xf]
        %v1846 = vld [vmem:[#allocation2 + $0x20] sm:$0xf]
        %v1847 = vld [vmem:[#allocation2 + $0x24] sm:$0xf]
        %v1848 = vld [vmem:[#allocation2 + $0x28] sm:$0x1]
        %v1849 = vsel %vm1211, %v1840, 0
        %v1850 = vsel %vm1212, %v1841, 0
        %v1851 = vsel %vm1213, %v1842, 0
        %v1852 = vsel %vm1214, %v1843, 0
        %v1853 = vsel %vm1215, %v1844, 0
        %v1854 = vsel %vm1216, %v1845, 0
        %v1855 = vsel %vm1217, %v1846, 0
        %v1856 = vsel %vm1218, %v1847, 0
        %v1857 = vsel %vm1219, %v1848, 0
        %s1858 = scalar_lea.vmem [#allocation10], 320
        %v1859 = vld [vmem:[%s1858] sm:$0xf]
        %v1860 = vld [vmem:[%s1858 + $0x4] sm:$0xf]
        %v1861 = vld [vmem:[%s1858 + $0x8] sm:$0xf]
        %v1862 = vld [vmem:[%s1858 + $0xc] sm:$0xf]
        %v1863 = vld [vmem:[%s1858 + $0x10] sm:$0xf]
        %v1864 = vld [vmem:[%s1858 + $0x14] sm:$0xf]
        %v1865 = vld [vmem:[%s1858 + $0x18] sm:$0xf]
        %v1866 = vld [vmem:[%s1858 + $0x1c] sm:$0xf]
        %v1867 = vld [vmem:[%s1858 + $0x20] sm:$0xf]
        %v1868 = vld [vmem:[%s1858 + $0x24] sm:$0xf]
        %v1869 = vld [vmem:[%s1858 + $0x28] sm:$0xf]
        %v1870 = vld [vmem:[%s1858 + $0x2c] sm:$0xf]
        %v1871 = vld [vmem:[%s1858 + $0x30] sm:$0xf]
        %v1872 = vld [vmem:[%s1858 + $0x34] sm:$0xf]
        %v1873 = vld [vmem:[%s1858 + $0x38] sm:$0xf]
        %v1874 = vld [vmem:[%s1858 + $0x3c] sm:$0xf]
        %v1884 = vunpack.c.l.b16 %v1849
        %v1885 = vunpack.c.l.b16 %v1850
        %v1886 = vunpack.c.l.b16 %v1851
        %v1887 = vunpack.c.l.b16 %v1852
        %v1888 = vunpack.c.l.b16 %v1853
        %v1889 = vunpack.c.l.b16 %v1854
        %v1890 = vunpack.c.l.b16 %v1855
        %v1891 = vunpack.c.l.b16 %v1856
        %v1892 = vunpack.c.l.b16 %v1857
        %v1893 = vpack.c.b16 %v1885, %v1884
        %v1894 = vpack.c.b16 %v1887, %v1886
        %v1895 = vpack.c.b16 %v1889, %v1888
        %v1896 = vpack.c.b16 %v1891, %v1890
        %v1897 = vpack.c.b16 %v1892, %v1892
        %v1898 = vrot.slane %v1893, 1
        %v1899 = vrot.slane %v1894, 1
        %v1900 = vsel %vm1269, %v1898, %v1899
        %v1901 = vrot.slane %v1895, 1
        %v1902 = vsel %vm1269, %v1899, %v1901
        %v1903 = vrot.slane %v1896, 1
        %v1904 = vsel %vm1269, %v1901, %v1903
        %v1905 = vrot.slane %v1897, 1
        %v1906 = vsel %vm1269, %v1903, %v1905
        %v1927 = vunpack.c.l.b16 %v1859
        %v1928 = vunpack.c.l.b16 %v1860
        %v1929 = vunpack.c.l.b16 %v1861
        %v1930 = vunpack.c.l.b16 %v1862
        %v1931 = vunpack.c.l.b16 %v1863
        %v1932 = vunpack.c.l.b16 %v1864
        %v1933 = vunpack.c.l.b16 %v1865
        %v1934 = vunpack.c.l.b16 %v1866
        %v1935 = vunpack.c.l.b16 %v1867
        %v1936 = vunpack.c.l.b16 %v1868
        %v1937 = vunpack.c.l.b16 %v1869
        %v1938 = vunpack.c.l.b16 %v1870
        %v1939 = vunpack.c.l.b16 %v1871
        %v1940 = vunpack.c.l.b16 %v1872
        %v1941 = vunpack.c.l.b16 %v1873
        %v1942 = vunpack.c.l.b16 %v1874
        %v1943 = vpack.c.b16 %v1928, %v1927
        %v1944 = vpack.c.b16 %v1930, %v1929
        %v1945 = vpack.c.b16 %v1932, %v1931
        %v1946 = vpack.c.b16 %v1934, %v1933
        %v1947 = vpack.c.b16 %v1936, %v1935
        %v1948 = vpack.c.b16 %v1938, %v1937
        %v1949 = vpack.c.b16 %v1940, %v1939
        %v1950 = vpack.c.b16 %v1942, %v1941
        %1959 = vmatprep.subr.bf16.mxu0 0
        %1960 = vmatpush1.bf16.msra.mxu0 %v1943
        %1961 = vmatprep.subr.bf16.mxu0 0
        %1962 = vmatpush1.bf16.msra.mxu0 %v1944
        %1963 = vmatprep.subr.bf16.mxu0 0
        %1964 = vmatpush1.bf16.msra.mxu0 %v1945
        %1965 = vmatprep.subr.bf16.mxu0 0
        %1966 = vmatpush1.bf16.msra.mxu0 %v1946
        %1967 = vmatprep.subr.bf16.mxu0 0
        %1968 = vmatpush1.bf16.msra.mxu0 %v1947
        %1969 = vmatprep.subr.bf16.mxu0 0
        %1970 = vmatpush1.bf16.msra.mxu0 %v1948
        %1971 = vmatprep.subr.bf16.mxu0 0
        %1972 = vmatpush1.bf16.msra.mxu0 %v1949
        %1973 = vmatprep.subr.bf16.mxu0 0
        %1974 = vmatpush1.bf16.msra.mxu0 %v1950
        %1975 = vmatprep.subr.bf16.mxu0 0
        %1976 = vmatpush1.bf16.msra.mxu0 0
        %1977 = vmatprep.subr.bf16.mxu0 0
        %1978 = vmatpush1.bf16.msra.mxu0 0
        %1979 = vmatprep.subr.bf16.mxu0 0
        %1980 = vmatpush1.bf16.msra.mxu0 0
        %1981 = vmatprep.subr.bf16.mxu0 0
        %1982 = vmatpush1.bf16.msra.mxu0 0
        %1983 = vmatprep.subr.bf16.mxu0 0
        %1984 = vmatpush1.bf16.msra.mxu0 0
        %1985 = vmatprep.subr.bf16.mxu0 0
        %1986 = vmatpush1.bf16.msra.mxu0 0
        %1987 = vmatprep.subr.bf16.mxu0 0
        %1988 = vmatpush1.bf16.msra.mxu0 0
        %1989 = vmatprep.subr.bf16.mxu0 0
        %1990 = vmatpush1.bf16.msra.mxu0 0
        %1991 = vmatprep.mubr.bf16.mxu0 0
        %1992 = vmatmul.mubr.bf16.gmra.mrb[0].mxu0 %v1900
        %v1993 = vpop.f32.mrb[0].mxu0
        %v1994 = vadd.f32 0.0, %v1993
        %v1995 = vpop.f32.mrb[0].mxu0
        %v1996 = vpop.f32.mrb[0].mxu0
        %v1997 = vadd.f32 0.0, %v1996
        %v1998 = vpop.f32.mrb[0].mxu0
        %1999 = vmatprep.mubr.bf16.mxu0 0
        %2000 = vmatmul.mubr.bf16.gmra.mrb[0].mxu0 %v1902
        %v2001 = vpop.f32.mrb[0].mxu0
        %v2002 = vadd.f32 0.0, %v2001
        %v2003 = vpop.f32.mrb[0].mxu0
        %v2004 = vpop.f32.mrb[0].mxu0
        %v2005 = vadd.f32 0.0, %v2004
        %v2006 = vpop.f32.mrb[0].mxu0
        %2007 = vmatprep.mubr.bf16.mxu0 0
        %2008 = vmatmul.mubr.bf16.gmra.mrb[0].mxu0 %v1904
        %v2009 = vpop.f32.mrb[0].mxu0
        %v2010 = vadd.f32 0.0, %v2009
        %v2011 = vpop.f32.mrb[0].mxu0
        %v2012 = vpop.f32.mrb[0].mxu0
        %v2013 = vadd.f32 0.0, %v2012
        %v2014 = vpop.f32.mrb[0].mxu0
        %2015 = vmatprep.mubr.bf16.mxu0 0
        %2016 = vmatmul.mubr.bf16.gmra.mrb[0].mxu0 %v1906
        %v2017 = vpop.f32.mrb[0].mxu0
        %v2018 = vadd.f32 0.0, %v2017
        %v2019 = vpop.f32.mrb[0].mxu0
        %v2020 = vpop.f32.mrb[0].mxu0
        %v2021 = vadd.f32 0.0, %v2020
        %v2022 = vpop.f32.mrb[0].mxu0
        %2023 = vdwg.mxu0
        %v2024 = vld [vmem:[#allocation3] sm:$0xff]
        %v2025 = vld [vmem:[#allocation3 + $0x8] sm:$0xff]
        %v2026 = vld [vmem:[#allocation3 + $0x10] sm:$0xff]
        %v2027 = vld [vmem:[#allocation3 + $0x18] sm:$0xff]
        %v2028 = vld [vmem:[#allocation3 + $0x20] sm:$0xff]
        %v2029 = vld [vmem:[#allocation3 + $0x28] sm:$0xff]
        %v2030 = vld [vmem:[#allocation3 + $0x30] sm:$0xff]
        %v2031 = vld [vmem:[#allocation3 + $0x38] sm:$0xff]
        %v2032 = vadd.f32 %v2024, %v1994
        %v2033 = vadd.f32 %v2025, %v1997
        %v2034 = vadd.f32 %v2026, %v2002
        %v2035 = vadd.f32 %v2027, %v2005
        %v2036 = vadd.f32 %v2028, %v2010
        %v2037 = vadd.f32 %v2029, %v2013
        %v2038 = vadd.f32 %v2030, %v2018
        %v2039 = vadd.f32 %v2031, %v2021
        %2040 = vst [vmem:[#allocation3] sm:$0xff] %v2032
        %2041 = vst [vmem:[#allocation3 + $0x8] sm:$0xff] %v2033
        %2042 = vst [vmem:[#allocation3 + $0x10] sm:$0xff] %v2034
        %2043 = vst [vmem:[#allocation3 + $0x18] sm:$0xff] %v2035
        %2044 = vst [vmem:[#allocation3 + $0x20] sm:$0xff] %v2036
        %2045 = vst [vmem:[#allocation3 + $0x28] sm:$0xff] %v2037
        %2046 = vst [vmem:[#allocation3 + $0x30] sm:$0xff] %v2038
        %2047 = vst [vmem:[#allocation3 + $0x38] sm:$0xff] %v2039
        %v2048 = vld [vmem:[#allocation2 + $0x10] sm:$0xf]
        %v2049 = vld [vmem:[#allocation2 + $0x14] sm:$0xf]
        %v2050 = vld [vmem:[#allocation2 + $0x18] sm:$0xf]
        %v2051 = vld [vmem:[#allocation2 + $0x1c] sm:$0xf]
        %v2052 = vld [vmem:[#allocation2 + $0x20] sm:$0xf]
        %v2053 = vld [vmem:[#allocation2 + $0x24] sm:$0xf]
        %v2054 = vld [vmem:[#allocation2 + $0x28] sm:$0xf]
        %v2055 = vld [vmem:[#allocation2 + $0x2c] sm:$0xf]
        %v2056 = vsel %vm741, %v2048, 0
        %v2057 = vsel %vm742, %v2049, 0
        %v2058 = vsel %vm743, %v2050, 0
        %v2059 = vsel %vm744, %v2051, 0
        %v2060 = vsel %vm745, %v2052, 0
        %v2061 = vsel %vm746, %v2053, 0
        %v2062 = vsel %vm747, %v2054, 0
        %v2063 = vsel %vm748, %v2055, 0
        %s2064 = scalar_lea.vmem [#allocation10], 384
        %v2065 = vld [vmem:[%s2064] sm:$0xf]
        %v2066 = vld [vmem:[%s2064 + $0x4] sm:$0xf]
        %v2067 = vld [vmem:[%s2064 + $0x8] sm:$0xf]
        %v2068 = vld [vmem:[%s2064 + $0xc] sm:$0xf]
        %v2069 = vld [vmem:[%s2064 + $0x10] sm:$0xf]
        %v2070 = vld [vmem:[%s2064 + $0x14] sm:$0xf]
        %v2071 = vld [vmem:[%s2064 + $0x18] sm:$0xf]
        %v2072 = vld [vmem:[%s2064 + $0x1c] sm:$0xf]
        %v2073 = vld [vmem:[%s2064 + $0x20] sm:$0xf]
        %v2074 = vld [vmem:[%s2064 + $0x24] sm:$0xf]
        %v2075 = vld [vmem:[%s2064 + $0x28] sm:$0xf]
        %v2076 = vld [vmem:[%s2064 + $0x2c] sm:$0xf]
        %v2077 = vld [vmem:[%s2064 + $0x30] sm:$0xf]
        %v2078 = vld [vmem:[%s2064 + $0x34] sm:$0xf]
        %v2079 = vld [vmem:[%s2064 + $0x38] sm:$0xf]
        %v2080 = vld [vmem:[%s2064 + $0x3c] sm:$0xf]
        %v2089 = vunpack.c.l.b16 %v2056
        %v2090 = vunpack.c.l.b16 %v2057
        %v2091 = vunpack.c.l.b16 %v2058
        %v2092 = vunpack.c.l.b16 %v2059
        %v2093 = vunpack.c.l.b16 %v2060
        %v2094 = vunpack.c.l.b16 %v2061
        %v2095 = vunpack.c.l.b16 %v2062
        %v2096 = vunpack.c.l.b16 %v2063
        %v2097 = vpack.c.b16 %v2090, %v2089
        %v2098 = vpack.c.b16 %v2092, %v2091
        %v2099 = vpack.c.b16 %v2094, %v2093
        %v2100 = vpack.c.b16 %v2096, %v2095
        %v2121 = vunpack.c.l.b16 %v2065
        %v2122 = vunpack.c.l.b16 %v2066
        %v2123 = vunpack.c.l.b16 %v2067
        %v2124 = vunpack.c.l.b16 %v2068
        %v2125 = vunpack.c.l.b16 %v2069
        %v2126 = vunpack.c.l.b16 %v2070
        %v2127 = vunpack.c.l.b16 %v2071
        %v2128 = vunpack.c.l.b16 %v2072
        %v2129 = vunpack.c.l.b16 %v2073
        %v2130 = vunpack.c.l.b16 %v2074
        %v2131 = vunpack.c.l.b16 %v2075
        %v2132 = vunpack.c.l.b16 %v2076
        %v2133 = vunpack.c.l.b16 %v2077
        %v2134 = vunpack.c.l.b16 %v2078
        %v2135 = vunpack.c.l.b16 %v2079
        %v2136 = vunpack.c.l.b16 %v2080
        %v2137 = vpack.c.b16 %v2122, %v2121
        %v2138 = vpack.c.b16 %v2124, %v2123
        %v2139 = vpack.c.b16 %v2126, %v2125
        %v2140 = vpack.c.b16 %v2128, %v2127
        %v2141 = vpack.c.b16 %v2130, %v2129
        %v2142 = vpack.c.b16 %v2132, %v2131
        %v2143 = vpack.c.b16 %v2134, %v2133
        %v2144 = vpack.c.b16 %v2136, %v2135
        %2153 = vmatprep.subr.bf16.mxu0 0
        %2154 = vmatpush1.bf16.msra.mxu0 %v2137
        %2155 = vmatprep.subr.bf16.mxu0 0
        %2156 = vmatpush1.bf16.msra.mxu0 %v2138
        %2157 = vmatprep.subr.bf16.mxu0 0
        %2158 = vmatpush1.bf16.msra.mxu0 %v2139
        %2159 = vmatprep.subr.bf16.mxu0 0
        %2160 = vmatpush1.bf16.msra.mxu0 %v2140
        %2161 = vmatprep.subr.bf16.mxu0 0
        %2162 = vmatpush1.bf16.msra.mxu0 %v2141
        %2163 = vmatprep.subr.bf16.mxu0 0
        %2164 = vmatpush1.bf16.msra.mxu0 %v2142
        %2165 = vmatprep.subr.bf16.mxu0 0
        %2166 = vmatpush1.bf16.msra.mxu0 %v2143
        %2167 = vmatprep.subr.bf16.mxu0 0
        %2168 = vmatpush1.bf16.msra.mxu0 %v2144
        %2169 = vmatprep.subr.bf16.mxu0 0
        %2170 = vmatpush1.bf16.msra.mxu0 0
        %2171 = vmatprep.subr.bf16.mxu0 0
        %2172 = vmatpush1.bf16.msra.mxu0 0
        %2173 = vmatprep.subr.bf16.mxu0 0
        %2174 = vmatpush1.bf16.msra.mxu0 0
        %2175 = vmatprep.subr.bf16.mxu0 0
        %2176 = vmatpush1.bf16.msra.mxu0 0
        %2177 = vmatprep.subr.bf16.mxu0 0
        %2178 = vmatpush1.bf16.msra.mxu0 0
        %2179 = vmatprep.subr.bf16.mxu0 0
        %2180 = vmatpush1.bf16.msra.mxu0 0
        %2181 = vmatprep.subr.bf16.mxu0 0
        %2182 = vmatpush1.bf16.msra.mxu0 0
        %2183 = vmatprep.subr.bf16.mxu0 0
        %2184 = vmatpush1.bf16.msra.mxu0 0
        %2185 = vmatprep.mubr.bf16.mxu0 0
        %2186 = vmatmul.mubr.bf16.gmra.mrb[0].mxu0 %v2097
        %v2187 = vpop.f32.mrb[0].mxu0
        %v2188 = vadd.f32 0.0, %v2187
        %v2189 = vpop.f32.mrb[0].mxu0
        %v2190 = vpop.f32.mrb[0].mxu0
        %v2191 = vadd.f32 0.0, %v2190
        %v2192 = vpop.f32.mrb[0].mxu0
        %2193 = vmatprep.mubr.bf16.mxu0 0
        %2194 = vmatmul.mubr.bf16.gmra.mrb[0].mxu0 %v2098
        %v2195 = vpop.f32.mrb[0].mxu0
        %v2196 = vadd.f32 0.0, %v2195
        %v2197 = vpop.f32.mrb[0].mxu0
        %v2198 = vpop.f32.mrb[0].mxu0
        %v2199 = vadd.f32 0.0, %v2198
        %v2200 = vpop.f32.mrb[0].mxu0
        %2201 = vmatprep.mubr.bf16.mxu0 0
        %2202 = vmatmul.mubr.bf16.gmra.mrb[0].mxu0 %v2099
        %v2203 = vpop.f32.mrb[0].mxu0
        %v2204 = vadd.f32 0.0, %v2203
        %v2205 = vpop.f32.mrb[0].mxu0
        %v2206 = vpop.f32.mrb[0].mxu0
        %v2207 = vadd.f32 0.0, %v2206
        %v2208 = vpop.f32.mrb[0].mxu0
        %2209 = vmatprep.mubr.bf16.mxu0 0
        %2210 = vmatmul.mubr.bf16.gmra.mrb[0].mxu0 %v2100
        %v2211 = vpop.f32.mrb[0].mxu0
        %v2212 = vadd.f32 0.0, %v2211
        %v2213 = vpop.f32.mrb[0].mxu0
        %v2214 = vpop.f32.mrb[0].mxu0
        %v2215 = vadd.f32 0.0, %v2214
        %v2216 = vpop.f32.mrb[0].mxu0
        %2217 = vdwg.mxu0
        %v2218 = vld [vmem:[#allocation3] sm:$0xff]
        %v2219 = vld [vmem:[#allocation3 + $0x8] sm:$0xff]
        %v2220 = vld [vmem:[#allocation3 + $0x10] sm:$0xff]
        %v2221 = vld [vmem:[#allocation3 + $0x18] sm:$0xff]
        %v2222 = vld [vmem:[#allocation3 + $0x20] sm:$0xff]
        %v2223 = vld [vmem:[#allocation3 + $0x28] sm:$0xff]
        %v2224 = vld [vmem:[#allocation3 + $0x30] sm:$0xff]
        %v2225 = vld [vmem:[#allocation3 + $0x38] sm:$0xff]
        %v2226 = vadd.f32 %v2218, %v2188
        %v2227 = vadd.f32 %v2219, %v2191
        %v2228 = vadd.f32 %v2220, %v2196
        %v2229 = vadd.f32 %v2221, %v2199
        %v2230 = vadd.f32 %v2222, %v2204
        %v2231 = vadd.f32 %v2223, %v2207
        %v2232 = vadd.f32 %v2224, %v2212
        %v2233 = vadd.f32 %v2225, %v2215
        %2234 = vst [vmem:[#allocation3] sm:$0xff] %v2226
        %2235 = vst [vmem:[#allocation3 + $0x8] sm:$0xff] %v2227
        %2236 = vst [vmem:[#allocation3 + $0x10] sm:$0xff] %v2228
        %2237 = vst [vmem:[#allocation3 + $0x18] sm:$0xff] %v2229
        %2238 = vst [vmem:[#allocation3 + $0x20] sm:$0xff] %v2230
        %2239 = vst [vmem:[#allocation3 + $0x28] sm:$0xff] %v2231
        %2240 = vst [vmem:[#allocation3 + $0x30] sm:$0xff] %v2232
        %2241 = vst [vmem:[#allocation3 + $0x38] sm:$0xff] %v2233
        %v2242 = vld [vmem:[#allocation2 + $0x10] sm:$0xf]
        %v2243 = vld [vmem:[#allocation2 + $0x14] sm:$0xf]
        %v2244 = vld [vmem:[#allocation2 + $0x18] sm:$0xf]
        %v2245 = vld [vmem:[#allocation2 + $0x1c] sm:$0xf]
        %v2246 = vld [vmem:[#allocation2 + $0x20] sm:$0xf]
        %v2247 = vld [vmem:[#allocation2 + $0x24] sm:$0xf]
        %v2248 = vld [vmem:[#allocation2 + $0x28] sm:$0xf]
        %v2249 = vld [vmem:[#allocation2 + $0x2c] sm:$0xf]
        %v2250 = vld [vmem:[#allocation2 + $0x30] sm:$0x1]
        %s2251 = scalar_lea.vmem [#allocation10], 448
        %v2252 = vld [vmem:[%s2251] sm:$0xf]
        %v2253 = vld [vmem:[%s2251 + $0x4] sm:$0xf]
        %v2254 = vld [vmem:[%s2251 + $0x8] sm:$0xf]
        %v2255 = vld [vmem:[%s2251 + $0xc] sm:$0xf]
        %v2256 = vld [vmem:[%s2251 + $0x10] sm:$0xf]
        %v2257 = vld [vmem:[%s2251 + $0x14] sm:$0xf]
        %v2258 = vld [vmem:[%s2251 + $0x18] sm:$0xf]
        %v2259 = vld [vmem:[%s2251 + $0x1c] sm:$0xf]
        %v2260 = vld [vmem:[%s2251 + $0x20] sm:$0xf]
        %v2261 = vld [vmem:[%s2251 + $0x24] sm:$0xf]
        %v2262 = vld [vmem:[%s2251 + $0x28] sm:$0xf]
        %v2263 = vld [vmem:[%s2251 + $0x2c] sm:$0xf]
        %v2264 = vld [vmem:[%s2251 + $0x30] sm:$0xf]
        %v2265 = vld [vmem:[%s2251 + $0x34] sm:$0xf]
        %v2266 = vld [vmem:[%s2251 + $0x38] sm:$0xf]
        %v2267 = vld [vmem:[%s2251 + $0x3c] sm:$0xf]
        %v2277 = vunpack.c.l.b16 %v2242
        %v2278 = vunpack.c.l.b16 %v2243
        %v2279 = vunpack.c.l.b16 %v2244
        %v2280 = vunpack.c.l.b16 %v2245
        %v2281 = vunpack.c.l.b16 %v2246
        %v2282 = vunpack.c.l.b16 %v2247
        %v2283 = vunpack.c.l.b16 %v2248
        %v2284 = vunpack.c.l.b16 %v2249
        %v2285 = vunpack.c.l.b16 %v2250
        %v2286 = vpack.c.b16 %v2278, %v2277
        %v2287 = vpack.c.b16 %v2280, %v2279
        %v2288 = vpack.c.b16 %v2282, %v2281
        %v2289 = vpack.c.b16 %v2284, %v2283
        %v2290 = vpack.c.b16 %v2285, %v2285
        %v2292 = vshrl.u32 %v2286, 16
        %v2294 = vshll.u32 %v2286, 16
        %v2296 = vrot.slane %v2294, 1
        %v2297 = vor.u32 %v2292, %v2296
        %v2299 = vshll.u32 %v2287, 16
        %v2301 = vrot.slane %v2299, 1
        %v2302 = vsel %vm967, %v2297, %v2301
        %v2303 = vshrl.u32 %v2287, 16
        %v2305 = vor.u32 %v2303, %v2301
        %v2307 = vshll.u32 %v2288, 16
        %v2309 = vrot.slane %v2307, 1
        %v2310 = vsel %vm967, %v2305, %v2309
        %v2311 = vshrl.u32 %v2288, 16
        %v2313 = vor.u32 %v2311, %v2309
        %v2315 = vshll.u32 %v2289, 16
        %v2317 = vrot.slane %v2315, 1
        %v2318 = vsel %vm967, %v2313, %v2317
        %v2319 = vshrl.u32 %v2289, 16
        %v2321 = vor.u32 %v2319, %v2317
        %v2323 = vshll.u32 %v2290, 16
        %v2325 = vrot.slane %v2323, 1
        %v2326 = vsel %vm967, %v2321, %v2325
        %v2347 = vunpack.c.l.b16 %v2252
        %v2348 = vunpack.c.l.b16 %v2253
        %v2349 = vunpack.c.l.b16 %v2254
        %v2350 = vunpack.c.l.b16 %v2255
        %v2351 = vunpack.c.l.b16 %v2256
        %v2352 = vunpack.c.l.b16 %v2257
        %v2353 = vunpack.c.l.b16 %v2258
        %v2354 = vunpack.c.l.b16 %v2259
        %v2355 = vunpack.c.l.b16 %v2260
        %v2356 = vunpack.c.l.b16 %v2261
        %v2357 = vunpack.c.l.b16 %v2262
        %v2358 = vunpack.c.l.b16 %v2263
        %v2359 = vunpack.c.l.b16 %v2264
        %v2360 = vunpack.c.l.b16 %v2265
        %v2361 = vunpack.c.l.b16 %v2266
        %v2362 = vunpack.c.l.b16 %v2267
        %v2363 = vpack.c.b16 %v2348, %v2347
        %v2364 = vpack.c.b16 %v2350, %v2349
        %v2365 = vpack.c.b16 %v2352, %v2351
        %v2366 = vpack.c.b16 %v2354, %v2353
        %v2367 = vpack.c.b16 %v2356, %v2355
        %v2368 = vpack.c.b16 %v2358, %v2357
        %v2369 = vpack.c.b16 %v2360, %v2359
        %v2370 = vpack.c.b16 %v2362, %v2361
        %2379 = vmatprep.subr.bf16.mxu0 0
        %2380 = vmatpush1.bf16.msra.mxu0 %v2363
        %2381 = vmatprep.subr.bf16.mxu0 0
        %2382 = vmatpush1.bf16.msra.mxu0 %v2364
        %2383 = vmatprep.subr.bf16.mxu0 0
        %2384 = vmatpush1.bf16.msra.mxu0 %v2365
        %2385 = vmatprep.subr.bf16.mxu0 0
        %2386 = vmatpush1.bf16.msra.mxu0 %v2366
        %2387 = vmatprep.subr.bf16.mxu0 0
        %2388 = vmatpush1.bf16.msra.mxu0 %v2367
        %2389 = vmatprep.subr.bf16.mxu0 0
        %2390 = vmatpush1.bf16.msra.mxu0 %v2368
        %2391 = vmatprep.subr.bf16.mxu0 0
        %2392 = vmatpush1.bf16.msra.mxu0 %v2369
        %2393 = vmatprep.subr.bf16.mxu0 0
        %2394 = vmatpush1.bf16.msra.mxu0 %v2370
        %2395 = vmatprep.subr.bf16.mxu0 0
        %2396 = vmatpush1.bf16.msra.mxu0 0
        %2397 = vmatprep.subr.bf16.mxu0 0
        %2398 = vmatpush1.bf16.msra.mxu0 0
        %2399 = vmatprep.subr.bf16.mxu0 0
        %2400 = vmatpush1.bf16.msra.mxu0 0
        %2401 = vmatprep.subr.bf16.mxu0 0
        %2402 = vmatpush1.bf16.msra.mxu0 0
        %2403 = vmatprep.subr.bf16.mxu0 0
        %2404 = vmatpush1.bf16.msra.mxu0 0
        %2405 = vmatprep.subr.bf16.mxu0 0
        %2406 = vmatpush1.bf16.msra.mxu0 0
        %2407 = vmatprep.subr.bf16.mxu0 0
        %2408 = vmatpush1.bf16.msra.mxu0 0
        %2409 = vmatprep.subr.bf16.mxu0 0
        %2410 = vmatpush1.bf16.msra.mxu0 0
        %2411 = vmatprep.mubr.bf16.mxu0 0
        %2412 = vmatmul.mubr.bf16.gmra.mrb[0].mxu0 %v2302
        %v2413 = vpop.f32.mrb[0].mxu0
        %v2414 = vadd.f32 0.0, %v2413
        %v2415 = vpop.f32.mrb[0].mxu0
        %v2416 = vpop.f32.mrb[0].mxu0
        %v2417 = vadd.f32 0.0, %v2416
        %v2418 = vpop.f32.mrb[0].mxu0
        %2419 = vmatprep.mubr.bf16.mxu0 0
        %2420 = vmatmul.mubr.bf16.gmra.mrb[0].mxu0 %v2310
        %v2421 = vpop.f32.mrb[0].mxu0
        %v2422 = vadd.f32 0.0, %v2421
        %v2423 = vpop.f32.mrb[0].mxu0
        %v2424 = vpop.f32.mrb[0].mxu0
        %v2425 = vadd.f32 0.0, %v2424
        %v2426 = vpop.f32.mrb[0].mxu0
        %2427 = vmatprep.mubr.bf16.mxu0 0
        %2428 = vmatmul.mubr.bf16.gmra.mrb[0].mxu0 %v2318
        %v2429 = vpop.f32.mrb[0].mxu0
        %v2430 = vadd.f32 0.0, %v2429
        %v2431 = vpop.f32.mrb[0].mxu0
        %v2432 = vpop.f32.mrb[0].mxu0
        %v2433 = vadd.f32 0.0, %v2432
        %v2434 = vpop.f32.mrb[0].mxu0
        %2435 = vmatprep.mubr.bf16.mxu0 0
        %2436 = vmatmul.mubr.bf16.gmra.mrb[0].mxu0 %v2326
        %v2437 = vpop.f32.mrb[0].mxu0
        %v2438 = vadd.f32 0.0, %v2437
        %v2439 = vpop.f32.mrb[0].mxu0
        %v2440 = vpop.f32.mrb[0].mxu0
        %v2441 = vadd.f32 0.0, %v2440
        %v2442 = vpop.f32.mrb[0].mxu0
        %2443 = vdwg.mxu0
        %v2444 = vld [vmem:[#allocation3] sm:$0xff]
        %v2445 = vld [vmem:[#allocation3 + $0x8] sm:$0xff]
        %v2446 = vld [vmem:[#allocation3 + $0x10] sm:$0xff]
        %v2447 = vld [vmem:[#allocation3 + $0x18] sm:$0xff]
        %v2448 = vld [vmem:[#allocation3 + $0x20] sm:$0xff]
        %v2449 = vld [vmem:[#allocation3 + $0x28] sm:$0xff]
        %v2450 = vld [vmem:[#allocation3 + $0x30] sm:$0xff]
        %v2451 = vld [vmem:[#allocation3 + $0x38] sm:$0xff]
        %v2452 = vadd.f32 %v2444, %v2414
        %v2453 = vadd.f32 %v2445, %v2417
        %v2454 = vadd.f32 %v2446, %v2422
        %v2455 = vadd.f32 %v2447, %v2425
        %v2456 = vadd.f32 %v2448, %v2430
        %v2457 = vadd.f32 %v2449, %v2433
        %v2458 = vadd.f32 %v2450, %v2438
        %v2459 = vadd.f32 %v2451, %v2441
        %2460 = vst [vmem:[#allocation3] sm:$0xff] %v2452
        %2461 = vst [vmem:[#allocation3 + $0x8] sm:$0xff] %v2453
        %2462 = vst [vmem:[#allocation3 + $0x10] sm:$0xff] %v2454
        %2463 = vst [vmem:[#allocation3 + $0x18] sm:$0xff] %v2455
        %2464 = vst [vmem:[#allocation3 + $0x20] sm:$0xff] %v2456
        %2465 = vst [vmem:[#allocation3 + $0x28] sm:$0xff] %v2457
        %2466 = vst [vmem:[#allocation3 + $0x30] sm:$0xff] %v2458
        %2467 = vst [vmem:[#allocation3 + $0x38] sm:$0xff] %v2459
        %v2468 = vld [vmem:[#allocation2 + $0x10] sm:$0xe]
        %v2469 = vld [vmem:[#allocation2 + $0x14] sm:$0xf]
        %v2470 = vld [vmem:[#allocation2 + $0x18] sm:$0xf]
        %v2471 = vld [vmem:[#allocation2 + $0x1c] sm:$0xf]
        %v2472 = vld [vmem:[#allocation2 + $0x20] sm:$0xf]
        %v2473 = vld [vmem:[#allocation2 + $0x24] sm:$0xf]
        %v2474 = vld [vmem:[#allocation2 + $0x28] sm:$0xf]
        %v2475 = vld [vmem:[#allocation2 + $0x2c] sm:$0xf]
        %v2476 = vld [vmem:[#allocation2 + $0x30] sm:$0x1]
        %v2477 = vsel %vm1211, %v2468, 0
        %v2478 = vsel %vm1212, %v2469, 0
        %v2479 = vsel %vm1213, %v2470, 0
        %v2480 = vsel %vm1214, %v2471, 0
        %v2481 = vsel %vm1215, %v2472, 0
        %v2482 = vsel %vm1216, %v2473, 0
        %v2483 = vsel %vm1217, %v2474, 0
        %v2484 = vsel %vm1218, %v2475, 0
        %v2485 = vsel %vm1219, %v2476, 0
        %s2486 = scalar_lea.vmem [#allocation10], 512
        %v2487 = vld [vmem:[%s2486] sm:$0xf]
        %v2488 = vld [vmem:[%s2486 + $0x4] sm:$0xf]
        %v2489 = vld [vmem:[%s2486 + $0x8] sm:$0xf]
        %v2490 = vld [vmem:[%s2486 + $0xc] sm:$0xf]
        %v2491 = vld [vmem:[%s2486 + $0x10] sm:$0xf]
        %v2492 = vld [vmem:[%s2486 + $0x14] sm:$0xf]
        %v2493 = vld [vmem:[%s2486 + $0x18] sm:$0xf]
        %v2494 = vld [vmem:[%s2486 + $0x1c] sm:$0xf]
        %v2495 = vld [vmem:[%s2486 + $0x20] sm:$0xf]
        %v2496 = vld [vmem:[%s2486 + $0x24] sm:$0xf]
        %v2497 = vld [vmem:[%s2486 + $0x28] sm:$0xf]
        %v2498 = vld [vmem:[%s2486 + $0x2c] sm:$0xf]
        %v2499 = vld [vmem:[%s2486 + $0x30] sm:$0xf]
        %v2500 = vld [vmem:[%s2486 + $0x34] sm:$0xf]
        %v2501 = vld [vmem:[%s2486 + $0x38] sm:$0xf]
        %v2502 = vld [vmem:[%s2486 + $0x3c] sm:$0xf]
        %v2512 = vunpack.c.l.b16 %v2477
        %v2513 = vunpack.c.l.b16 %v2478
        %v2514 = vunpack.c.l.b16 %v2479
        %v2515 = vunpack.c.l.b16 %v2480
        %v2516 = vunpack.c.l.b16 %v2481
        %v2517 = vunpack.c.l.b16 %v2482
        %v2518 = vunpack.c.l.b16 %v2483
        %v2519 = vunpack.c.l.b16 %v2484
        %v2520 = vunpack.c.l.b16 %v2485
        %v2521 = vpack.c.b16 %v2513, %v2512
        %v2522 = vpack.c.b16 %v2515, %v2514
        %v2523 = vpack.c.b16 %v2517, %v2516
        %v2524 = vpack.c.b16 %v2519, %v2518
        %v2525 = vpack.c.b16 %v2520, %v2520
        %v2526 = vrot.slane %v2521, 1
        %v2527 = vrot.slane %v2522, 1
        %v2528 = vsel %vm1269, %v2526, %v2527
        %v2529 = vrot.slane %v2523, 1
        %v2530 = vsel %vm1269, %v2527, %v2529
        %v2531 = vrot.slane %v2524, 1
        %v2532 = vsel %vm1269, %v2529, %v2531
        %v2533 = vrot.slane %v2525, 1
        %v2534 = vsel %vm1269, %v2531, %v2533
        %v2555 = vunpack.c.l.b16 %v2487
        %v2556 = vunpack.c.l.b16 %v2488
        %v2557 = vunpack.c.l.b16 %v2489
        %v2558 = vunpack.c.l.b16 %v2490
        %v2559 = vunpack.c.l.b16 %v2491
        %v2560 = vunpack.c.l.b16 %v2492
        %v2561 = vunpack.c.l.b16 %v2493
        %v2562 = vunpack.c.l.b16 %v2494
        %v2563 = vunpack.c.l.b16 %v2495
        %v2564 = vunpack.c.l.b16 %v2496
        %v2565 = vunpack.c.l.b16 %v2497
        %v2566 = vunpack.c.l.b16 %v2498
        %v2567 = vunpack.c.l.b16 %v2499
        %v2568 = vunpack.c.l.b16 %v2500
        %v2569 = vunpack.c.l.b16 %v2501
        %v2570 = vunpack.c.l.b16 %v2502
        %v2571 = vpack.c.b16 %v2556, %v2555
        %v2572 = vpack.c.b16 %v2558, %v2557
        %v2573 = vpack.c.b16 %v2560, %v2559
        %v2574 = vpack.c.b16 %v2562, %v2561
        %v2575 = vpack.c.b16 %v2564, %v2563
        %v2576 = vpack.c.b16 %v2566, %v2565
        %v2577 = vpack.c.b16 %v2568, %v2567
        %v2578 = vpack.c.b16 %v2570, %v2569
        %2587 = vmatprep.subr.bf16.mxu0 0
        %2588 = vmatpush1.bf16.msra.mxu0 %v2571
        %2589 = vmatprep.subr.bf16.mxu0 0
        %2590 = vmatpush1.bf16.msra.mxu0 %v2572
        %2591 = vmatprep.subr.bf16.mxu0 0
        %2592 = vmatpush1.bf16.msra.mxu0 %v2573
        %2593 = vmatprep.subr.bf16.mxu0 0
        %2594 = vmatpush1.bf16.msra.mxu0 %v2574
        %2595 = vmatprep.subr.bf16.mxu0 0
        %2596 = vmatpush1.bf16.msra.mxu0 %v2575
        %2597 = vmatprep.subr.bf16.mxu0 0
        %2598 = vmatpush1.bf16.msra.mxu0 %v2576
        %2599 = vmatprep.subr.bf16.mxu0 0
        %2600 = vmatpush1.bf16.msra.mxu0 %v2577
        %2601 = vmatprep.subr.bf16.mxu0 0
        %2602 = vmatpush1.bf16.msra.mxu0 %v2578
        %2603 = vmatprep.subr.bf16.mxu0 0
        %2604 = vmatpush1.bf16.msra.mxu0 0
        %2605 = vmatprep.subr.bf16.mxu0 0
        %2606 = vmatpush1.bf16.msra.mxu0 0
        %2607 = vmatprep.subr.bf16.mxu0 0
        %2608 = vmatpush1.bf16.msra.mxu0 0
        %2609 = vmatprep.subr.bf16.mxu0 0
        %2610 = vmatpush1.bf16.msra.mxu0 0
        %2611 = vmatprep.subr.bf16.mxu0 0
        %2612 = vmatpush1.bf16.msra.mxu0 0
        %2613 = vmatprep.subr.bf16.mxu0 0
        %2614 = vmatpush1.bf16.msra.mxu0 0
        %2615 = vmatprep.subr.bf16.mxu0 0
        %2616 = vmatpush1.bf16.msra.mxu0 0
        %2617 = vmatprep.subr.bf16.mxu0 0
        %2618 = vmatpush1.bf16.msra.mxu0 0
        %2619 = vmatprep.mubr.bf16.mxu0 0
        %2620 = vmatmul.mubr.bf16.gmra.mrb[0].mxu0 %v2528
        %v2621 = vpop.f32.mrb[0].mxu0
        %v2622 = vadd.f32 0.0, %v2621
        %v2623 = vpop.f32.mrb[0].mxu0
        %v2624 = vpop.f32.mrb[0].mxu0
        %v2625 = vadd.f32 0.0, %v2624
        %v2626 = vpop.f32.mrb[0].mxu0
        %2627 = vmatprep.mubr.bf16.mxu0 0
        %2628 = vmatmul.mubr.bf16.gmra.mrb[0].mxu0 %v2530
        %v2629 = vpop.f32.mrb[0].mxu0
        %v2630 = vadd.f32 0.0, %v2629
        %v2631 = vpop.f32.mrb[0].mxu0
        %v2632 = vpop.f32.mrb[0].mxu0
        %v2633 = vadd.f32 0.0, %v2632
        %v2634 = vpop.f32.mrb[0].mxu0
        %2635 = vmatprep.mubr.bf16.mxu0 0
        %2636 = vmatmul.mubr.bf16.gmra.mrb[0].mxu0 %v2532
        %v2637 = vpop.f32.mrb[0].mxu0
        %v2638 = vadd.f32 0.0, %v2637
        %v2639 = vpop.f32.mrb[0].mxu0
        %v2640 = vpop.f32.mrb[0].mxu0
        %v2641 = vadd.f32 0.0, %v2640
        %v2642 = vpop.f32.mrb[0].mxu0
        %2643 = vmatprep.mubr.bf16.mxu0 0
        %2644 = vmatmul.mubr.bf16.gmra.mrb[0].mxu0 %v2534
        %v2645 = vpop.f32.mrb[0].mxu0
        %v2646 = vadd.f32 0.0, %v2645
        %v2647 = vpop.f32.mrb[0].mxu0
        %v2648 = vpop.f32.mrb[0].mxu0
        %v2649 = vadd.f32 0.0, %v2648
        %v2650 = vpop.f32.mrb[0].mxu0
        %2651 = vdwg.mxu0
        %v2652 = vld [vmem:[#allocation3] sm:$0xff]
        %v2653 = vld [vmem:[#allocation3 + $0x8] sm:$0xff]
        %v2654 = vld [vmem:[#allocation3 + $0x10] sm:$0xff]
        %v2655 = vld [vmem:[#allocation3 + $0x18] sm:$0xff]
        %v2656 = vld [vmem:[#allocation3 + $0x20] sm:$0xff]
        %v2657 = vld [vmem:[#allocation3 + $0x28] sm:$0xff]
        %v2658 = vld [vmem:[#allocation3 + $0x30] sm:$0xff]
        %v2659 = vld [vmem:[#allocation3 + $0x38] sm:$0xff]
        %v2660 = vadd.f32 %v2652, %v2622
        %v2661 = vadd.f32 %v2653, %v2625
        %v2662 = vadd.f32 %v2654, %v2630
        %v2663 = vadd.f32 %v2655, %v2633
        %v2664 = vadd.f32 %v2656, %v2638
        %v2665 = vadd.f32 %v2657, %v2641
        %v2666 = vadd.f32 %v2658, %v2646
        %v2667 = vadd.f32 %v2659, %v2649
        %2668 = vst [vmem:[#allocation3] sm:$0xff] %v2660
        %2669 = vst [vmem:[#allocation3 + $0x8] sm:$0xff] %v2661
        %2670 = vst [vmem:[#allocation3 + $0x10] sm:$0xff] %v2662
        %2671 = vst [vmem:[#allocation3 + $0x18] sm:$0xff] %v2663
        %2672 = vst [vmem:[#allocation3 + $0x20] sm:$0xff] %v2664
        %2673 = vst [vmem:[#allocation3 + $0x28] sm:$0xff] %v2665
        %2674 = vst [vmem:[#allocation3 + $0x30] sm:$0xff] %v2666
        %2675 = vst [vmem:[#allocation3 + $0x38] sm:$0xff] %v2667
        %v2676 = vld [vmem:[#allocation3] sm:$0xff]
        %v2677 = vld [vmem:[#allocation3 + $0x8] sm:$0xff]
        %v2678 = vld [vmem:[#allocation3 + $0x10] sm:$0xff]
        %v2679 = vld [vmem:[#allocation3 + $0x18] sm:$0xff]
        %v2680 = vld [vmem:[#allocation3 + $0x20] sm:$0xff]
        %v2681 = vld [vmem:[#allocation3 + $0x28] sm:$0xff]
        %v2682 = vld [vmem:[#allocation3 + $0x30] sm:$0xff]
        %v2683 = vld [vmem:[#allocation3 + $0x38] sm:$0xff]
        %v2684 = vld [vmem:[%s4] sm:$0x1]
        %v2686 = vlaneseq
        %v2687 = vshrl.u32 %v2686, 7
        %v2688 = vsub.s32 0, %v2687
        %v2689 = vrot.slane %v2684, %v2688
        %v2691 = vadd.f32 %v2676, %v2689
        %v2692 = vadd.f32 %v2677, %v2689
        %v2693 = vadd.f32 %v2678, %v2689
        %v2694 = vadd.f32 %v2679, %v2689
        %v2695 = vadd.f32 %v2680, %v2689
        %v2696 = vadd.f32 %v2681, %v2689
        %v2697 = vadd.f32 %v2682, %v2689
        %v2698 = vadd.f32 %v2683, %v2689
        %v2699 = vpack.c.bf16 %v2692, %v2691
        %v2700 = vpack.c.bf16 %v2694, %v2693
        %v2701 = vpack.c.bf16 %v2696, %v2695
        %v2702 = vpack.c.bf16 %v2698, %v2697
        %v2707 = vunpack.c.l.b16 %v2699
        %v2708 = vunpack.c.h.b16 %v2699
        %v2709 = vunpack.c.l.b16 %v2700
        %v2710 = vunpack.c.h.b16 %v2700
        %v2711 = vunpack.c.l.b16 %v2701
        %v2712 = vunpack.c.h.b16 %v2701
        %v2713 = vunpack.c.l.b16 %v2702
        %v2714 = vunpack.c.h.b16 %v2702
        %v2715 = vpack.c.b16 %v2707, %v2707
        %v2716 = vpack.c.b16 %v2708, %v2708
        %v2717 = vpack.c.b16 %v2709, %v2709
        %v2718 = vpack.c.b16 %v2710, %v2710
        %v2719 = vpack.c.b16 %v2711, %v2711
        %v2720 = vpack.c.b16 %v2712, %v2712
        %v2721 = vpack.c.b16 %v2713, %v2713
        %v2722 = vpack.c.b16 %v2714, %v2714
        %2731 = vst [vmem:[%s378] sm:$0xf] %v2715
        %2732 = vst [vmem:[%s378 + $0x4] sm:$0xf] %v2716
        %2733 = vst [vmem:[%s378 + $0x8] sm:$0xf] %v2717
        %2734 = vst [vmem:[%s378 + $0xc] sm:$0xf] %v2718
        %2735 = vst [vmem:[%s378 + $0x10] sm:$0xf] %v2719
        %2736 = vst [vmem:[%s378 + $0x14] sm:$0xf] %v2720
        %2737 = vst [vmem:[%s378 + $0x18] sm:$0xf] %v2721
        %2738 = vst [vmem:[%s378 + $0x1c] sm:$0xf] %v2722
        %s2739 = sand.u32 %s186, 1
        %s2740 = scalar_lea.sflag [#allocation6], %s2739
        %s2741 = sand.u32 %s186, 1
        %s2742 = smul.addr %s2741, 32
        %s2743 = scalar_lea.vmem [#allocation12], %s2742
        // Predicated region
        $region73: #{tpu_custom_call.1} parent=39 // pred_check
          %p2744 = pneg %p196
        $region74: #{tpu_custom_call.1} parent=39 // pred_check_branch
          %2746 = sbr.rel (%p2744) target = $region76
        $region75: #{tpu_custom_call.1} parent=39 // pred_region
          %s2747 = smul.u32 8, %s31
          %s2749 = ssub.s32 512, 512
          %2750 = vsyncadd %s2740, %s2749
          %s2751 = smul.addr %s30, 32
          %s2752 = sadd.s32 %s2747, %s2751
          %s2753 = smul.addr %s2752, 64
          %s2754 = scalar_lea.hbm %s5, %s2753
          %s2755 = sshll.u32 %s2743, 4
          %s2756 = int_to_ptr.vmem [resolvable:$true] %s2755
          %2761 = dma.vmem_to_hbm [thread:$0]  %s2756, 512, %s2754, %s2740, 64, 64, 4
        $region76: #{tpu_custom_call.1} parent=39 // pred_fallthru
          _
      $region40: #{tpu_custom_call.1} parent=5 // pred_fallthru
        _
      %p2762 = scmp.le.s32.totalorder 2, %s21
      // Predicated region
      $region77: #{tpu_custom_call.1} parent=5 // pred_check
        %p2763 = pneg %p2762
      $region78: #{tpu_custom_call.1} parent=5 // pred_check_branch
        %2765 = sbr.rel (%p2763) target = $region80
      $region79: #{tpu_custom_call.1} parent=5 // pred_region
        %s2766 = ssub.s32 %s21, 2
        // Predicated region
        $region81: #{tpu_custom_call.1} parent=79 // pred_check
          %p2767 = pneg %p202
        $region82: #{tpu_custom_call.1} parent=79 // pred_check_branch
          %2769 = sbr.rel (%p2767) target = $region84
        $region83: #{tpu_custom_call.1} parent=79 // pred_region
          %s2770 = sand.u32 %s187, 1
          %s2771 = scalar_lea.sflag [#allocation6], %s2770
          %s2772 = sand.u32 %s187, 1
          %s2773 = smul.addr %s2772, 32
          %s2774 = scalar_lea.vmem [#allocation12], %s2773
          %2775 = dma.done %s2771, 512
        $region84: #{tpu_custom_call.1} parent=79 // pred_fallthru
          _
      $region80: #{tpu_custom_call.1} parent=5 // pred_fallthru
        _
    $region6: #{tpu_custom_call.1} parent=1 // loop_footer
      %s25 = sadd.s32 1, %s21
    $region7: #{tpu_custom_call.1} parent=1 // loop_footer_branch
      %20 = sbr.rel target = $region3
    $region8: #{tpu_custom_call.1} parent=1 // loop_exit
      _
    %2776 = vsyncpa [#allocation5], 1
    %s2777 = scalar_lea.sflag [#allocation5], 1
    %2778 = vsyncpa %s2777, 1
    %2779 = vsyncpa [#allocation8], 1
    %s2780 = scalar_lea.sflag [#allocation8], 1
    %2781 = vsyncpa %s2780, 1
    %2782 = vsyncpa [#allocation11], 1
    %2783 = vsyncpa [#allocation6], 1
    %s2784 = scalar_lea.sflag [#allocation6], 1
    %2785 = vsyncpa %s2784, 1

</llo_original>
